<compile_context>
chip_gen: v5e
topology: v5e:2x2
jax: 0.10.0
libtpu: 0.0.40
codegen_flags: <defaults>
</compile_context>

<pallas_src>
import math

import jax
import jax.numpy as jnp
from jax.experimental import pallas as pl
from jax.experimental.pallas import tpu as pltpu


def _round_up(x, m):
    return (x + m - 1) // m * m


# ---------------------------------------------------------------------------
# Kernel
# ---------------------------------------------------------------------------
def _ffn_kernel(x_ref, w13_ref, w2_ref, o_ref):
    """One (row-tile, hidden-tile) step of the SwiGLU FFN.

    x_ref  : (tm, dim)      input rows (cast to bf16 here, on the VPU)
    w13_ref: (dim, 2*th)    packed [w1^T | w3^T] hidden tile, bf16
    w2_ref : (th, dim)      w2^T hidden tile, bf16
    o_ref  : (tm, dim) f32  output block; resident across the hidden axis and
                            used directly as the accumulator (no scratch).
    """
    th = w2_ref.shape[0]
    h = pl.program_id(1)

    xb = x_ref[...].astype(jnp.bfloat16)

    # Fused gate projections: one MXU pass produces [h1 | h3] for this tile.
    h13 = jnp.dot(xb, w13_ref[...], preferred_element_type=jnp.float32)
    h1 = h13[:, :th]
    h3 = h13[:, th:]

    # SwiGLU gate in f32 (sigmoid on the EUP, muls on the VPU).
    g = (h1 * jax.nn.sigmoid(h1)) * h3

    # Down-projection partial sum, f32 accumulation directly into o_ref.
    partial = jnp.dot(g.astype(w2_ref.dtype), w2_ref[...],
                      preferred_element_type=jnp.float32)

    @pl.when(h == 0)
    def _():
        o_ref[...] = partial

    @pl.when(h > 0)
    def _():
        o_ref[...] += partial


# ---------------------------------------------------------------------------
# One-time weight packing (hoisted out of the forward pass)
# ---------------------------------------------------------------------------
def prepare_ffn_weights(w1, w2, w3, *, th=512):
    """Pack torch-layout weights once.

    w1, w3 : (hidden, dim)   torch nn.Linear layout (out, in)
    w2     : (dim, hidden)

    Returns a dict with bf16 weights laid out as contiguous per-hidden-tile
    slabs:
      w13 : (nh, dim, 2*th)  -- [w1^T_tile | w3^T_tile] per hidden tile
      w2  : (nh, th, dim)    -- w2^T per hidden tile
    The hidden dim is zero-padded up to a multiple of th (numerically exact).
    """
    hidden, dim = w1.shape

    th = max(128, _round_up(int(th), 128))
    th = min(th, _round_up(hidden, 128))
    h_pad = _round_up(hidden, th)
    nh = h_pad // th

    pad_h = h_pad - hidden
    w1t = jnp.pad(w1.T, ((0, 0), (0, pad_h))).astype(jnp.bfloat16)   # (dim, h_pad)
    w3t = jnp.pad(w3.T, ((0, 0), (0, pad_h))).astype(jnp.bfloat16)   # (dim, h_pad)
    w2t = jnp.pad(w2.T, ((0, pad_h), (0, 0))).astype(jnp.bfloat16)   # (h_pad, dim)

    w13 = jnp.concatenate(
        [w1t.reshape(dim, nh, th), w3t.reshape(dim, nh, th)], axis=2
    )                                    # (dim, nh, 2*th)
    w13 = jnp.transpose(w13, (1, 0, 2))  # (nh, dim, 2*th): contiguous per tile
    w2p = w2t.reshape(nh, th, dim)       # (nh, th, dim):   contiguous per tile

    return {"w13": w13, "w2": w2p, "th": th, "dim": dim, "hidden": hidden}


# ---------------------------------------------------------------------------
# Forward pass
# ---------------------------------------------------------------------------
def feed_forward_pallas(x, packed, *, tm=512, vmem_budget_bytes=48 * 1024 * 1024):
    """SwiGLU FFN forward.  x: (..., dim).  packed: from prepare_ffn_weights."""
    w13, w2p = packed["w13"], packed["w2"]
    dim, th = packed["dim"], packed["th"]
    nh = w13.shape[0]

    orig_shape = x.shape
    orig_dtype = x.dtype
    assert orig_shape[-1] == dim
    M = math.prod(orig_shape[:-1])
    x2 = x.reshape(M, dim)
    x_bytes = x2.dtype.itemsize

    # Per-step VMEM working set (double-buffered inputs/outputs).
    def vmem_need(t):
        return (2 * t * dim * x_bytes          # x row tile
                + 2 * t * dim * 4              # f32 output block (accumulator)
                + 2 * dim * (2 * th) * 2       # packed [w1|w3] tile, bf16
                + 2 * th * dim * 2)            # w2^T tile, bf16

    # Largest row tile that fits the budget; AI w.r.t. weights == tm FLOPs/B.
    tm = max(8, min(int(tm), _round_up(M, 8)))
    while tm > 128 and vmem_need(tm) > vmem_budget_bytes:
        tm //= 2
    tm = _round_up(tm, 8)

    M_pad = _round_up(M, tm)
    if M_pad != M:
        x2 = jnp.pad(x2, ((0, M_pad - M), (0, 0)))   # zero rows are harmless

    grid = (M_pad // tm, nh)

    vmem_limit = int(min(max(vmem_need(tm) + (8 << 20), 32 << 20), 100 << 20))

    out = pl.pallas_call(
        _ffn_kernel,
        out_shape=jax.ShapeDtypeStruct((M_pad, dim), jnp.float32),
        grid_spec=pltpu.PrefetchScalarGridSpec(
            num_scalar_prefetch=0,
            grid=grid,
            in_specs=[
                pl.BlockSpec((tm, dim), lambda i, h: (i, 0)),           # x rows
                pl.BlockSpec((None, dim, 2 * th), lambda i, h: (h, 0, 0)),  # [w1|w3]
                pl.BlockSpec((None, th, dim), lambda i, h: (h, 0, 0)),      # w2^T
            ],
            out_specs=pl.BlockSpec((tm, dim), lambda i, h: (i, 0)),
        ),
        compiler_params=pltpu.CompilerParams(
            dimension_semantics=("parallel", "arbitrary"),
            vmem_limit_bytes=vmem_limit,
        ),
    )(x2, w13, w2p)

    return out[:M].astype(orig_dtype).reshape(orig_shape)


# ---------------------------------------------------------------------------
# Parameter construction + pure-JAX reference
# ---------------------------------------------------------------------------
def make_params(key, dim, hidden_dim, multiple_of):
    # Replicate the hidden_dim rounding from FeedForward.__init__.
    hidden = int(2 * hidden_dim / 3)
    hidden = multiple_of * ((hidden + multiple_of - 1) // multiple_of)
    k1, k2, k3 = jax.random.split(key, 3)
    # torch nn.Linear weight layout: (out_features, in_features), bias-free.
    w1 = jax.random.normal(k1, (hidden, dim), jnp.float32) / math.sqrt(dim)
    w2 = jax.random.normal(k2, (dim, hidden), jnp.float32) / math.sqrt(hidden)
    w3 = jax.random.normal(k3, (hidden, dim), jnp.float32) / math.sqrt(dim)
    return w1, w2, w3, hidden


def reference(x, w1, w2, w3):
    # Mirrors the kernel's bf16-in / f32-accumulate numerics.
    xb = x.astype(jnp.bfloat16)
    h1 = jnp.dot(xb, w1.astype(jnp.bfloat16).T, preferred_element_type=jnp.float32)
    h3 = jnp.dot(xb, w3.astype(jnp.bfloat16).T, preferred_element_type=jnp.float32)
    g = (h1 * jax.nn.sigmoid(h1)) * h3
    return jnp.dot(g.astype(jnp.bfloat16), w2.astype(jnp.bfloat16).T,
                   preferred_element_type=jnp.float32)


if __name__ == "__main__":
    key = jax.random.PRNGKey(0)
    kx, kp = jax.random.split(key)

    # Small but representative shapes: dim=256, hidden rounds 512->341->384
    # (exercises hidden padding: 384 padded to 512 with th=256 -> nh=2).
    batch, seq, dim = 2, 128, 256
    hidden_dim, multiple_of = 512, 128

    w1, w2, w3, hidden = make_params(kp, dim, hidden_dim, multiple_of)
    x = jax.random.normal(kx, (batch, seq, dim), jnp.float32)

    packed = prepare_ffn_weights(w1, w2, w3, th=256)   # one-time packing
    out = feed_forward_pallas(x, packed, tm=512)
    out = jax.block_until_ready(out)

    ref = reference(x.reshape(-1, dim), w1, w2, w3).reshape(batch, seq, dim)
    assert out.shape == (batch, seq, dim)
    err = jnp.max(jnp.abs(out - ref))
    assert jnp.allclose(out, ref, atol=2e-2, rtol=2e-2), (
        f"mismatch vs reference, max abs err = {err}"
    )

    print("KERNEL_OK")
</pallas_src>

<mosaic_0001>
module attributes {stable_mosaic.version = 11 : i64} {
  func.func @_ffn_kernel(%arg0: i32, %arg1: i32, %arg2: memref<256x256xf32, #tpu.memory_space<vmem>>, %arg3: memref<1x256x512xbf16, #tpu.memory_space<vmem>>, %arg4: memref<1x256x256xbf16, #tpu.memory_space<vmem>>, %arg5: memref<256x256xf32, #tpu.memory_space<vmem>>) attributes {dimension_semantics = [#tpu.dimension_semantics<parallel>, #tpu.dimension_semantics<arbitrary>], iteration_bounds = array<i64: 1, 2>, scalar_prefetch = 0 : i64, scratch_operands = 0 : i64, tpu.core_type = #tpu.core_type<tc>, window_params = [{transform_indices = @transform_0, window_bounds = array<i64: 256, 256>}, {transform_indices = @transform_1, window_bounds = array<i64: 1, 256, 512>}, {transform_indices = @transform_2, window_bounds = array<i64: 1, 256, 256>}, {transform_indices = @transform_3, window_bounds = array<i64: 256, 256>}]} {
    %c0 = arith.constant 0 : index
    %c0_0 = arith.constant 0 : index
    %0 = vector.load %arg2[%c0, %c0_0] : memref<256x256xf32, #tpu.memory_space<vmem>>, vector<256x256xf32>
    %1 = arith.truncf %0 : vector<256x256xf32> to vector<256x256xbf16>
    %c0_1 = arith.constant 0 : index
    %c0_2 = arith.constant 0 : index
    %c0_3 = arith.constant 0 : index
    %2 = vector.load %arg3[%c0_1, %c0_2, %c0_3] : memref<1x256x512xbf16, #tpu.memory_space<vmem>>, vector<1x256x512xbf16>
    %3 = vector.shape_cast %2 : vector<1x256x512xbf16> to vector<256x512xbf16>
    %cst = arith.constant dense<0.000000e+00> : vector<256x512xf32>
    %4 = tpu.matmul %1, %3, %cst {dimension_numbers = #tpu.dot_dimension_numbers<[1], [0], [0], [1], [0, 0, 1, 1], [], []>} : vector<256x256xbf16>, vector<256x512xbf16>, vector<256x512xf32> -> vector<256x512xf32>
    %5 = vector.extract_strided_slice %4 {offsets = [0, 0], sizes = [256, 256], strides = [1, 1]} : vector<256x512xf32> to vector<256x256xf32>
    %6 = vector.extract_strided_slice %4 {offsets = [0, 256], sizes = [256, 256], strides = [1, 1]} : vector<256x512xf32> to vector<256x256xf32>
    %7 = arith.negf %5 : vector<256x256xf32>
    %8 = math.exp %7 : vector<256x256xf32>
    %cst_4 = arith.constant 1.000000e+00 : f32
    %9 = vector.broadcast %cst_4 : f32 to vector<256x256xf32>
    %10 = arith.addf %9, %8 : vector<256x256xf32>
    %11 = arith.divf %9, %10 : vector<256x256xf32>
    %12 = arith.mulf %5, %11 : vector<256x256xf32>
    %13 = arith.mulf %12, %6 : vector<256x256xf32>
    %14 = arith.truncf %13 : vector<256x256xf32> to vector<256x256xbf16>
    %c0_5 = arith.constant 0 : index
    %c0_6 = arith.constant 0 : index
    %c0_7 = arith.constant 0 : index
    %15 = vector.load %arg4[%c0_5, %c0_6, %c0_7] : memref<1x256x256xbf16, #tpu.memory_space<vmem>>, vector<1x256x256xbf16>
    %16 = vector.shape_cast %15 : vector<1x256x256xbf16> to vector<256x256xbf16>
    %cst_8 = arith.constant dense<0.000000e+00> : vector<256x256xf32>
    %17 = tpu.matmul %14, %16, %cst_8 {dimension_numbers = #tpu.dot_dimension_numbers<[1], [0], [0], [1], [0, 0, 1, 1], [], []>} : vector<256x256xbf16>, vector<256x256xbf16>, vector<256x256xf32> -> vector<256x256xf32>
    %c0_i32 = arith.constant 0 : i32
    %18 = arith.cmpi eq, %arg1, %c0_i32 : i32
    %19 = arith.extui %18 : i1 to i32
    %c0_i32_9 = arith.constant 0 : i32
    %20 = arith.cmpi ne, %19, %c0_i32_9 : i32
    scf.if %20 {
      %c0_12 = arith.constant 0 : index
      %c0_13 = arith.constant 0 : index
      %24 = vector.load %arg5[%c0_12, %c0_13] : memref<256x256xf32, #tpu.memory_space<vmem>>, vector<256x256xf32>
      tpu.vector_store %arg5[%c0_12, %c0_13], %17 {strides = array<i32>} : memref<256x256xf32, #tpu.memory_space<vmem>>, vector<256x256xf32>,
    } else {
    }
    %c0_i32_10 = arith.constant 0 : i32
    %21 = arith.cmpi sgt, %arg1, %c0_i32_10 : i32
    %22 = arith.extui %21 : i1 to i32
    %c0_i32_11 = arith.constant 0 : i32
    %23 = arith.cmpi ne, %22, %c0_i32_11 : i32
    scf.if %23 {
      %c0_12 = arith.constant 0 : index
      %c0_13 = arith.constant 0 : index
      %24 = vector.load %arg5[%c0_12, %c0_13] : memref<256x256xf32, #tpu.memory_space<vmem>>, vector<256x256xf32>
      %25 = arith.addf %24, %17 : vector<256x256xf32>
      %c0_14 = arith.constant 0 : index
      %c0_15 = arith.constant 0 : index
      %26 = vector.load %arg5[%c0_14, %c0_15] : memref<256x256xf32, #tpu.memory_space<vmem>>, vector<256x256xf32>
      tpu.vector_store %arg5[%c0_14, %c0_15], %25 {strides = array<i32>} : memref<256x256xf32, #tpu.memory_space<vmem>>, vector<256x256xf32>,
    } else {
    }
    return
  }
  func.func @transform_0(%arg0: i32, %arg1: i32) -> (i32, i32) {
    %c0_i32 = arith.constant 0 : i32
    %c0_i32_0 = arith.constant 0 : i32
    return %arg0, %c0_i32 : i32, i32
  }
  func.func @transform_1(%arg0: i32, %arg1: i32) -> (i32, i32, i32) {
    %c0_i32 = arith.constant 0 : i32
    %c0_i32_0 = arith.constant 0 : i32
    %c0_i32_1 = arith.constant 0 : i32
    return %arg1, %c0_i32, %c0_i32_0 : i32, i32, i32
  }
  func.func @transform_2(%arg0: i32, %arg1: i32) -> (i32, i32, i32) {
    %c0_i32 = arith.constant 0 : i32
    %c0_i32_0 = arith.constant 0 : i32
    %c0_i32_1 = arith.constant 0 : i32
    return %arg1, %c0_i32, %c0_i32_0 : i32, i32, i32
  }
  func.func @transform_3(%arg0: i32, %arg1: i32) -> (i32, i32) {
    %c0_i32 = arith.constant 0 : i32
    %c0_i32_0 = arith.constant 0 : i32
    return %arg0, %c0_i32 : i32, i32
  }
}

</mosaic_0001>

<llo_original>
// kernel: tpu_custom_call.1
$region0: #{tpu_custom_call.1}
  #allocation0 [shape = 'u32[]', space=smem, size = 0x4, offset = 0x4, fixed_abs, tag = 'smem constant byte address 0x4 - core index']
  #allocation1 [shape = 'u32[72,128]{1,0:T(1,128)}', space=vmem, size = 0x9000, scoped, tag = 'internal scratch']
  %s0 = inlined_call_operand.hbm [shape: f32[256,256], index: 0, kind: input, shape index: {}]
  %s1 = inlined_call_operand.hbm [shape: bf16[2,256,512], index: 1, kind: input, shape index: {}]
  %s2 = inlined_call_operand.hbm [shape: bf16[2,256,256], index: 2, kind: input, shape index: {}]
  %s3 = inlined_call_operand.hbm [shape: f32[256,256], index: 3, kind: output, shape index: {}]
  %s4 = sld [smem:[#allocation0]]
  $region65: #{tpu_custom_call.1} parent=0
    _
  %s6 = ssub.s32 1, %s4
  %s7 = scalar_select 0, %s6, %s4
  $region1: #{tpu_custom_call.1} parent=0
    #allocation2 [shape = 'u8[262144]{0}', space=vmem, size = 0x40000, scoped, tag = 'input window, operand 0, single buffered']
    #allocation3 [shape = 's32[2]{0}', space=sflag, size = 0x8, scoped, tag = 'scoped memory for tpu_custom_call.1']
    #allocation4 [shape = 's32[2]{0}', space=sflag, size = 0x8, scoped, tag = 'scoped memory for tpu_custom_call.1']
    #allocation5 [shape = 'u8[524288]{0}', space=vmem, size = 0x80000, scoped, tag = 'input window, operand 1']
    #allocation6 [shape = 's32[2]{0}', space=sflag, size = 0x8, scoped, tag = 'scoped memory for tpu_custom_call.1']
    #allocation7 [shape = 'u8[262144]{0}', space=vmem, size = 0x40000, scoped, tag = 'input window, operand 2']
    #allocation8 [shape = 'u8[262144]{0}', space=vmem, size = 0x40000, scoped, tag = 'output window, operand 0, single buffered']
    %8 = vsyncpa [#allocation3], 0
    %9 = vsyncpa [#allocation6], 0
    %s10 = scalar_lea.sflag [#allocation6], 1
    %11 = vsyncpa %s10, 0
    %12 = vsyncpa [#allocation4], 0
    loop: start=0, step=1, limit=4
    $region2: #{tpu_custom_call.1} parent=1 // loop_pre_header
      _
    $region3: #{tpu_custom_call.1} parent=1 // loop_header
      %s14 = sphi 0, %s18
      %p15 = scmp.ge.s32.totalorder %s14, 4
      %s21 = sphi 0, %s33
      %s22 = sphi 0, %s29
      %s23 = sphi 0, %s21
      %s24 = sphi 0, %s22
      %s25 = sphi 0, %s23
      %s26 = sphi 0, %s24
      %s36 = sphi 0, %s38
      %s39 = sphi 0, %s36
      %s40 = sphi 0, %s39
      %s56 = sphi 0, %s40
      %s62 = sphi 0, %s64
      %s65 = sphi 0, %s62
      %s66 = sphi 0, %s65
      %s82 = sphi 0, %s66
      %s88 = sphi 0, %s90
      %s91 = sphi 0, %s88
      %s92 = sphi 0, %s91
      %s108 = sphi 0, %s92
      %s114 = sphi 0, %s116
      %s117 = sphi 0, %s114
      %s118 = sphi 0, %s117
      %s134 = sphi 0, %s118
    $region4: #{tpu_custom_call.1} parent=1 // loop_header_branch
      %17 = sbr.rel (%p15) target = $region8
    $region5: #{tpu_custom_call.1} parent=1 // loop_body
      %s19 = ssub.s32 %s14, 1
      %s20 = ssub.s32 %s14, 2
      %s27 = sadd.s32 1, %s22
      %p28 = scmp.ge.s32.totalorder %s27, 2
      %s29 = scalar_select %p28, 0, %s27
      %s30 = sadd.s32 1, %s21
      %s31 = scalar_select %p28, %s30, %s21
      %p32 = scmp.ge.s32.totalorder %s31, 1
      %s33 = scalar_select %p32, 0, %s31
      %s34 = ssub.s32 %s21, %s33
      %p35 = scmp.eq.s32.totalorder %s34, 0
      %s37 = sadd.s32 %s36, 1
      %s38 = scalar_select %p35, %s36, %s37
      %p41 = pneg %p35
      %p42 = scmp.eq.s32.totalorder %s14, 1
      %p43 = por %p41, %p42
      %p44 = scmp.ne.s32.totalorder %s36, %s39
      %p45 = scmp.eq.s32.totalorder %s14, 0
      %p46 = por %p44, %p45
      %p47 = scmp.ne.s32.totalorder %s36, %s39
      %p48 = scmp.eq.s32.totalorder %s19, 1
      %p49 = por %p47, %p48
      %p50 = scmp.ne.s32.totalorder %s39, %s40
      %p51 = scmp.eq.s32.totalorder %s19, 0
      %p52 = por %p50, %p51
      %p53 = scmp.ne.s32.totalorder %s39, %s40
      %p54 = scmp.eq.s32.totalorder %s20, 1
      %p55 = por %p53, %p54
      %p57 = scmp.ne.s32.totalorder %s40, %s56
      %p58 = scmp.eq.s32.totalorder %s20, 0
      %p59 = por %p57, %p58
      %s60 = ssub.s32 %s22, %s29
      %p61 = scmp.eq.s32.totalorder %s60, 0
      %s63 = sadd.s32 %s62, 1
      %s64 = scalar_select %p61, %s62, %s63
      %p67 = pneg %p61
      %p68 = scmp.eq.s32.totalorder %s14, 1
      %p69 = por %p67, %p68
      %p70 = scmp.ne.s32.totalorder %s62, %s65
      %p71 = scmp.eq.s32.totalorder %s14, 0
      %p72 = por %p70, %p71
      %p73 = scmp.ne.s32.totalorder %s62, %s65
      %p74 = scmp.eq.s32.totalorder %s19, 1
      %p75 = por %p73, %p74
      %p76 = scmp.ne.s32.totalorder %s65, %s66
      %p77 = scmp.eq.s32.totalorder %s19, 0
      %p78 = por %p76, %p77
      %p79 = scmp.ne.s32.totalorder %s65, %s66
      %p80 = scmp.eq.s32.totalorder %s20, 1
      %p81 = por %p79, %p80
      %p83 = scmp.ne.s32.totalorder %s66, %s82
      %p84 = scmp.eq.s32.totalorder %s20, 0
      %p85 = por %p83, %p84
      %s86 = ssub.s32 %s22, %s29
      %p87 = scmp.eq.s32.totalorder %s86, 0
      %s89 = sadd.s32 %s88, 1
      %s90 = scalar_select %p87, %s88, %s89
      %p93 = pneg %p87
      %p94 = scmp.eq.s32.totalorder %s14, 1
      %p95 = por %p93, %p94
      %p96 = scmp.ne.s32.totalorder %s88, %s91
      %p97 = scmp.eq.s32.totalorder %s14, 0
      %p98 = por %p96, %p97
      %p99 = scmp.ne.s32.totalorder %s88, %s91
      %p100 = scmp.eq.s32.totalorder %s19, 1
      %p101 = por %p99, %p100
      %p102 = scmp.ne.s32.totalorder %s91, %s92
      %p103 = scmp.eq.s32.totalorder %s19, 0
      %p104 = por %p102, %p103
      %p105 = scmp.ne.s32.totalorder %s91, %s92
      %p106 = scmp.eq.s32.totalorder %s20, 1
      %p107 = por %p105, %p106
      %p109 = scmp.ne.s32.totalorder %s92, %s108
      %p110 = scmp.eq.s32.totalorder %s20, 0
      %p111 = por %p109, %p110
      %s112 = ssub.s32 %s21, %s33
      %p113 = scmp.eq.s32.totalorder %s112, 0
      %s115 = sadd.s32 %s114, 1
      %s116 = scalar_select %p113, %s114, %s115
      %p119 = pneg %p113
      %p120 = scmp.eq.s32.totalorder %s14, 1
      %p121 = por %p119, %p120
      %p122 = scmp.ne.s32.totalorder %s114, %s117
      %p123 = scmp.eq.s32.totalorder %s14, 0
      %p124 = por %p122, %p123
      %p125 = scmp.ne.s32.totalorder %s114, %s117
      %p126 = scmp.eq.s32.totalorder %s19, 1
      %p127 = por %p125, %p126
      %p128 = scmp.ne.s32.totalorder %s117, %s118
      %p129 = scmp.eq.s32.totalorder %s19, 0
      %p130 = por %p128, %p129
      %p131 = scmp.ne.s32.totalorder %s117, %s118
      %p132 = scmp.eq.s32.totalorder %s20, 1
      %p133 = por %p131, %p132
      %p135 = scmp.ne.s32.totalorder %s118, %s134
      %p136 = scmp.eq.s32.totalorder %s20, 0
      %p137 = por %p135, %p136
      %p138 = scmp.le.s32.totalorder 1, %s14
      %p139 = scmp.lt.s32.totalorder %s14, 3
      %p140 = pnand %p138, %p139
      %p141 = pneg %p140
      // Predicated region
      $region9: #{tpu_custom_call.1} parent=5 // pred_check
        _
      $region10: #{tpu_custom_call.1} parent=5 // pred_check_branch
        %143 = sbr.rel (%p140) target = $region12
      $region11: #{tpu_custom_call.1} parent=5 // pred_region
        %s144 = ssub.s32 %s14, 1
        // Predicated region
        $region13: #{tpu_custom_call.1} parent=11 // pred_check
          %p145 = pneg %p52
        $region14: #{tpu_custom_call.1} parent=11 // pred_check_branch
          %147 = sbr.rel (%p145) target = $region16
        $region15: #{tpu_custom_call.1} parent=11 // pred_region
          %s148 = smul.u32 32, %s23
          %150 = vsyncadd [#allocation3], 0
          %s151 = smul.addr %s148, 2
          %s152 = smul.addr %s151, 8
          %s153 = scalar_lea.hbm %s0, %s152
          %s154 = sshll.u32 %s153, 4
          %s155 = int_to_ptr.hbm [resolvable:$true] %s154
          %s156 = sshll.u32 [#allocation2], 4
          %s157 = int_to_ptr.vmem [resolvable:$true] %s156
          %162 = dma.hbm_to_vmem [thread:$0]  %s155, 8192, %s157, [#allocation3], 256, 256, 16
        $region16: #{tpu_custom_call.1} parent=11 // pred_fallthru
          _
      $region12: #{tpu_custom_call.1} parent=5 // pred_fallthru
        _
      %p163 = scmp.lt.s32.totalorder %s14, 2
      // Predicated region
      $region17: #{tpu_custom_call.1} parent=5 // pred_check
        %p164 = pneg %p163
      $region18: #{tpu_custom_call.1} parent=5 // pred_check_branch
        %166 = sbr.rel (%p164) target = $region20
      $region19: #{tpu_custom_call.1} parent=5 // pred_region
        // Predicated region
        $region21: #{tpu_custom_call.1} parent=19 // pred_check
          %p167 = pneg %p72
        $region22: #{tpu_custom_call.1} parent=19 // pred_check_branch
          %169 = sbr.rel (%p167) target = $region24
        $region23: #{tpu_custom_call.1} parent=19 // pred_region
          %s170 = sand.u32 %s14, 1
          %s171 = scalar_lea.sflag [#allocation6], %s170
          %s172 = sand.u32 %s62, 1
          %s173 = smul.addr %s172, 512
          %s174 = scalar_lea.vmem [#allocation5], %s173
          %176 = vsyncadd %s171, 0
          %s177 = smul.addr %s22, 128
          %s178 = smul.addr %s177, 4
          %s179 = scalar_lea.hbm %s1, %s178
          %s180 = sshll.u32 %s179, 4
          %s181 = int_to_ptr.hbm [resolvable:$true] %s180
          %s182 = sshll.u32 %s174, 4
          %s183 = int_to_ptr.vmem [resolvable:$true] %s182
          %188 = dma.hbm_to_vmem [thread:$0]  %s181, 8192, %s183, %s171, 256, 256, 16
        $region24: #{tpu_custom_call.1} parent=19 // pred_fallthru
          _
        // Predicated region
        $region25: #{tpu_custom_call.1} parent=19 // pred_check
          %p189 = pneg %p98
        $region26: #{tpu_custom_call.1} parent=19 // pred_check_branch
          %191 = sbr.rel (%p189) target = $region28
        $region27: #{tpu_custom_call.1} parent=19 // pred_region
          %s192 = sand.u32 %s14, 1
          %s193 = scalar_lea.sflag [#allocation6], %s192
          %s194 = sand.u32 %s88, 1
          %s195 = smul.addr %s194, 256
          %s196 = scalar_lea.vmem [#allocation7], %s195
          %198 = vsyncadd %s193, 0
          %s199 = smul.addr %s22, 64
          %s200 = smul.addr %s199, 4
          %s201 = scalar_lea.hbm %s2, %s200
          %s202 = sshll.u32 %s201, 4
          %s203 = int_to_ptr.hbm [resolvable:$true] %s202
          %s204 = sshll.u32 %s196, 4
          %s205 = int_to_ptr.vmem [resolvable:$true] %s204
          %210 = dma.hbm_to_vmem [thread:$0]  %s203, 4096, %s205, %s193, 128, 128, 8
        $region28: #{tpu_custom_call.1} parent=19 // pred_fallthru
          _
      $region20: #{tpu_custom_call.1} parent=5 // pred_fallthru
        _
      %p211 = scmp.le.s32.totalorder 1, %s14
      %p212 = scmp.lt.s32.totalorder %s14, 3
      %p213 = pnand %p211, %p212
      %p214 = pneg %p213
      // Predicated region
      $region29: #{tpu_custom_call.1} parent=5 // pred_check
        _
      $region30: #{tpu_custom_call.1} parent=5 // pred_check_branch
        %216 = sbr.rel (%p213) target = $region32
      $region31: #{tpu_custom_call.1} parent=5 // pred_region
        %s217 = ssub.s32 %s14, 1
        // Predicated region
        $region33: #{tpu_custom_call.1} parent=31 // pred_check
          %p218 = pneg %p52
        $region34: #{tpu_custom_call.1} parent=31 // pred_check_branch
          %220 = sbr.rel (%p218) target = $region36
        $region35: #{tpu_custom_call.1} parent=31 // pred_region
          %222 = dma.done [#allocation3], 8192
        $region36: #{tpu_custom_call.1} parent=31 // pred_fallthru
          _
        %s223 = sand.u32 %s19, 1
        %s224 = scalar_lea.sflag [#allocation6], %s223
        %s225 = sand.u32 %s65, 1
        %s226 = smul.addr %s225, 512
        %s227 = scalar_lea.vmem [#allocation5], %s226
        // Predicated region
        $region37: #{tpu_custom_call.1} parent=31 // pred_check
          %p228 = pneg %p78
        $region38: #{tpu_custom_call.1} parent=31 // pred_check_branch
          %230 = sbr.rel (%p228) target = $region40
        $region39: #{tpu_custom_call.1} parent=31 // pred_region
          %232 = dma.done %s224, 8192
        $region40: #{tpu_custom_call.1} parent=31 // pred_fallthru
          _
        %s233 = sand.u32 %s19, 1
        %s234 = scalar_lea.sflag [#allocation6], %s233
        %s235 = sand.u32 %s91, 1
        %s236 = smul.addr %s235, 256
        %s237 = scalar_lea.vmem [#allocation7], %s236
        // Predicated region
        $region41: #{tpu_custom_call.1} parent=31 // pred_check
          %p238 = pneg %p104
        $region42: #{tpu_custom_call.1} parent=31 // pred_check_branch
          %240 = sbr.rel (%p238) target = $region44
        $region43: #{tpu_custom_call.1} parent=31 // pred_region
          %242 = dma.done %s234, 4096
        $region44: #{tpu_custom_call.1} parent=31 // pred_fallthru
          _
        %p243 = pneg %p52
        %p244 = pneg %p49
        %s245 = sand.u32 %s19, 1
        %s246 = scalar_lea.sflag [#allocation6], %s245
        %s247 = sand.u32 %s65, 1
        %s248 = smul.addr %s247, 512
        %s249 = scalar_lea.vmem [#allocation5], %s248
        %p250 = pneg %p78
        %p251 = pneg %p75
        %s252 = sand.u32 %s19, 1
        %s253 = scalar_lea.sflag [#allocation6], %s252
        %s254 = sand.u32 %s91, 1
        %s255 = smul.addr %s254, 256
        %s256 = scalar_lea.vmem [#allocation7], %s255
        %p257 = pneg %p104
        %p258 = pneg %p101
        %p259 = pneg %p130
        %p260 = pneg %p127
        %s261 = smul.u32 32, %s23
        %s262 = smul.u32 32, %s23
        %v263 = vld [vmem:[#allocation2] sm:$0xff]
        %v264 = vld [vmem:[#allocation2 + $0x8] sm:$0xff]
        %v265 = vld [vmem:[#allocation2 + $0x10] sm:$0xff]
        %v266 = vld [vmem:[#allocation2 + $0x18] sm:$0xff]
        %v267 = vld [vmem:[#allocation2 + $0x20] sm:$0xff]
        %v268 = vld [vmem:[#allocation2 + $0x28] sm:$0xff]
        %v269 = vld [vmem:[#allocation2 + $0x30] sm:$0xff]
        %v270 = vld [vmem:[#allocation2 + $0x38] sm:$0xff]
        %v271 = vld [vmem:[#allocation2 + $0x40] sm:$0xff]
        %v272 = vld [vmem:[#allocation2 + $0x48] sm:$0xff]
        %v273 = vld [vmem:[#allocation2 + $0x50] sm:$0xff]
        %v274 = vld [vmem:[#allocation2 + $0x58] sm:$0xff]
        %v275 = vld [vmem:[#allocation2 + $0x60] sm:$0xff]
        %v276 = vld [vmem:[#allocation2 + $0x68] sm:$0xff]
        %v277 = vld [vmem:[#allocation2 + $0x70] sm:$0xff]
        %v278 = vld [vmem:[#allocation2 + $0x78] sm:$0xff]
        %v279 = vld [vmem:[#allocation2 + $0x80] sm:$0xff]
        %v280 = vld [vmem:[#allocation2 + $0x88] sm:$0xff]
        %v281 = vld [vmem:[#allocation2 + $0x90] sm:$0xff]
        %v282 = vld [vmem:[#allocation2 + $0x98] sm:$0xff]
        %v283 = vld [vmem:[#allocation2 + $0xa0] sm:$0xff]
        %v284 = vld [vmem:[#allocation2 + $0xa8] sm:$0xff]
        %v285 = vld [vmem:[#allocation2 + $0xb0] sm:$0xff]
        %v286 = vld [vmem:[#allocation2 + $0xb8] sm:$0xff]
        %v287 = vld [vmem:[#allocation2 + $0xc0] sm:$0xff]
        %v288 = vld [vmem:[#allocation2 + $0xc8] sm:$0xff]
        %v289 = vld [vmem:[#allocation2 + $0xd0] sm:$0xff]
        %v290 = vld [vmem:[#allocation2 + $0xd8] sm:$0xff]
        %v291 = vld [vmem:[#allocation2 + $0xe0] sm:$0xff]
        %v292 = vld [vmem:[#allocation2 + $0xe8] sm:$0xff]
        %v293 = vld [vmem:[#allocation2 + $0xf0] sm:$0xff]
        %v294 = vld [vmem:[#allocation2 + $0xf8] sm:$0xff]
        %v295 = vld [vmem:[#allocation2 + $0x100] sm:$0xff]
        %v296 = vld [vmem:[#allocation2 + $0x108] sm:$0xff]
        %v297 = vld [vmem:[#allocation2 + $0x110] sm:$0xff]
        %v298 = vld [vmem:[#allocation2 + $0x118] sm:$0xff]
        %v299 = vld [vmem:[#allocation2 + $0x120] sm:$0xff]
        %v300 = vld [vmem:[#allocation2 + $0x128] sm:$0xff]
        %v301 = vld [vmem:[#allocation2 + $0x130] sm:$0xff]
        %v302 = vld [vmem:[#allocation2 + $0x138] sm:$0xff]
        %v303 = vld [vmem:[#allocation2 + $0x140] sm:$0xff]
        %v304 = vld [vmem:[#allocation2 + $0x148] sm:$0xff]
        %v305 = vld [vmem:[#allocation2 + $0x150] sm:$0xff]
        %v306 = vld [vmem:[#allocation2 + $0x158] sm:$0xff]
        %v307 = vld [vmem:[#allocation2 + $0x160] sm:$0xff]
        %v308 = vld [vmem:[#allocation2 + $0x168] sm:$0xff]
        %v309 = vld [vmem:[#allocation2 + $0x170] sm:$0xff]
        %v310 = vld [vmem:[#allocation2 + $0x178] sm:$0xff]
        %v311 = vld [vmem:[#allocation2 + $0x180] sm:$0xff]
        %v312 = vld [vmem:[#allocation2 + $0x188] sm:$0xff]
        %v313 = vld [vmem:[#allocation2 + $0x190] sm:$0xff]
        %v314 = vld [vmem:[#allocation2 + $0x198] sm:$0xff]
        %v315 = vld [vmem:[#allocation2 + $0x1a0] sm:$0xff]
        %v316 = vld [vmem:[#allocation2 + $0x1a8] sm:$0xff]
        %v317 = vld [vmem:[#allocation2 + $0x1b0] sm:$0xff]
        %v318 = vld [vmem:[#allocation2 + $0x1b8] sm:$0xff]
        %v319 = vld [vmem:[#allocation2 + $0x1c0] sm:$0xff]
        %v320 = vld [vmem:[#allocation2 + $0x1c8] sm:$0xff]
        %v321 = vld [vmem:[#allocation2 + $0x1d0] sm:$0xff]
        %v322 = vld [vmem:[#allocation2 + $0x1d8] sm:$0xff]
        %v323 = vld [vmem:[#allocation2 + $0x1e0] sm:$0xff]
        %v324 = vld [vmem:[#allocation2 + $0x1e8] sm:$0xff]
        %v325 = vld [vmem:[#allocation2 + $0x1f0] sm:$0xff]
        %v326 = vld [vmem:[#allocation2 + $0x1f8] sm:$0xff]
        %v327 = vpack.c.bf16 %v265, %v263
        %v328 = vpack.c.bf16 %v266, %v264
        %v329 = vpack.c.bf16 %v269, %v267
        %v330 = vpack.c.bf16 %v270, %v268
        %v331 = vpack.c.bf16 %v273, %v271
        %v332 = vpack.c.bf16 %v274, %v272
        %v333 = vpack.c.bf16 %v277, %v275
        %v334 = vpack.c.bf16 %v278, %v276
        %v335 = vpack.c.bf16 %v281, %v279
        %v336 = vpack.c.bf16 %v282, %v280
        %v337 = vpack.c.bf16 %v285, %v283
        %v338 = vpack.c.bf16 %v286, %v284
        %v339 = vpack.c.bf16 %v289, %v287
        %v340 = vpack.c.bf16 %v290, %v288
        %v341 = vpack.c.bf16 %v293, %v291
        %v342 = vpack.c.bf16 %v294, %v292
        %v343 = vpack.c.bf16 %v297, %v295
        %v344 = vpack.c.bf16 %v298, %v296
        %v345 = vpack.c.bf16 %v301, %v299
        %v346 = vpack.c.bf16 %v302, %v300
        %v347 = vpack.c.bf16 %v305, %v303
        %v348 = vpack.c.bf16 %v306, %v304
        %v349 = vpack.c.bf16 %v309, %v307
        %v350 = vpack.c.bf16 %v310, %v308
        %v351 = vpack.c.bf16 %v313, %v311
        %v352 = vpack.c.bf16 %v314, %v312
        %v353 = vpack.c.bf16 %v317, %v315
        %v354 = vpack.c.bf16 %v318, %v316
        %v355 = vpack.c.bf16 %v321, %v319
        %v356 = vpack.c.bf16 %v322, %v320
        %v357 = vpack.c.bf16 %v325, %v323
        %v358 = vpack.c.bf16 %v326, %v324
        %v359 = vld [vmem:[%s227] sm:$0xff]
        %v360 = vld [vmem:[%s227 + $0x8] sm:$0xff]
        %v361 = vld [vmem:[%s227 + $0x10] sm:$0xff]
        %v362 = vld [vmem:[%s227 + $0x18] sm:$0xff]
        %v363 = vld [vmem:[%s227 + $0x20] sm:$0xff]
        %v364 = vld [vmem:[%s227 + $0x28] sm:$0xff]
        %v365 = vld [vmem:[%s227 + $0x30] sm:$0xff]
        %v366 = vld [vmem:[%s227 + $0x38] sm:$0xff]
        %v367 = vld [vmem:[%s227 + $0x40] sm:$0xff]
        %v368 = vld [vmem:[%s227 + $0x48] sm:$0xff]
        %v369 = vld [vmem:[%s227 + $0x50] sm:$0xff]
        %v370 = vld [vmem:[%s227 + $0x58] sm:$0xff]
        %v371 = vld [vmem:[%s227 + $0x60] sm:$0xff]
        %v372 = vld [vmem:[%s227 + $0x68] sm:$0xff]
        %v373 = vld [vmem:[%s227 + $0x70] sm:$0xff]
        %v374 = vld [vmem:[%s227 + $0x78] sm:$0xff]
        %v375 = vld [vmem:[%s227 + $0x80] sm:$0xff]
        %v376 = vld [vmem:[%s227 + $0x88] sm:$0xff]
        %v377 = vld [vmem:[%s227 + $0x90] sm:$0xff]
        %v378 = vld [vmem:[%s227 + $0x98] sm:$0xff]
        %v379 = vld [vmem:[%s227 + $0xa0] sm:$0xff]
        %v380 = vld [vmem:[%s227 + $0xa8] sm:$0xff]
        %v381 = vld [vmem:[%s227 + $0xb0] sm:$0xff]
        %v382 = vld [vmem:[%s227 + $0xb8] sm:$0xff]
        %v383 = vld [vmem:[%s227 + $0xc0] sm:$0xff]
        %v384 = vld [vmem:[%s227 + $0xc8] sm:$0xff]
        %v385 = vld [vmem:[%s227 + $0xd0] sm:$0xff]
        %v386 = vld [vmem:[%s227 + $0xd8] sm:$0xff]
        %v387 = vld [vmem:[%s227 + $0xe0] sm:$0xff]
        %v388 = vld [vmem:[%s227 + $0xe8] sm:$0xff]
        %v389 = vld [vmem:[%s227 + $0xf0] sm:$0xff]
        %v390 = vld [vmem:[%s227 + $0xf8] sm:$0xff]
        %v391 = vld [vmem:[%s227 + $0x100] sm:$0xff]
        %v392 = vld [vmem:[%s227 + $0x108] sm:$0xff]
        %v393 = vld [vmem:[%s227 + $0x110] sm:$0xff]
        %v394 = vld [vmem:[%s227 + $0x118] sm:$0xff]
        %v395 = vld [vmem:[%s227 + $0x120] sm:$0xff]
        %v396 = vld [vmem:[%s227 + $0x128] sm:$0xff]
        %v397 = vld [vmem:[%s227 + $0x130] sm:$0xff]
        %v398 = vld [vmem:[%s227 + $0x138] sm:$0xff]
        %v399 = vld [vmem:[%s227 + $0x140] sm:$0xff]
        %v400 = vld [vmem:[%s227 + $0x148] sm:$0xff]
        %v401 = vld [vmem:[%s227 + $0x150] sm:$0xff]
        %v402 = vld [vmem:[%s227 + $0x158] sm:$0xff]
        %v403 = vld [vmem:[%s227 + $0x160] sm:$0xff]
        %v404 = vld [vmem:[%s227 + $0x168] sm:$0xff]
        %v405 = vld [vmem:[%s227 + $0x170] sm:$0xff]
        %v406 = vld [vmem:[%s227 + $0x178] sm:$0xff]
        %v407 = vld [vmem:[%s227 + $0x180] sm:$0xff]
        %v408 = vld [vmem:[%s227 + $0x188] sm:$0xff]
        %v409 = vld [vmem:[%s227 + $0x190] sm:$0xff]
        %v410 = vld [vmem:[%s227 + $0x198] sm:$0xff]
        %v411 = vld [vmem:[%s227 + $0x1a0] sm:$0xff]
        %v412 = vld [vmem:[%s227 + $0x1a8] sm:$0xff]
        %v413 = vld [vmem:[%s227 + $0x1b0] sm:$0xff]
        %v414 = vld [vmem:[%s227 + $0x1b8] sm:$0xff]
        %v415 = vld [vmem:[%s227 + $0x1c0] sm:$0xff]
        %v416 = vld [vmem:[%s227 + $0x1c8] sm:$0xff]
        %v417 = vld [vmem:[%s227 + $0x1d0] sm:$0xff]
        %v418 = vld [vmem:[%s227 + $0x1d8] sm:$0xff]
        %v419 = vld [vmem:[%s227 + $0x1e0] sm:$0xff]
        %v420 = vld [vmem:[%s227 + $0x1e8] sm:$0xff]
        %v421 = vld [vmem:[%s227 + $0x1f0] sm:$0xff]
        %v422 = vld [vmem:[%s227 + $0x1f8] sm:$0xff]
        %v487 = vunpack.c.l.b16 %v359
        %v488 = vunpack.c.h.b16 %v359
        %v489 = vunpack.c.l.b16 %v360
        %v490 = vunpack.c.h.b16 %v360
        %v491 = vunpack.c.l.b16 %v361
        %v492 = vunpack.c.h.b16 %v361
        %v493 = vunpack.c.l.b16 %v362
        %v494 = vunpack.c.h.b16 %v362
        %v495 = vunpack.c.l.b16 %v363
        %v496 = vunpack.c.h.b16 %v363
        %v497 = vunpack.c.l.b16 %v364
        %v498 = vunpack.c.h.b16 %v364
        %v499 = vunpack.c.l.b16 %v365
        %v500 = vunpack.c.h.b16 %v365
        %v501 = vunpack.c.l.b16 %v366
        %v502 = vunpack.c.h.b16 %v366
        %v503 = vunpack.c.l.b16 %v367
        %v504 = vunpack.c.h.b16 %v367
        %v505 = vunpack.c.l.b16 %v368
        %v506 = vunpack.c.h.b16 %v368
        %v507 = vunpack.c.l.b16 %v369
        %v508 = vunpack.c.h.b16 %v369
        %v509 = vunpack.c.l.b16 %v370
        %v510 = vunpack.c.h.b16 %v370
        %v511 = vunpack.c.l.b16 %v371
        %v512 = vunpack.c.h.b16 %v371
        %v513 = vunpack.c.l.b16 %v372
        %v514 = vunpack.c.h.b16 %v372
        %v515 = vunpack.c.l.b16 %v373
        %v516 = vunpack.c.h.b16 %v373
        %v517 = vunpack.c.l.b16 %v374
        %v518 = vunpack.c.h.b16 %v374
        %v519 = vunpack.c.l.b16 %v375
        %v520 = vunpack.c.h.b16 %v375
        %v521 = vunpack.c.l.b16 %v376
        %v522 = vunpack.c.h.b16 %v376
        %v523 = vunpack.c.l.b16 %v377
        %v524 = vunpack.c.h.b16 %v377
        %v525 = vunpack.c.l.b16 %v378
        %v526 = vunpack.c.h.b16 %v378
        %v527 = vunpack.c.l.b16 %v379
        %v528 = vunpack.c.h.b16 %v379
        %v529 = vunpack.c.l.b16 %v380
        %v530 = vunpack.c.h.b16 %v380
        %v531 = vunpack.c.l.b16 %v381
        %v532 = vunpack.c.h.b16 %v381
        %v533 = vunpack.c.l.b16 %v382
        %v534 = vunpack.c.h.b16 %v382
        %v535 = vunpack.c.l.b16 %v383
        %v536 = vunpack.c.h.b16 %v383
        %v537 = vunpack.c.l.b16 %v384
        %v538 = vunpack.c.h.b16 %v384
        %v539 = vunpack.c.l.b16 %v385
        %v540 = vunpack.c.h.b16 %v385
        %v541 = vunpack.c.l.b16 %v386
        %v542 = vunpack.c.h.b16 %v386
        %v543 = vunpack.c.l.b16 %v387
        %v544 = vunpack.c.h.b16 %v387
        %v545 = vunpack.c.l.b16 %v388
        %v546 = vunpack.c.h.b16 %v388
        %v547 = vunpack.c.l.b16 %v389
        %v548 = vunpack.c.h.b16 %v389
        %v549 = vunpack.c.l.b16 %v390
        %v550 = vunpack.c.h.b16 %v390
        %v551 = vunpack.c.l.b16 %v391
        %v552 = vunpack.c.h.b16 %v391
        %v553 = vunpack.c.l.b16 %v392
        %v554 = vunpack.c.h.b16 %v392
        %v555 = vunpack.c.l.b16 %v393
        %v556 = vunpack.c.h.b16 %v393
        %v557 = vunpack.c.l.b16 %v394
        %v558 = vunpack.c.h.b16 %v394
        %v559 = vunpack.c.l.b16 %v395
        %v560 = vunpack.c.h.b16 %v395
        %v561 = vunpack.c.l.b16 %v396
        %v562 = vunpack.c.h.b16 %v396
        %v563 = vunpack.c.l.b16 %v397
        %v564 = vunpack.c.h.b16 %v397
        %v565 = vunpack.c.l.b16 %v398
        %v566 = vunpack.c.h.b16 %v398
        %v567 = vunpack.c.l.b16 %v399
        %v568 = vunpack.c.h.b16 %v399
        %v569 = vunpack.c.l.b16 %v400
        %v570 = vunpack.c.h.b16 %v400
        %v571 = vunpack.c.l.b16 %v401
        %v572 = vunpack.c.h.b16 %v401
        %v573 = vunpack.c.l.b16 %v402
        %v574 = vunpack.c.h.b16 %v402
        %v575 = vunpack.c.l.b16 %v403
        %v576 = vunpack.c.h.b16 %v403
        %v577 = vunpack.c.l.b16 %v404
        %v578 = vunpack.c.h.b16 %v404
        %v579 = vunpack.c.l.b16 %v405
        %v580 = vunpack.c.h.b16 %v405
        %v581 = vunpack.c.l.b16 %v406
        %v582 = vunpack.c.h.b16 %v406
        %v583 = vunpack.c.l.b16 %v407
        %v584 = vunpack.c.h.b16 %v407
        %v585 = vunpack.c.l.b16 %v408
        %v586 = vunpack.c.h.b16 %v408
        %v587 = vunpack.c.l.b16 %v409
        %v588 = vunpack.c.h.b16 %v409
        %v589 = vunpack.c.l.b16 %v410
        %v590 = vunpack.c.h.b16 %v410
        %v591 = vunpack.c.l.b16 %v411
        %v592 = vunpack.c.h.b16 %v411
        %v593 = vunpack.c.l.b16 %v412
        %v594 = vunpack.c.h.b16 %v412
        %v595 = vunpack.c.l.b16 %v413
        %v596 = vunpack.c.h.b16 %v413
        %v597 = vunpack.c.l.b16 %v414
        %v598 = vunpack.c.h.b16 %v414
        %v599 = vunpack.c.l.b16 %v415
        %v600 = vunpack.c.h.b16 %v415
        %v601 = vunpack.c.l.b16 %v416
        %v602 = vunpack.c.h.b16 %v416
        %v603 = vunpack.c.l.b16 %v417
        %v604 = vunpack.c.h.b16 %v417
        %v605 = vunpack.c.l.b16 %v418
        %v606 = vunpack.c.h.b16 %v418
        %v607 = vunpack.c.l.b16 %v419
        %v608 = vunpack.c.h.b16 %v419
        %v609 = vunpack.c.l.b16 %v420
        %v610 = vunpack.c.h.b16 %v420
        %v611 = vunpack.c.l.b16 %v421
        %v612 = vunpack.c.h.b16 %v421
        %v613 = vunpack.c.l.b16 %v422
        %v614 = vunpack.c.h.b16 %v422
        %v615 = vpack.c.b16 %v491, %v487
        %v616 = vpack.c.b16 %v492, %v488
        %v617 = vpack.c.b16 %v493, %v489
        %v618 = vpack.c.b16 %v494, %v490
        %v619 = vpack.c.b16 %v499, %v495
        %v620 = vpack.c.b16 %v500, %v496
        %v621 = vpack.c.b16 %v501, %v497
        %v622 = vpack.c.b16 %v502, %v498
        %v623 = vpack.c.b16 %v507, %v503
        %v624 = vpack.c.b16 %v508, %v504
        %v625 = vpack.c.b16 %v509, %v505
        %v626 = vpack.c.b16 %v510, %v506
        %v627 = vpack.c.b16 %v515, %v511
        %v628 = vpack.c.b16 %v516, %v512
        %v629 = vpack.c.b16 %v517, %v513
        %v630 = vpack.c.b16 %v518, %v514
        %v631 = vpack.c.b16 %v523, %v519
        %v632 = vpack.c.b16 %v524, %v520
        %v633 = vpack.c.b16 %v525, %v521
        %v634 = vpack.c.b16 %v526, %v522
        %v635 = vpack.c.b16 %v531, %v527
        %v636 = vpack.c.b16 %v532, %v528
        %v637 = vpack.c.b16 %v533, %v529
        %v638 = vpack.c.b16 %v534, %v530
        %v639 = vpack.c.b16 %v539, %v535
        %v640 = vpack.c.b16 %v540, %v536
        %v641 = vpack.c.b16 %v541, %v537
        %v642 = vpack.c.b16 %v542, %v538
        %v643 = vpack.c.b16 %v547, %v543
        %v644 = vpack.c.b16 %v548, %v544
        %v645 = vpack.c.b16 %v549, %v545
        %v646 = vpack.c.b16 %v550, %v546
        %v647 = vpack.c.b16 %v555, %v551
        %v648 = vpack.c.b16 %v556, %v552
        %v649 = vpack.c.b16 %v557, %v553
        %v650 = vpack.c.b16 %v558, %v554
        %v651 = vpack.c.b16 %v563, %v559
        %v652 = vpack.c.b16 %v564, %v560
        %v653 = vpack.c.b16 %v565, %v561
        %v654 = vpack.c.b16 %v566, %v562
        %v655 = vpack.c.b16 %v571, %v567
        %v656 = vpack.c.b16 %v572, %v568
        %v657 = vpack.c.b16 %v573, %v569
        %v658 = vpack.c.b16 %v574, %v570
        %v659 = vpack.c.b16 %v579, %v575
        %v660 = vpack.c.b16 %v580, %v576
        %v661 = vpack.c.b16 %v581, %v577
        %v662 = vpack.c.b16 %v582, %v578
        %v663 = vpack.c.b16 %v587, %v583
        %v664 = vpack.c.b16 %v588, %v584
        %v665 = vpack.c.b16 %v589, %v585
        %v666 = vpack.c.b16 %v590, %v586
        %v667 = vpack.c.b16 %v595, %v591
        %v668 = vpack.c.b16 %v596, %v592
        %v669 = vpack.c.b16 %v597, %v593
        %v670 = vpack.c.b16 %v598, %v594
        %v671 = vpack.c.b16 %v603, %v599
        %v672 = vpack.c.b16 %v604, %v600
        %v673 = vpack.c.b16 %v605, %v601
        %v674 = vpack.c.b16 %v606, %v602
        %v675 = vpack.c.b16 %v611, %v607
        %v676 = vpack.c.b16 %v612, %v608
        %v677 = vpack.c.b16 %v613, %v609
        %v678 = vpack.c.b16 %v614, %v610
        %743 = vmatpush.bf16.msra.mxu0 %v643
        %744 = vmatpush.bf16.msra.mxu0 %v639
        %745 = vmatpush.bf16.msra.mxu0 %v635
        %746 = vmatpush.bf16.msra.mxu0 %v631
        %747 = vmatpush.bf16.msra.mxu0 %v627
        %748 = vmatpush.bf16.msra.mxu0 %v623
        %749 = vmatpush.bf16.msra.mxu0 %v619
        %750 = vmatpush.bf16.msra.mxu0 %v615
        %751 = vmatmul.bf16.gmra.mxu0 %v327
        %v752 = vpop.f32.mrf.mxu0
        %v753 = vadd.f32 0.0, %v752
        %v754 = vpop.f32.mrf.mxu0
        %v755 = vadd.f32 0.0, %v754
        %756 = vmatmul.bf16.gmra.mxu0 %v329
        %v757 = vpop.f32.mrf.mxu0
        %v758 = vadd.f32 0.0, %v757
        %v759 = vpop.f32.mrf.mxu0
        %v760 = vadd.f32 0.0, %v759
        %761 = vmatmul.bf16.gmra.mxu0 %v331
        %v762 = vpop.f32.mrf.mxu0
        %v763 = vadd.f32 0.0, %v762
        %v764 = vpop.f32.mrf.mxu0
        %v765 = vadd.f32 0.0, %v764
        %766 = vmatmul.bf16.gmra.mxu0 %v333
        %v767 = vpop.f32.mrf.mxu0
        %v768 = vadd.f32 0.0, %v767
        %v769 = vpop.f32.mrf.mxu0
        %v770 = vadd.f32 0.0, %v769
        %771 = vmatmul.bf16.gmra.mxu0 %v335
        %v772 = vpop.f32.mrf.mxu0
        %v773 = vadd.f32 0.0, %v772
        %v774 = vpop.f32.mrf.mxu0
        %v775 = vadd.f32 0.0, %v774
        %776 = vmatmul.bf16.gmra.mxu0 %v337
        %v777 = vpop.f32.mrf.mxu0
        %v778 = vadd.f32 0.0, %v777
        %v779 = vpop.f32.mrf.mxu0
        %v780 = vadd.f32 0.0, %v779
        %781 = vmatmul.bf16.gmra.mxu0 %v339
        %v782 = vpop.f32.mrf.mxu0
        %v783 = vadd.f32 0.0, %v782
        %v784 = vpop.f32.mrf.mxu0
        %v785 = vadd.f32 0.0, %v784
        %786 = vmatmul.bf16.gmra.mxu0 %v341
        %v787 = vpop.f32.mrf.mxu0
        %v788 = vadd.f32 0.0, %v787
        %v789 = vpop.f32.mrf.mxu0
        %v790 = vadd.f32 0.0, %v789
        %791 = vmatmul.bf16.gmra.mxu0 %v343
        %v792 = vpop.f32.mrf.mxu0
        %v793 = vadd.f32 0.0, %v792
        %v794 = vpop.f32.mrf.mxu0
        %v795 = vadd.f32 0.0, %v794
        %796 = vmatmul.bf16.gmra.mxu0 %v345
        %v797 = vpop.f32.mrf.mxu0
        %v798 = vadd.f32 0.0, %v797
        %v799 = vpop.f32.mrf.mxu0
        %v800 = vadd.f32 0.0, %v799
        %801 = vmatmul.bf16.gmra.mxu0 %v347
        %v802 = vpop.f32.mrf.mxu0
        %v803 = vadd.f32 0.0, %v802
        %v804 = vpop.f32.mrf.mxu0
        %v805 = vadd.f32 0.0, %v804
        %806 = vmatmul.bf16.gmra.mxu0 %v349
        %v807 = vpop.f32.mrf.mxu0
        %v808 = vadd.f32 0.0, %v807
        %v809 = vpop.f32.mrf.mxu0
        %v810 = vadd.f32 0.0, %v809
        %811 = vmatmul.bf16.gmra.mxu0 %v351
        %v812 = vpop.f32.mrf.mxu0
        %v813 = vadd.f32 0.0, %v812
        %v814 = vpop.f32.mrf.mxu0
        %v815 = vadd.f32 0.0, %v814
        %816 = vmatmul.bf16.gmra.mxu0 %v353
        %v817 = vpop.f32.mrf.mxu0
        %v818 = vadd.f32 0.0, %v817
        %v819 = vpop.f32.mrf.mxu0
        %v820 = vadd.f32 0.0, %v819
        %821 = vmatmul.bf16.gmra.mxu0 %v355
        %v822 = vpop.f32.mrf.mxu0
        %v823 = vadd.f32 0.0, %v822
        %v824 = vpop.f32.mrf.mxu0
        %v825 = vadd.f32 0.0, %v824
        %826 = vmatmul.bf16.gmra.mxu0 %v357
        %v827 = vpop.f32.mrf.mxu0
        %v828 = vadd.f32 0.0, %v827
        %v829 = vpop.f32.mrf.mxu0
        %v830 = vadd.f32 0.0, %v829
        %831 = vdwg.mxu0
        %832 = vmatpush.bf16.msra.mxu0 %v675
        %833 = vmatpush.bf16.msra.mxu0 %v671
        %834 = vmatpush.bf16.msra.mxu0 %v667
        %835 = vmatpush.bf16.msra.mxu0 %v663
        %836 = vmatpush.bf16.msra.mxu0 %v659
        %837 = vmatpush.bf16.msra.mxu0 %v655
        %838 = vmatpush.bf16.msra.mxu0 %v651
        %839 = vmatpush.bf16.msra.mxu0 %v647
        %840 = vmatmul.bf16.gmra.mxu0 %v328
        %v841 = vpop.f32.mrf.mxu0
        %v842 = vadd.f32 %v753, %v841
        %v843 = vpop.f32.mrf.mxu0
        %v844 = vadd.f32 %v755, %v843
        %845 = vmatmul.bf16.gmra.mxu0 %v330
        %v846 = vpop.f32.mrf.mxu0
        %v847 = vadd.f32 %v758, %v846
        %v848 = vpop.f32.mrf.mxu0
        %v849 = vadd.f32 %v760, %v848
        %850 = vmatmul.bf16.gmra.mxu0 %v332
        %v851 = vpop.f32.mrf.mxu0
        %v852 = vadd.f32 %v763, %v851
        %v853 = vpop.f32.mrf.mxu0
        %v854 = vadd.f32 %v765, %v853
        %855 = vmatmul.bf16.gmra.mxu0 %v334
        %v856 = vpop.f32.mrf.mxu0
        %v857 = vadd.f32 %v768, %v856
        %v858 = vpop.f32.mrf.mxu0
        %v859 = vadd.f32 %v770, %v858
        %860 = vmatmul.bf16.gmra.mxu0 %v336
        %v861 = vpop.f32.mrf.mxu0
        %v862 = vadd.f32 %v773, %v861
        %v863 = vpop.f32.mrf.mxu0
        %v864 = vadd.f32 %v775, %v863
        %865 = vmatmul.bf16.gmra.mxu0 %v338
        %v866 = vpop.f32.mrf.mxu0
        %v867 = vadd.f32 %v778, %v866
        %v868 = vpop.f32.mrf.mxu0
        %v869 = vadd.f32 %v780, %v868
        %870 = vmatmul.bf16.gmra.mxu0 %v340
        %v871 = vpop.f32.mrf.mxu0
        %v872 = vadd.f32 %v783, %v871
        %v873 = vpop.f32.mrf.mxu0
        %v874 = vadd.f32 %v785, %v873
        %875 = vmatmul.bf16.gmra.mxu0 %v342
        %v876 = vpop.f32.mrf.mxu0
        %v877 = vadd.f32 %v788, %v876
        %v878 = vpop.f32.mrf.mxu0
        %v879 = vadd.f32 %v790, %v878
        %880 = vmatmul.bf16.gmra.mxu0 %v344
        %v881 = vpop.f32.mrf.mxu0
        %v882 = vadd.f32 %v793, %v881
        %v883 = vpop.f32.mrf.mxu0
        %v884 = vadd.f32 %v795, %v883
        %885 = vmatmul.bf16.gmra.mxu0 %v346
        %v886 = vpop.f32.mrf.mxu0
        %v887 = vadd.f32 %v798, %v886
        %v888 = vpop.f32.mrf.mxu0
        %v889 = vadd.f32 %v800, %v888
        %890 = vmatmul.bf16.gmra.mxu0 %v348
        %v891 = vpop.f32.mrf.mxu0
        %v892 = vadd.f32 %v803, %v891
        %v893 = vpop.f32.mrf.mxu0
        %v894 = vadd.f32 %v805, %v893
        %895 = vmatmul.bf16.gmra.mxu0 %v350
        %v896 = vpop.f32.mrf.mxu0
        %v897 = vadd.f32 %v808, %v896
        %v898 = vpop.f32.mrf.mxu0
        %v899 = vadd.f32 %v810, %v898
        %900 = vmatmul.bf16.gmra.mxu0 %v352
        %v901 = vpop.f32.mrf.mxu0
        %v902 = vadd.f32 %v813, %v901
        %v903 = vpop.f32.mrf.mxu0
        %v904 = vadd.f32 %v815, %v903
        %905 = vmatmul.bf16.gmra.mxu0 %v354
        %v906 = vpop.f32.mrf.mxu0
        %v907 = vadd.f32 %v818, %v906
        %v908 = vpop.f32.mrf.mxu0
        %v909 = vadd.f32 %v820, %v908
        %910 = vmatmul.bf16.gmra.mxu0 %v356
        %v911 = vpop.f32.mrf.mxu0
        %v912 = vadd.f32 %v823, %v911
        %v913 = vpop.f32.mrf.mxu0
        %v914 = vadd.f32 %v825, %v913
        %915 = vmatmul.bf16.gmra.mxu0 %v358
        %v916 = vpop.f32.mrf.mxu0
        %v917 = vadd.f32 %v828, %v916
        %v918 = vpop.f32.mrf.mxu0
        %v919 = vadd.f32 %v830, %v918
        %920 = vdwg.mxu0
        %921 = vmatpush.bf16.msra.mxu0 %v644
        %922 = vmatpush.bf16.msra.mxu0 %v640
        %923 = vmatpush.bf16.msra.mxu0 %v636
        %924 = vmatpush.bf16.msra.mxu0 %v632
        %925 = vmatpush.bf16.msra.mxu0 %v628
        %926 = vmatpush.bf16.msra.mxu0 %v624
        %927 = vmatpush.bf16.msra.mxu0 %v620
        %928 = vmatpush.bf16.msra.mxu0 %v616
        %929 = vmatmul.bf16.gmra.mxu0 %v327
        %v930 = vpop.f32.mrf.mxu0
        %v931 = vadd.f32 0.0, %v930
        %v932 = vpop.f32.mrf.mxu0
        %v933 = vadd.f32 0.0, %v932
        %934 = vmatmul.bf16.gmra.mxu0 %v329
        %v935 = vpop.f32.mrf.mxu0
        %v936 = vadd.f32 0.0, %v935
        %v937 = vpop.f32.mrf.mxu0
        %v938 = vadd.f32 0.0, %v937
        %939 = vmatmul.bf16.gmra.mxu0 %v331
        %v940 = vpop.f32.mrf.mxu0
        %v941 = vadd.f32 0.0, %v940
        %v942 = vpop.f32.mrf.mxu0
        %v943 = vadd.f32 0.0, %v942
        %944 = vmatmul.bf16.gmra.mxu0 %v333
        %v945 = vpop.f32.mrf.mxu0
        %v946 = vadd.f32 0.0, %v945
        %v947 = vpop.f32.mrf.mxu0
        %v948 = vadd.f32 0.0, %v947
        %949 = vmatmul.bf16.gmra.mxu0 %v335
        %v950 = vpop.f32.mrf.mxu0
        %v951 = vadd.f32 0.0, %v950
        %v952 = vpop.f32.mrf.mxu0
        %v953 = vadd.f32 0.0, %v952
        %954 = vmatmul.bf16.gmra.mxu0 %v337
        %v955 = vpop.f32.mrf.mxu0
        %v956 = vadd.f32 0.0, %v955
        %v957 = vpop.f32.mrf.mxu0
        %v958 = vadd.f32 0.0, %v957
        %959 = vmatmul.bf16.gmra.mxu0 %v339
        %v960 = vpop.f32.mrf.mxu0
        %v961 = vadd.f32 0.0, %v960
        %v962 = vpop.f32.mrf.mxu0
        %v963 = vadd.f32 0.0, %v962
        %964 = vmatmul.bf16.gmra.mxu0 %v341
        %v965 = vpop.f32.mrf.mxu0
        %v966 = vadd.f32 0.0, %v965
        %v967 = vpop.f32.mrf.mxu0
        %v968 = vadd.f32 0.0, %v967
        %969 = vmatmul.bf16.gmra.mxu0 %v343
        %v970 = vpop.f32.mrf.mxu0
        %v971 = vadd.f32 0.0, %v970
        %v972 = vpop.f32.mrf.mxu0
        %v973 = vadd.f32 0.0, %v972
        %974 = vmatmul.bf16.gmra.mxu0 %v345
        %v975 = vpop.f32.mrf.mxu0
        %v976 = vadd.f32 0.0, %v975
        %v977 = vpop.f32.mrf.mxu0
        %v978 = vadd.f32 0.0, %v977
        %979 = vmatmul.bf16.gmra.mxu0 %v347
        %v980 = vpop.f32.mrf.mxu0
        %v981 = vadd.f32 0.0, %v980
        %v982 = vpop.f32.mrf.mxu0
        %v983 = vadd.f32 0.0, %v982
        %984 = vmatmul.bf16.gmra.mxu0 %v349
        %v985 = vpop.f32.mrf.mxu0
        %v986 = vadd.f32 0.0, %v985
        %v987 = vpop.f32.mrf.mxu0
        %v988 = vadd.f32 0.0, %v987
        %989 = vmatmul.bf16.gmra.mxu0 %v351
        %v990 = vpop.f32.mrf.mxu0
        %v991 = vadd.f32 0.0, %v990
        %v992 = vpop.f32.mrf.mxu0
        %v993 = vadd.f32 0.0, %v992
        %994 = vmatmul.bf16.gmra.mxu0 %v353
        %v995 = vpop.f32.mrf.mxu0
        %v996 = vadd.f32 0.0, %v995
        %v997 = vpop.f32.mrf.mxu0
        %v998 = vadd.f32 0.0, %v997
        %999 = vmatmul.bf16.gmra.mxu0 %v355
        %v1000 = vpop.f32.mrf.mxu0
        %v1001 = vadd.f32 0.0, %v1000
        %v1002 = vpop.f32.mrf.mxu0
        %v1003 = vadd.f32 0.0, %v1002
        %1004 = vmatmul.bf16.gmra.mxu0 %v357
        %v1005 = vpop.f32.mrf.mxu0
        %v1006 = vadd.f32 0.0, %v1005
        %v1007 = vpop.f32.mrf.mxu0
        %v1008 = vadd.f32 0.0, %v1007
        %1009 = vdwg.mxu0
        %1010 = vmatpush.bf16.msra.mxu0 %v676
        %1011 = vmatpush.bf16.msra.mxu0 %v672
        %1012 = vmatpush.bf16.msra.mxu0 %v668
        %1013 = vmatpush.bf16.msra.mxu0 %v664
        %1014 = vmatpush.bf16.msra.mxu0 %v660
        %1015 = vmatpush.bf16.msra.mxu0 %v656
        %1016 = vmatpush.bf16.msra.mxu0 %v652
        %1017 = vmatpush.bf16.msra.mxu0 %v648
        %1018 = vmatmul.bf16.gmra.mxu0 %v328
        %v1019 = vpop.f32.mrf.mxu0
        %v1020 = vadd.f32 %v931, %v1019
        %v1021 = vpop.f32.mrf.mxu0
        %v1022 = vadd.f32 %v933, %v1021
        %1023 = vmatmul.bf16.gmra.mxu0 %v330
        %v1024 = vpop.f32.mrf.mxu0
        %v1025 = vadd.f32 %v936, %v1024
        %v1026 = vpop.f32.mrf.mxu0
        %v1027 = vadd.f32 %v938, %v1026
        %1028 = vmatmul.bf16.gmra.mxu0 %v332
        %v1029 = vpop.f32.mrf.mxu0
        %v1030 = vadd.f32 %v941, %v1029
        %v1031 = vpop.f32.mrf.mxu0
        %v1032 = vadd.f32 %v943, %v1031
        %1033 = vmatmul.bf16.gmra.mxu0 %v334
        %v1034 = vpop.f32.mrf.mxu0
        %v1035 = vadd.f32 %v946, %v1034
        %v1036 = vpop.f32.mrf.mxu0
        %v1037 = vadd.f32 %v948, %v1036
        %1038 = vmatmul.bf16.gmra.mxu0 %v336
        %v1039 = vpop.f32.mrf.mxu0
        %v1040 = vadd.f32 %v951, %v1039
        %v1041 = vpop.f32.mrf.mxu0
        %v1042 = vadd.f32 %v953, %v1041
        %1043 = vmatmul.bf16.gmra.mxu0 %v338
        %v1044 = vpop.f32.mrf.mxu0
        %v1045 = vadd.f32 %v956, %v1044
        %v1046 = vpop.f32.mrf.mxu0
        %v1047 = vadd.f32 %v958, %v1046
        %1048 = vmatmul.bf16.gmra.mxu0 %v340
        %v1049 = vpop.f32.mrf.mxu0
        %v1050 = vadd.f32 %v961, %v1049
        %v1051 = vpop.f32.mrf.mxu0
        %v1052 = vadd.f32 %v963, %v1051
        %1053 = vmatmul.bf16.gmra.mxu0 %v342
        %v1054 = vpop.f32.mrf.mxu0
        %v1055 = vadd.f32 %v966, %v1054
        %v1056 = vpop.f32.mrf.mxu0
        %v1057 = vadd.f32 %v968, %v1056
        %1058 = vmatmul.bf16.gmra.mxu0 %v344
        %v1059 = vpop.f32.mrf.mxu0
        %v1060 = vadd.f32 %v971, %v1059
        %v1061 = vpop.f32.mrf.mxu0
        %v1062 = vadd.f32 %v973, %v1061
        %1063 = vmatmul.bf16.gmra.mxu0 %v346
        %v1064 = vpop.f32.mrf.mxu0
        %v1065 = vadd.f32 %v976, %v1064
        %v1066 = vpop.f32.mrf.mxu0
        %v1067 = vadd.f32 %v978, %v1066
        %1068 = vmatmul.bf16.gmra.mxu0 %v348
        %v1069 = vpop.f32.mrf.mxu0
        %v1070 = vadd.f32 %v981, %v1069
        %v1071 = vpop.f32.mrf.mxu0
        %v1072 = vadd.f32 %v983, %v1071
        %1073 = vmatmul.bf16.gmra.mxu0 %v350
        %v1074 = vpop.f32.mrf.mxu0
        %v1075 = vadd.f32 %v986, %v1074
        %v1076 = vpop.f32.mrf.mxu0
        %v1077 = vadd.f32 %v988, %v1076
        %1078 = vmatmul.bf16.gmra.mxu0 %v352
        %v1079 = vpop.f32.mrf.mxu0
        %v1080 = vadd.f32 %v991, %v1079
        %v1081 = vpop.f32.mrf.mxu0
        %v1082 = vadd.f32 %v993, %v1081
        %1083 = vmatmul.bf16.gmra.mxu0 %v354
        %v1084 = vpop.f32.mrf.mxu0
        %v1085 = vadd.f32 %v996, %v1084
        %v1086 = vpop.f32.mrf.mxu0
        %v1087 = vadd.f32 %v998, %v1086
        %1088 = vmatmul.bf16.gmra.mxu0 %v356
        %v1089 = vpop.f32.mrf.mxu0
        %v1090 = vadd.f32 %v1001, %v1089
        %v1091 = vpop.f32.mrf.mxu0
        %v1092 = vadd.f32 %v1003, %v1091
        %1093 = vmatmul.bf16.gmra.mxu0 %v358
        %v1094 = vpop.f32.mrf.mxu0
        %v1095 = vadd.f32 %v1006, %v1094
        %v1096 = vpop.f32.mrf.mxu0
        %v1097 = vadd.f32 %v1008, %v1096
        %1098 = vdwg.mxu0
        %1099 = vmatpush.bf16.msra.mxu0 %v645
        %1100 = vmatpush.bf16.msra.mxu0 %v641
        %1101 = vmatpush.bf16.msra.mxu0 %v637
        %1102 = vmatpush.bf16.msra.mxu0 %v633
        %1103 = vmatpush.bf16.msra.mxu0 %v629
        %1104 = vmatpush.bf16.msra.mxu0 %v625
        %1105 = vmatpush.bf16.msra.mxu0 %v621
        %1106 = vmatpush.bf16.msra.mxu0 %v617
        %1107 = vmatmul.bf16.gmra.mxu0 %v327
        %v1108 = vpop.f32.mrf.mxu0
        %v1109 = vadd.f32 0.0, %v1108
        %v1110 = vpop.f32.mrf.mxu0
        %v1111 = vadd.f32 0.0, %v1110
        %1112 = vmatmul.bf16.gmra.mxu0 %v329
        %v1113 = vpop.f32.mrf.mxu0
        %v1114 = vadd.f32 0.0, %v1113
        %v1115 = vpop.f32.mrf.mxu0
        %v1116 = vadd.f32 0.0, %v1115
        %1117 = vmatmul.bf16.gmra.mxu0 %v331
        %v1118 = vpop.f32.mrf.mxu0
        %v1119 = vadd.f32 0.0, %v1118
        %v1120 = vpop.f32.mrf.mxu0
        %v1121 = vadd.f32 0.0, %v1120
        %1122 = vmatmul.bf16.gmra.mxu0 %v333
        %v1123 = vpop.f32.mrf.mxu0
        %v1124 = vadd.f32 0.0, %v1123
        %v1125 = vpop.f32.mrf.mxu0
        %v1126 = vadd.f32 0.0, %v1125
        %1127 = vmatmul.bf16.gmra.mxu0 %v335
        %v1128 = vpop.f32.mrf.mxu0
        %v1129 = vadd.f32 0.0, %v1128
        %v1130 = vpop.f32.mrf.mxu0
        %v1131 = vadd.f32 0.0, %v1130
        %1132 = vmatmul.bf16.gmra.mxu0 %v337
        %v1133 = vpop.f32.mrf.mxu0
        %v1134 = vadd.f32 0.0, %v1133
        %v1135 = vpop.f32.mrf.mxu0
        %v1136 = vadd.f32 0.0, %v1135
        %1137 = vmatmul.bf16.gmra.mxu0 %v339
        %v1138 = vpop.f32.mrf.mxu0
        %v1139 = vadd.f32 0.0, %v1138
        %v1140 = vpop.f32.mrf.mxu0
        %v1141 = vadd.f32 0.0, %v1140
        %1142 = vmatmul.bf16.gmra.mxu0 %v341
        %v1143 = vpop.f32.mrf.mxu0
        %v1144 = vadd.f32 0.0, %v1143
        %v1145 = vpop.f32.mrf.mxu0
        %v1146 = vadd.f32 0.0, %v1145
        %1147 = vmatmul.bf16.gmra.mxu0 %v343
        %v1148 = vpop.f32.mrf.mxu0
        %v1149 = vadd.f32 0.0, %v1148
        %v1150 = vpop.f32.mrf.mxu0
        %v1151 = vadd.f32 0.0, %v1150
        %1152 = vmatmul.bf16.gmra.mxu0 %v345
        %v1153 = vpop.f32.mrf.mxu0
        %v1154 = vadd.f32 0.0, %v1153
        %v1155 = vpop.f32.mrf.mxu0
        %v1156 = vadd.f32 0.0, %v1155
        %1157 = vmatmul.bf16.gmra.mxu0 %v347
        %v1158 = vpop.f32.mrf.mxu0
        %v1159 = vadd.f32 0.0, %v1158
        %v1160 = vpop.f32.mrf.mxu0
        %v1161 = vadd.f32 0.0, %v1160
        %1162 = vmatmul.bf16.gmra.mxu0 %v349
        %v1163 = vpop.f32.mrf.mxu0
        %v1164 = vadd.f32 0.0, %v1163
        %v1165 = vpop.f32.mrf.mxu0
        %v1166 = vadd.f32 0.0, %v1165
        %1167 = vmatmul.bf16.gmra.mxu0 %v351
        %v1168 = vpop.f32.mrf.mxu0
        %v1169 = vadd.f32 0.0, %v1168
        %v1170 = vpop.f32.mrf.mxu0
        %v1171 = vadd.f32 0.0, %v1170
        %1172 = vmatmul.bf16.gmra.mxu0 %v353
        %v1173 = vpop.f32.mrf.mxu0
        %v1174 = vadd.f32 0.0, %v1173
        %v1175 = vpop.f32.mrf.mxu0
        %v1176 = vadd.f32 0.0, %v1175
        %1177 = vmatmul.bf16.gmra.mxu0 %v355
        %v1178 = vpop.f32.mrf.mxu0
        %v1179 = vadd.f32 0.0, %v1178
        %v1180 = vpop.f32.mrf.mxu0
        %v1181 = vadd.f32 0.0, %v1180
        %1182 = vmatmul.bf16.gmra.mxu0 %v357
        %v1183 = vpop.f32.mrf.mxu0
        %v1184 = vadd.f32 0.0, %v1183
        %v1185 = vpop.f32.mrf.mxu0
        %v1186 = vadd.f32 0.0, %v1185
        %1187 = vdwg.mxu0
        %1188 = vmatpush.bf16.msra.mxu0 %v677
        %1189 = vmatpush.bf16.msra.mxu0 %v673
        %1190 = vmatpush.bf16.msra.mxu0 %v669
        %1191 = vmatpush.bf16.msra.mxu0 %v665
        %1192 = vmatpush.bf16.msra.mxu0 %v661
        %1193 = vmatpush.bf16.msra.mxu0 %v657
        %1194 = vmatpush.bf16.msra.mxu0 %v653
        %1195 = vmatpush.bf16.msra.mxu0 %v649
        %1196 = vmatmul.bf16.gmra.mxu0 %v328
        %v1197 = vpop.f32.mrf.mxu0
        %v1198 = vadd.f32 %v1109, %v1197
        %v1199 = vpop.f32.mrf.mxu0
        %v1200 = vadd.f32 %v1111, %v1199
        %1201 = vmatmul.bf16.gmra.mxu0 %v330
        %v1202 = vpop.f32.mrf.mxu0
        %v1203 = vadd.f32 %v1114, %v1202
        %v1204 = vpop.f32.mrf.mxu0
        %v1205 = vadd.f32 %v1116, %v1204
        %1206 = vmatmul.bf16.gmra.mxu0 %v332
        %v1207 = vpop.f32.mrf.mxu0
        %v1208 = vadd.f32 %v1119, %v1207
        %v1209 = vpop.f32.mrf.mxu0
        %v1210 = vadd.f32 %v1121, %v1209
        %1211 = vmatmul.bf16.gmra.mxu0 %v334
        %v1212 = vpop.f32.mrf.mxu0
        %v1213 = vadd.f32 %v1124, %v1212
        %v1214 = vpop.f32.mrf.mxu0
        %v1215 = vadd.f32 %v1126, %v1214
        %1216 = vmatmul.bf16.gmra.mxu0 %v336
        %v1217 = vpop.f32.mrf.mxu0
        %v1218 = vadd.f32 %v1129, %v1217
        %v1219 = vpop.f32.mrf.mxu0
        %v1220 = vadd.f32 %v1131, %v1219
        %1221 = vmatmul.bf16.gmra.mxu0 %v338
        %v1222 = vpop.f32.mrf.mxu0
        %v1223 = vadd.f32 %v1134, %v1222
        %v1224 = vpop.f32.mrf.mxu0
        %v1225 = vadd.f32 %v1136, %v1224
        %1226 = vmatmul.bf16.gmra.mxu0 %v340
        %v1227 = vpop.f32.mrf.mxu0
        %v1228 = vadd.f32 %v1139, %v1227
        %v1229 = vpop.f32.mrf.mxu0
        %v1230 = vadd.f32 %v1141, %v1229
        %1231 = vmatmul.bf16.gmra.mxu0 %v342
        %v1232 = vpop.f32.mrf.mxu0
        %v1233 = vadd.f32 %v1144, %v1232
        %v1234 = vpop.f32.mrf.mxu0
        %v1235 = vadd.f32 %v1146, %v1234
        %1236 = vmatmul.bf16.gmra.mxu0 %v344
        %v1237 = vpop.f32.mrf.mxu0
        %v1238 = vadd.f32 %v1149, %v1237
        %v1239 = vpop.f32.mrf.mxu0
        %v1240 = vadd.f32 %v1151, %v1239
        %1241 = vmatmul.bf16.gmra.mxu0 %v346
        %v1242 = vpop.f32.mrf.mxu0
        %v1243 = vadd.f32 %v1154, %v1242
        %v1244 = vpop.f32.mrf.mxu0
        %v1245 = vadd.f32 %v1156, %v1244
        %1246 = vmatmul.bf16.gmra.mxu0 %v348
        %v1247 = vpop.f32.mrf.mxu0
        %v1248 = vadd.f32 %v1159, %v1247
        %v1249 = vpop.f32.mrf.mxu0
        %v1250 = vadd.f32 %v1161, %v1249
        %1251 = vmatmul.bf16.gmra.mxu0 %v350
        %v1252 = vpop.f32.mrf.mxu0
        %v1253 = vadd.f32 %v1164, %v1252
        %v1254 = vpop.f32.mrf.mxu0
        %v1255 = vadd.f32 %v1166, %v1254
        %1256 = vmatmul.bf16.gmra.mxu0 %v352
        %v1257 = vpop.f32.mrf.mxu0
        %v1258 = vadd.f32 %v1169, %v1257
        %v1259 = vpop.f32.mrf.mxu0
        %v1260 = vadd.f32 %v1171, %v1259
        %1261 = vmatmul.bf16.gmra.mxu0 %v354
        %v1262 = vpop.f32.mrf.mxu0
        %v1263 = vadd.f32 %v1174, %v1262
        %v1264 = vpop.f32.mrf.mxu0
        %v1265 = vadd.f32 %v1176, %v1264
        %1266 = vmatmul.bf16.gmra.mxu0 %v356
        %v1267 = vpop.f32.mrf.mxu0
        %v1268 = vadd.f32 %v1179, %v1267
        %v1269 = vpop.f32.mrf.mxu0
        %v1270 = vadd.f32 %v1181, %v1269
        %1271 = vmatmul.bf16.gmra.mxu0 %v358
        %v1272 = vpop.f32.mrf.mxu0
        %v1273 = vadd.f32 %v1184, %v1272
        %v1274 = vpop.f32.mrf.mxu0
        %v1275 = vadd.f32 %v1186, %v1274
        %1276 = vdwg.mxu0
        %1277 = vmatpush.bf16.msra.mxu0 %v646
        %1278 = vmatpush.bf16.msra.mxu0 %v642
        %1279 = vmatpush.bf16.msra.mxu0 %v638
        %1280 = vmatpush.bf16.msra.mxu0 %v634
        %1281 = vmatpush.bf16.msra.mxu0 %v630
        %1282 = vmatpush.bf16.msra.mxu0 %v626
        %1283 = vmatpush.bf16.msra.mxu0 %v622
        %1284 = vmatpush.bf16.msra.mxu0 %v618
        %1285 = vmatmul.bf16.gmra.mxu0 %v327
        %v1286 = vpop.f32.mrf.mxu0
        %v1287 = vadd.f32 0.0, %v1286
        %v1288 = vpop.f32.mrf.mxu0
        %v1289 = vadd.f32 0.0, %v1288
        %1290 = vmatmul.bf16.gmra.mxu0 %v329
        %v1291 = vpop.f32.mrf.mxu0
        %v1292 = vadd.f32 0.0, %v1291
        %v1293 = vpop.f32.mrf.mxu0
        %v1294 = vadd.f32 0.0, %v1293
        %1295 = vmatmul.bf16.gmra.mxu0 %v331
        %v1296 = vpop.f32.mrf.mxu0
        %v1297 = vadd.f32 0.0, %v1296
        %v1298 = vpop.f32.mrf.mxu0
        %v1299 = vadd.f32 0.0, %v1298
        %1300 = vmatmul.bf16.gmra.mxu0 %v333
        %v1301 = vpop.f32.mrf.mxu0
        %v1302 = vadd.f32 0.0, %v1301
        %v1303 = vpop.f32.mrf.mxu0
        %v1304 = vadd.f32 0.0, %v1303
        %1305 = vmatmul.bf16.gmra.mxu0 %v335
        %v1306 = vpop.f32.mrf.mxu0
        %v1307 = vadd.f32 0.0, %v1306
        %v1308 = vpop.f32.mrf.mxu0
        %v1309 = vadd.f32 0.0, %v1308
        %1310 = vmatmul.bf16.gmra.mxu0 %v337
        %v1311 = vpop.f32.mrf.mxu0
        %v1312 = vadd.f32 0.0, %v1311
        %v1313 = vpop.f32.mrf.mxu0
        %v1314 = vadd.f32 0.0, %v1313
        %1315 = vmatmul.bf16.gmra.mxu0 %v339
        %v1316 = vpop.f32.mrf.mxu0
        %v1317 = vadd.f32 0.0, %v1316
        %v1318 = vpop.f32.mrf.mxu0
        %v1319 = vadd.f32 0.0, %v1318
        %1320 = vmatmul.bf16.gmra.mxu0 %v341
        %v1321 = vpop.f32.mrf.mxu0
        %v1322 = vadd.f32 0.0, %v1321
        %v1323 = vpop.f32.mrf.mxu0
        %v1324 = vadd.f32 0.0, %v1323
        %1325 = vmatmul.bf16.gmra.mxu0 %v343
        %v1326 = vpop.f32.mrf.mxu0
        %v1327 = vadd.f32 0.0, %v1326
        %v1328 = vpop.f32.mrf.mxu0
        %v1329 = vadd.f32 0.0, %v1328
        %1330 = vmatmul.bf16.gmra.mxu0 %v345
        %v1331 = vpop.f32.mrf.mxu0
        %v1332 = vadd.f32 0.0, %v1331
        %v1333 = vpop.f32.mrf.mxu0
        %v1334 = vadd.f32 0.0, %v1333
        %1335 = vmatmul.bf16.gmra.mxu0 %v347
        %v1336 = vpop.f32.mrf.mxu0
        %v1337 = vadd.f32 0.0, %v1336
        %v1338 = vpop.f32.mrf.mxu0
        %v1339 = vadd.f32 0.0, %v1338
        %1340 = vmatmul.bf16.gmra.mxu0 %v349
        %v1341 = vpop.f32.mrf.mxu0
        %v1342 = vadd.f32 0.0, %v1341
        %v1343 = vpop.f32.mrf.mxu0
        %v1344 = vadd.f32 0.0, %v1343
        %1345 = vmatmul.bf16.gmra.mxu0 %v351
        %v1346 = vpop.f32.mrf.mxu0
        %v1347 = vadd.f32 0.0, %v1346
        %v1348 = vpop.f32.mrf.mxu0
        %v1349 = vadd.f32 0.0, %v1348
        %1350 = vmatmul.bf16.gmra.mxu0 %v353
        %v1351 = vpop.f32.mrf.mxu0
        %v1352 = vadd.f32 0.0, %v1351
        %v1353 = vpop.f32.mrf.mxu0
        %v1354 = vadd.f32 0.0, %v1353
        %1355 = vmatmul.bf16.gmra.mxu0 %v355
        %v1356 = vpop.f32.mrf.mxu0
        %v1357 = vadd.f32 0.0, %v1356
        %v1358 = vpop.f32.mrf.mxu0
        %v1359 = vadd.f32 0.0, %v1358
        %1360 = vmatmul.bf16.gmra.mxu0 %v357
        %v1361 = vpop.f32.mrf.mxu0
        %v1362 = vadd.f32 0.0, %v1361
        %v1363 = vpop.f32.mrf.mxu0
        %v1364 = vadd.f32 0.0, %v1363
        %1365 = vdwg.mxu0
        %1366 = vmatpush.bf16.msra.mxu0 %v678
        %1367 = vmatpush.bf16.msra.mxu0 %v674
        %1368 = vmatpush.bf16.msra.mxu0 %v670
        %1369 = vmatpush.bf16.msra.mxu0 %v666
        %1370 = vmatpush.bf16.msra.mxu0 %v662
        %1371 = vmatpush.bf16.msra.mxu0 %v658
        %1372 = vmatpush.bf16.msra.mxu0 %v654
        %1373 = vmatpush.bf16.msra.mxu0 %v650
        %1374 = vmatmul.bf16.gmra.mxu0 %v328
        %v1375 = vpop.f32.mrf.mxu0
        %v1376 = vadd.f32 %v1287, %v1375
        %v1377 = vpop.f32.mrf.mxu0
        %v1378 = vadd.f32 %v1289, %v1377
        %1379 = vmatmul.bf16.gmra.mxu0 %v330
        %v1380 = vpop.f32.mrf.mxu0
        %v1381 = vadd.f32 %v1292, %v1380
        %v1382 = vpop.f32.mrf.mxu0
        %v1383 = vadd.f32 %v1294, %v1382
        %1384 = vmatmul.bf16.gmra.mxu0 %v332
        %v1385 = vpop.f32.mrf.mxu0
        %v1386 = vadd.f32 %v1297, %v1385
        %v1387 = vpop.f32.mrf.mxu0
        %v1388 = vadd.f32 %v1299, %v1387
        %1389 = vmatmul.bf16.gmra.mxu0 %v334
        %v1390 = vpop.f32.mrf.mxu0
        %v1391 = vadd.f32 %v1302, %v1390
        %v1392 = vpop.f32.mrf.mxu0
        %v1393 = vadd.f32 %v1304, %v1392
        %1394 = vmatmul.bf16.gmra.mxu0 %v336
        %v1395 = vpop.f32.mrf.mxu0
        %v1396 = vadd.f32 %v1307, %v1395
        %v1397 = vpop.f32.mrf.mxu0
        %v1398 = vadd.f32 %v1309, %v1397
        %1399 = vmatmul.bf16.gmra.mxu0 %v338
        %v1400 = vpop.f32.mrf.mxu0
        %v1401 = vadd.f32 %v1312, %v1400
        %v1402 = vpop.f32.mrf.mxu0
        %v1403 = vadd.f32 %v1314, %v1402
        %1404 = vmatmul.bf16.gmra.mxu0 %v340
        %v1405 = vpop.f32.mrf.mxu0
        %v1406 = vadd.f32 %v1317, %v1405
        %v1407 = vpop.f32.mrf.mxu0
        %v1408 = vadd.f32 %v1319, %v1407
        %1409 = vmatmul.bf16.gmra.mxu0 %v342
        %v1410 = vpop.f32.mrf.mxu0
        %v1411 = vadd.f32 %v1322, %v1410
        %v1412 = vpop.f32.mrf.mxu0
        %v1413 = vadd.f32 %v1324, %v1412
        %1414 = vmatmul.bf16.gmra.mxu0 %v344
        %v1415 = vpop.f32.mrf.mxu0
        %v1416 = vadd.f32 %v1327, %v1415
        %v1417 = vpop.f32.mrf.mxu0
        %v1418 = vadd.f32 %v1329, %v1417
        %1419 = vmatmul.bf16.gmra.mxu0 %v346
        %v1420 = vpop.f32.mrf.mxu0
        %v1421 = vadd.f32 %v1332, %v1420
        %v1422 = vpop.f32.mrf.mxu0
        %v1423 = vadd.f32 %v1334, %v1422
        %1424 = vmatmul.bf16.gmra.mxu0 %v348
        %v1425 = vpop.f32.mrf.mxu0
        %v1426 = vadd.f32 %v1337, %v1425
        %v1427 = vpop.f32.mrf.mxu0
        %v1428 = vadd.f32 %v1339, %v1427
        %1429 = vmatmul.bf16.gmra.mxu0 %v350
        %v1430 = vpop.f32.mrf.mxu0
        %v1431 = vadd.f32 %v1342, %v1430
        %v1432 = vpop.f32.mrf.mxu0
        %v1433 = vadd.f32 %v1344, %v1432
        %1434 = vmatmul.bf16.gmra.mxu0 %v352
        %v1435 = vpop.f32.mrf.mxu0
        %v1436 = vadd.f32 %v1347, %v1435
        %v1437 = vpop.f32.mrf.mxu0
        %v1438 = vadd.f32 %v1349, %v1437
        %1439 = vmatmul.bf16.gmra.mxu0 %v354
        %v1440 = vpop.f32.mrf.mxu0
        %v1441 = vadd.f32 %v1352, %v1440
        %v1442 = vpop.f32.mrf.mxu0
        %v1443 = vadd.f32 %v1354, %v1442
        %1444 = vmatmul.bf16.gmra.mxu0 %v356
        %v1445 = vpop.f32.mrf.mxu0
        %v1446 = vadd.f32 %v1357, %v1445
        %v1447 = vpop.f32.mrf.mxu0
        %v1448 = vadd.f32 %v1359, %v1447
        %1449 = vmatmul.bf16.gmra.mxu0 %v358
        %v1450 = vpop.f32.mrf.mxu0
        %v1451 = vadd.f32 %v1362, %v1450
        %v1452 = vpop.f32.mrf.mxu0
        %v1453 = vadd.f32 %v1364, %v1452
        %1454 = vdwg.mxu0
        %v1455 = vxor.u32 %v842, 2147483648
        %v1456 = vxor.u32 %v1020, 2147483648
        %v1457 = vxor.u32 %v844, 2147483648
        %v1458 = vxor.u32 %v1022, 2147483648
        %v1459 = vxor.u32 %v847, 2147483648
        %v1460 = vxor.u32 %v1025, 2147483648
        %v1461 = vxor.u32 %v849, 2147483648
        %v1462 = vxor.u32 %v1027, 2147483648
        %v1463 = vxor.u32 %v852, 2147483648
        %v1464 = vxor.u32 %v1030, 2147483648
        %v1465 = vxor.u32 %v854, 2147483648
        %v1466 = vxor.u32 %v1032, 2147483648
        %v1467 = vxor.u32 %v857, 2147483648
        %v1468 = vxor.u32 %v1035, 2147483648
        %v1469 = vxor.u32 %v859, 2147483648
        %v1470 = vxor.u32 %v1037, 2147483648
        %v1471 = vxor.u32 %v862, 2147483648
        %v1472 = vxor.u32 %v1040, 2147483648
        %v1473 = vxor.u32 %v864, 2147483648
        %v1474 = vxor.u32 %v1042, 2147483648
        %v1475 = vxor.u32 %v867, 2147483648
        %v1476 = vxor.u32 %v1045, 2147483648
        %v1477 = vxor.u32 %v869, 2147483648
        %v1478 = vxor.u32 %v1047, 2147483648
        %v1479 = vxor.u32 %v872, 2147483648
        %v1480 = vxor.u32 %v1050, 2147483648
        %v1481 = vxor.u32 %v874, 2147483648
        %v1482 = vxor.u32 %v1052, 2147483648
        %v1483 = vxor.u32 %v877, 2147483648
        %v1484 = vxor.u32 %v1055, 2147483648
        %v1485 = vxor.u32 %v879, 2147483648
        %v1486 = vxor.u32 %v1057, 2147483648
        %v1487 = vxor.u32 %v882, 2147483648
        %v1488 = vxor.u32 %v1060, 2147483648
        %v1489 = vxor.u32 %v884, 2147483648
        %v1490 = vxor.u32 %v1062, 2147483648
        %v1491 = vxor.u32 %v887, 2147483648
        %v1492 = vxor.u32 %v1065, 2147483648
        %v1493 = vxor.u32 %v889, 2147483648
        %v1494 = vxor.u32 %v1067, 2147483648
        %v1495 = vxor.u32 %v892, 2147483648
        %v1496 = vxor.u32 %v1070, 2147483648
        %v1497 = vxor.u32 %v894, 2147483648
        %v1498 = vxor.u32 %v1072, 2147483648
        %v1499 = vxor.u32 %v897, 2147483648
        %v1500 = vxor.u32 %v1075, 2147483648
        %v1501 = vxor.u32 %v899, 2147483648
        %v1502 = vxor.u32 %v1077, 2147483648
        %v1503 = vxor.u32 %v902, 2147483648
        %v1504 = vxor.u32 %v1080, 2147483648
        %v1505 = vxor.u32 %v904, 2147483648
        %v1506 = vxor.u32 %v1082, 2147483648
        %v1507 = vxor.u32 %v907, 2147483648
        %v1508 = vxor.u32 %v1085, 2147483648
        %v1509 = vxor.u32 %v909, 2147483648
        %v1510 = vxor.u32 %v1087, 2147483648
        %v1511 = vxor.u32 %v912, 2147483648
        %v1512 = vxor.u32 %v1090, 2147483648
        %v1513 = vxor.u32 %v914, 2147483648
        %v1514 = vxor.u32 %v1092, 2147483648
        %v1515 = vxor.u32 %v917, 2147483648
        %v1516 = vxor.u32 %v1095, 2147483648
        %v1517 = vxor.u32 %v919, 2147483648
        %v1518 = vxor.u32 %v1097, 2147483648
        %v1519 = vmul.f32 %v1455, 1.442695
        %v1520 = vpow.pop %v1519
        %v1521 = vmul.f32 %v1456, 1.442695
        %v1522 = vpow.pop %v1521
        %v1523 = vmul.f32 %v1457, 1.442695
        %v1524 = vpow.pop %v1523
        %v1525 = vmul.f32 %v1458, 1.442695
        %v1526 = vpow.pop %v1525
        %v1527 = vmul.f32 %v1459, 1.442695
        %v1528 = vpow.pop %v1527
        %v1529 = vmul.f32 %v1460, 1.442695
        %v1530 = vpow.pop %v1529
        %v1531 = vmul.f32 %v1461, 1.442695
        %v1532 = vpow.pop %v1531
        %v1533 = vmul.f32 %v1462, 1.442695
        %v1534 = vpow.pop %v1533
        %v1535 = vmul.f32 %v1463, 1.442695
        %v1536 = vpow.pop %v1535
        %v1537 = vmul.f32 %v1464, 1.442695
        %v1538 = vpow.pop %v1537
        %v1539 = vmul.f32 %v1465, 1.442695
        %v1540 = vpow.pop %v1539
        %v1541 = vmul.f32 %v1466, 1.442695
        %v1542 = vpow.pop %v1541
        %v1543 = vmul.f32 %v1467, 1.442695
        %v1544 = vpow.pop %v1543
        %v1545 = vmul.f32 %v1468, 1.442695
        %v1546 = vpow.pop %v1545
        %v1547 = vmul.f32 %v1469, 1.442695
        %v1548 = vpow.pop %v1547
        %v1549 = vmul.f32 %v1470, 1.442695
        %v1550 = vpow.pop %v1549
        %v1551 = vmul.f32 %v1471, 1.442695
        %v1552 = vpow.pop %v1551
        %v1553 = vmul.f32 %v1472, 1.442695
        %v1554 = vpow.pop %v1553
        %v1555 = vmul.f32 %v1473, 1.442695
        %v1556 = vpow.pop %v1555
        %v1557 = vmul.f32 %v1474, 1.442695
        %v1558 = vpow.pop %v1557
        %v1559 = vmul.f32 %v1475, 1.442695
        %v1560 = vpow.pop %v1559
        %v1561 = vmul.f32 %v1476, 1.442695
        %v1562 = vpow.pop %v1561
        %v1563 = vmul.f32 %v1477, 1.442695
        %v1564 = vpow.pop %v1563
        %v1565 = vmul.f32 %v1478, 1.442695
        %v1566 = vpow.pop %v1565
        %v1567 = vmul.f32 %v1479, 1.442695
        %v1568 = vpow.pop %v1567
        %v1569 = vmul.f32 %v1480, 1.442695
        %v1570 = vpow.pop %v1569
        %v1571 = vmul.f32 %v1481, 1.442695
        %v1572 = vpow.pop %v1571
        %v1573 = vmul.f32 %v1482, 1.442695
        %v1574 = vpow.pop %v1573
        %v1575 = vmul.f32 %v1483, 1.442695
        %v1576 = vpow.pop %v1575
        %v1577 = vmul.f32 %v1484, 1.442695
        %v1578 = vpow.pop %v1577
        %v1579 = vmul.f32 %v1485, 1.442695
        %v1580 = vpow.pop %v1579
        %v1581 = vmul.f32 %v1486, 1.442695
        %v1582 = vpow.pop %v1581
        %v1583 = vmul.f32 %v1487, 1.442695
        %v1584 = vpow.pop %v1583
        %v1585 = vmul.f32 %v1488, 1.442695
        %v1586 = vpow.pop %v1585
        %v1587 = vmul.f32 %v1489, 1.442695
        %v1588 = vpow.pop %v1587
        %v1589 = vmul.f32 %v1490, 1.442695
        %v1590 = vpow.pop %v1589
        %v1591 = vmul.f32 %v1491, 1.442695
        %v1592 = vpow.pop %v1591
        %v1593 = vmul.f32 %v1492, 1.442695
        %v1594 = vpow.pop %v1593
        %v1595 = vmul.f32 %v1493, 1.442695
        %v1596 = vpow.pop %v1595
        %v1597 = vmul.f32 %v1494, 1.442695
        %v1598 = vpow.pop %v1597
        %v1599 = vmul.f32 %v1495, 1.442695
        %v1600 = vpow.pop %v1599
        %v1601 = vmul.f32 %v1496, 1.442695
        %v1602 = vpow.pop %v1601
        %v1603 = vmul.f32 %v1497, 1.442695
        %v1604 = vpow.pop %v1603
        %v1605 = vmul.f32 %v1498, 1.442695
        %v1606 = vpow.pop %v1605
        %v1607 = vmul.f32 %v1499, 1.442695
        %v1608 = vpow.pop %v1607
        %v1609 = vmul.f32 %v1500, 1.442695
        %v1610 = vpow.pop %v1609
        %v1611 = vmul.f32 %v1501, 1.442695
        %v1612 = vpow.pop %v1611
        %v1613 = vmul.f32 %v1502, 1.442695
        %v1614 = vpow.pop %v1613
        %v1615 = vmul.f32 %v1503, 1.442695
        %v1616 = vpow.pop %v1615
        %v1617 = vmul.f32 %v1504, 1.442695
        %v1618 = vpow.pop %v1617
        %v1619 = vmul.f32 %v1505, 1.442695
        %v1620 = vpow.pop %v1619
        %v1621 = vmul.f32 %v1506, 1.442695
        %v1622 = vpow.pop %v1621
        %v1623 = vmul.f32 %v1507, 1.442695
        %v1624 = vpow.pop %v1623
        %v1625 = vmul.f32 %v1508, 1.442695
        %v1626 = vpow.pop %v1625
        %v1627 = vmul.f32 %v1509, 1.442695
        %v1628 = vpow.pop %v1627
        %v1629 = vmul.f32 %v1510, 1.442695
        %v1630 = vpow.pop %v1629
        %v1631 = vmul.f32 %v1511, 1.442695
        %v1632 = vpow.pop %v1631
        %v1633 = vmul.f32 %v1512, 1.442695
        %v1634 = vpow.pop %v1633
        %v1635 = vmul.f32 %v1513, 1.442695
        %v1636 = vpow.pop %v1635
        %v1637 = vmul.f32 %v1514, 1.442695
        %v1638 = vpow.pop %v1637
        %v1639 = vmul.f32 %v1515, 1.442695
        %v1640 = vpow.pop %v1639
        %v1641 = vmul.f32 %v1516, 1.442695
        %v1642 = vpow.pop %v1641
        %v1643 = vmul.f32 %v1517, 1.442695
        %v1644 = vpow.pop %v1643
        %v1645 = vmul.f32 %v1518, 1.442695
        %v1646 = vpow.pop %v1645
        %v1647 = vadd.f32 %v1520, 1.0
        %v1648 = vadd.f32 %v1522, 1.0
        %v1649 = vadd.f32 %v1524, 1.0
        %v1650 = vadd.f32 %v1526, 1.0
        %v1651 = vadd.f32 %v1528, 1.0
        %v1652 = vadd.f32 %v1530, 1.0
        %v1653 = vadd.f32 %v1532, 1.0
        %v1654 = vadd.f32 %v1534, 1.0
        %v1655 = vadd.f32 %v1536, 1.0
        %v1656 = vadd.f32 %v1538, 1.0
        %v1657 = vadd.f32 %v1540, 1.0
        %v1658 = vadd.f32 %v1542, 1.0
        %v1659 = vadd.f32 %v1544, 1.0
        %v1660 = vadd.f32 %v1546, 1.0
        %v1661 = vadd.f32 %v1548, 1.0
        %v1662 = vadd.f32 %v1550, 1.0
        %v1663 = vadd.f32 %v1552, 1.0
        %v1664 = vadd.f32 %v1554, 1.0
        %v1665 = vadd.f32 %v1556, 1.0
        %v1666 = vadd.f32 %v1558, 1.0
        %v1667 = vadd.f32 %v1560, 1.0
        %v1668 = vadd.f32 %v1562, 1.0
        %v1669 = vadd.f32 %v1564, 1.0
        %v1670 = vadd.f32 %v1566, 1.0
        %v1671 = vadd.f32 %v1568, 1.0
        %v1672 = vadd.f32 %v1570, 1.0
        %v1673 = vadd.f32 %v1572, 1.0
        %v1674 = vadd.f32 %v1574, 1.0
        %v1675 = vadd.f32 %v1576, 1.0
        %v1676 = vadd.f32 %v1578, 1.0
        %v1677 = vadd.f32 %v1580, 1.0
        %v1678 = vadd.f32 %v1582, 1.0
        %v1679 = vadd.f32 %v1584, 1.0
        %v1680 = vadd.f32 %v1586, 1.0
        %v1681 = vadd.f32 %v1588, 1.0
        %v1682 = vadd.f32 %v1590, 1.0
        %v1683 = vadd.f32 %v1592, 1.0
        %v1684 = vadd.f32 %v1594, 1.0
        %v1685 = vadd.f32 %v1596, 1.0
        %v1686 = vadd.f32 %v1598, 1.0
        %v1687 = vadd.f32 %v1600, 1.0
        %v1688 = vadd.f32 %v1602, 1.0
        %v1689 = vadd.f32 %v1604, 1.0
        %v1690 = vadd.f32 %v1606, 1.0
        %v1691 = vadd.f32 %v1608, 1.0
        %v1692 = vadd.f32 %v1610, 1.0
        %v1693 = vadd.f32 %v1612, 1.0
        %v1694 = vadd.f32 %v1614, 1.0
        %v1695 = vadd.f32 %v1616, 1.0
        %v1696 = vadd.f32 %v1618, 1.0
        %v1697 = vadd.f32 %v1620, 1.0
        %v1698 = vadd.f32 %v1622, 1.0
        %v1699 = vadd.f32 %v1624, 1.0
        %v1700 = vadd.f32 %v1626, 1.0
        %v1701 = vadd.f32 %v1628, 1.0
        %v1702 = vadd.f32 %v1630, 1.0
        %v1703 = vadd.f32 %v1632, 1.0
        %v1704 = vadd.f32 %v1634, 1.0
        %v1705 = vadd.f32 %v1636, 1.0
        %v1706 = vadd.f32 %v1638, 1.0
        %v1707 = vadd.f32 %v1640, 1.0
        %v1708 = vadd.f32 %v1642, 1.0
        %v1709 = vadd.f32 %v1644, 1.0
        %v1710 = vadd.f32 %v1646, 1.0
        %v1711 = vrcp.pop %v1647
        %v1712 = vmul.f32 %v1647, %v1711
        %v1713 = vsub.f32 1.0, %v1712
        %v1714 = vmul.f32 %v1711, %v1713
        %v1715 = vadd.f32 %v1711, %v1714
        %vm1716 = vweird.f32 %v1647
        %vm1717 = vweird.f32 %v1711
        %vm1718 = vmor %vm1716, %vm1717
        %v1719 = vsel %vm1718, %v1711, %v1715
        %v1720 = vand.u32 2147483647, %v1647
        %vm1721 = vcmp.eq.f32.partialorder %v1720, 8.507059e+37
        %v1722 = vand.u32 %v1647, 2147483648
        %v1723 = vor.u32 1.1754944e-38, %v1722
        %v1724 = vsel %vm1721, %v1723, %v1719
        %v1725 = vmul.f32 1.0, %v1724
        %v1726 = vrcp.pop %v1648
        %v1727 = vmul.f32 %v1648, %v1726
        %v1728 = vsub.f32 1.0, %v1727
        %v1729 = vmul.f32 %v1726, %v1728
        %v1730 = vadd.f32 %v1726, %v1729
        %vm1731 = vweird.f32 %v1648
        %vm1732 = vweird.f32 %v1726
        %vm1733 = vmor %vm1731, %vm1732
        %v1734 = vsel %vm1733, %v1726, %v1730
        %v1735 = vand.u32 2147483647, %v1648
        %vm1736 = vcmp.eq.f32.partialorder %v1735, 8.507059e+37
        %v1737 = vand.u32 %v1648, 2147483648
        %v1738 = vor.u32 1.1754944e-38, %v1737
        %v1739 = vsel %vm1736, %v1738, %v1734
        %v1740 = vmul.f32 1.0, %v1739
        %v1741 = vrcp.pop %v1649
        %v1742 = vmul.f32 %v1649, %v1741
        %v1743 = vsub.f32 1.0, %v1742
        %v1744 = vmul.f32 %v1741, %v1743
        %v1745 = vadd.f32 %v1741, %v1744
        %vm1746 = vweird.f32 %v1649
        %vm1747 = vweird.f32 %v1741
        %vm1748 = vmor %vm1746, %vm1747
        %v1749 = vsel %vm1748, %v1741, %v1745
        %v1750 = vand.u32 2147483647, %v1649
        %vm1751 = vcmp.eq.f32.partialorder %v1750, 8.507059e+37
        %v1752 = vand.u32 %v1649, 2147483648
        %v1753 = vor.u32 1.1754944e-38, %v1752
        %v1754 = vsel %vm1751, %v1753, %v1749
        %v1755 = vmul.f32 1.0, %v1754
        %v1756 = vrcp.pop %v1650
        %v1757 = vmul.f32 %v1650, %v1756
        %v1758 = vsub.f32 1.0, %v1757
        %v1759 = vmul.f32 %v1756, %v1758
        %v1760 = vadd.f32 %v1756, %v1759
        %vm1761 = vweird.f32 %v1650
        %vm1762 = vweird.f32 %v1756
        %vm1763 = vmor %vm1761, %vm1762
        %v1764 = vsel %vm1763, %v1756, %v1760
        %v1765 = vand.u32 2147483647, %v1650
        %vm1766 = vcmp.eq.f32.partialorder %v1765, 8.507059e+37
        %v1767 = vand.u32 %v1650, 2147483648
        %v1768 = vor.u32 1.1754944e-38, %v1767
        %v1769 = vsel %vm1766, %v1768, %v1764
        %v1770 = vmul.f32 1.0, %v1769
        %v1771 = vrcp.pop %v1651
        %v1772 = vmul.f32 %v1651, %v1771
        %v1773 = vsub.f32 1.0, %v1772
        %v1774 = vmul.f32 %v1771, %v1773
        %v1775 = vadd.f32 %v1771, %v1774
        %vm1776 = vweird.f32 %v1651
        %vm1777 = vweird.f32 %v1771
        %vm1778 = vmor %vm1776, %vm1777
        %v1779 = vsel %vm1778, %v1771, %v1775
        %v1780 = vand.u32 2147483647, %v1651
        %vm1781 = vcmp.eq.f32.partialorder %v1780, 8.507059e+37
        %v1782 = vand.u32 %v1651, 2147483648
        %v1783 = vor.u32 1.1754944e-38, %v1782
        %v1784 = vsel %vm1781, %v1783, %v1779
        %v1785 = vmul.f32 1.0, %v1784
        %v1786 = vrcp.pop %v1652
        %v1787 = vmul.f32 %v1652, %v1786
        %v1788 = vsub.f32 1.0, %v1787
        %v1789 = vmul.f32 %v1786, %v1788
        %v1790 = vadd.f32 %v1786, %v1789
        %vm1791 = vweird.f32 %v1652
        %vm1792 = vweird.f32 %v1786
        %vm1793 = vmor %vm1791, %vm1792
        %v1794 = vsel %vm1793, %v1786, %v1790
        %v1795 = vand.u32 2147483647, %v1652
        %vm1796 = vcmp.eq.f32.partialorder %v1795, 8.507059e+37
        %v1797 = vand.u32 %v1652, 2147483648
        %v1798 = vor.u32 1.1754944e-38, %v1797
        %v1799 = vsel %vm1796, %v1798, %v1794
        %v1800 = vmul.f32 1.0, %v1799
        %v1801 = vrcp.pop %v1653
        %v1802 = vmul.f32 %v1653, %v1801
        %v1803 = vsub.f32 1.0, %v1802
        %v1804 = vmul.f32 %v1801, %v1803
        %v1805 = vadd.f32 %v1801, %v1804
        %vm1806 = vweird.f32 %v1653
        %vm1807 = vweird.f32 %v1801
        %vm1808 = vmor %vm1806, %vm1807
        %v1809 = vsel %vm1808, %v1801, %v1805
        %v1810 = vand.u32 2147483647, %v1653
        %vm1811 = vcmp.eq.f32.partialorder %v1810, 8.507059e+37
        %v1812 = vand.u32 %v1653, 2147483648
        %v1813 = vor.u32 1.1754944e-38, %v1812
        %v1814 = vsel %vm1811, %v1813, %v1809
        %v1815 = vmul.f32 1.0, %v1814
        %v1816 = vrcp.pop %v1654
        %v1817 = vmul.f32 %v1654, %v1816
        %v1818 = vsub.f32 1.0, %v1817
        %v1819 = vmul.f32 %v1816, %v1818
        %v1820 = vadd.f32 %v1816, %v1819
        %vm1821 = vweird.f32 %v1654
        %vm1822 = vweird.f32 %v1816
        %vm1823 = vmor %vm1821, %vm1822
        %v1824 = vsel %vm1823, %v1816, %v1820
        %v1825 = vand.u32 2147483647, %v1654
        %vm1826 = vcmp.eq.f32.partialorder %v1825, 8.507059e+37
        %v1827 = vand.u32 %v1654, 2147483648
        %v1828 = vor.u32 1.1754944e-38, %v1827
        %v1829 = vsel %vm1826, %v1828, %v1824
        %v1830 = vmul.f32 1.0, %v1829
        %v1831 = vrcp.pop %v1655
        %v1832 = vmul.f32 %v1655, %v1831
        %v1833 = vsub.f32 1.0, %v1832
        %v1834 = vmul.f32 %v1831, %v1833
        %v1835 = vadd.f32 %v1831, %v1834
        %vm1836 = vweird.f32 %v1655
        %vm1837 = vweird.f32 %v1831
        %vm1838 = vmor %vm1836, %vm1837
        %v1839 = vsel %vm1838, %v1831, %v1835
        %v1840 = vand.u32 2147483647, %v1655
        %vm1841 = vcmp.eq.f32.partialorder %v1840, 8.507059e+37
        %v1842 = vand.u32 %v1655, 2147483648
        %v1843 = vor.u32 1.1754944e-38, %v1842
        %v1844 = vsel %vm1841, %v1843, %v1839
        %v1845 = vmul.f32 1.0, %v1844
        %v1846 = vrcp.pop %v1656
        %v1847 = vmul.f32 %v1656, %v1846
        %v1848 = vsub.f32 1.0, %v1847
        %v1849 = vmul.f32 %v1846, %v1848
        %v1850 = vadd.f32 %v1846, %v1849
        %vm1851 = vweird.f32 %v1656
        %vm1852 = vweird.f32 %v1846
        %vm1853 = vmor %vm1851, %vm1852
        %v1854 = vsel %vm1853, %v1846, %v1850
        %v1855 = vand.u32 2147483647, %v1656
        %vm1856 = vcmp.eq.f32.partialorder %v1855, 8.507059e+37
        %v1857 = vand.u32 %v1656, 2147483648
        %v1858 = vor.u32 1.1754944e-38, %v1857
        %v1859 = vsel %vm1856, %v1858, %v1854
        %v1860 = vmul.f32 1.0, %v1859
        %v1861 = vrcp.pop %v1657
        %v1862 = vmul.f32 %v1657, %v1861
        %v1863 = vsub.f32 1.0, %v1862
        %v1864 = vmul.f32 %v1861, %v1863
        %v1865 = vadd.f32 %v1861, %v1864
        %vm1866 = vweird.f32 %v1657
        %vm1867 = vweird.f32 %v1861
        %vm1868 = vmor %vm1866, %vm1867
        %v1869 = vsel %vm1868, %v1861, %v1865
        %v1870 = vand.u32 2147483647, %v1657
        %vm1871 = vcmp.eq.f32.partialorder %v1870, 8.507059e+37
        %v1872 = vand.u32 %v1657, 2147483648
        %v1873 = vor.u32 1.1754944e-38, %v1872
        %v1874 = vsel %vm1871, %v1873, %v1869
        %v1875 = vmul.f32 1.0, %v1874
        %v1876 = vrcp.pop %v1658
        %v1877 = vmul.f32 %v1658, %v1876
        %v1878 = vsub.f32 1.0, %v1877
        %v1879 = vmul.f32 %v1876, %v1878
        %v1880 = vadd.f32 %v1876, %v1879
        %vm1881 = vweird.f32 %v1658
        %vm1882 = vweird.f32 %v1876
        %vm1883 = vmor %vm1881, %vm1882
        %v1884 = vsel %vm1883, %v1876, %v1880
        %v1885 = vand.u32 2147483647, %v1658
        %vm1886 = vcmp.eq.f32.partialorder %v1885, 8.507059e+37
        %v1887 = vand.u32 %v1658, 2147483648
        %v1888 = vor.u32 1.1754944e-38, %v1887
        %v1889 = vsel %vm1886, %v1888, %v1884
        %v1890 = vmul.f32 1.0, %v1889
        %v1891 = vrcp.pop %v1659
        %v1892 = vmul.f32 %v1659, %v1891
        %v1893 = vsub.f32 1.0, %v1892
        %v1894 = vmul.f32 %v1891, %v1893
        %v1895 = vadd.f32 %v1891, %v1894
        %vm1896 = vweird.f32 %v1659
        %vm1897 = vweird.f32 %v1891
        %vm1898 = vmor %vm1896, %vm1897
        %v1899 = vsel %vm1898, %v1891, %v1895
        %v1900 = vand.u32 2147483647, %v1659
        %vm1901 = vcmp.eq.f32.partialorder %v1900, 8.507059e+37
        %v1902 = vand.u32 %v1659, 2147483648
        %v1903 = vor.u32 1.1754944e-38, %v1902
        %v1904 = vsel %vm1901, %v1903, %v1899
        %v1905 = vmul.f32 1.0, %v1904
        %v1906 = vrcp.pop %v1660
        %v1907 = vmul.f32 %v1660, %v1906
        %v1908 = vsub.f32 1.0, %v1907
        %v1909 = vmul.f32 %v1906, %v1908
        %v1910 = vadd.f32 %v1906, %v1909
        %vm1911 = vweird.f32 %v1660
        %vm1912 = vweird.f32 %v1906
        %vm1913 = vmor %vm1911, %vm1912
        %v1914 = vsel %vm1913, %v1906, %v1910
        %v1915 = vand.u32 2147483647, %v1660
        %vm1916 = vcmp.eq.f32.partialorder %v1915, 8.507059e+37
        %v1917 = vand.u32 %v1660, 2147483648
        %v1918 = vor.u32 1.1754944e-38, %v1917
        %v1919 = vsel %vm1916, %v1918, %v1914
        %v1920 = vmul.f32 1.0, %v1919
        %v1921 = vrcp.pop %v1661
        %v1922 = vmul.f32 %v1661, %v1921
        %v1923 = vsub.f32 1.0, %v1922
        %v1924 = vmul.f32 %v1921, %v1923
        %v1925 = vadd.f32 %v1921, %v1924
        %vm1926 = vweird.f32 %v1661
        %vm1927 = vweird.f32 %v1921
        %vm1928 = vmor %vm1926, %vm1927
        %v1929 = vsel %vm1928, %v1921, %v1925
        %v1930 = vand.u32 2147483647, %v1661
        %vm1931 = vcmp.eq.f32.partialorder %v1930, 8.507059e+37
        %v1932 = vand.u32 %v1661, 2147483648
        %v1933 = vor.u32 1.1754944e-38, %v1932
        %v1934 = vsel %vm1931, %v1933, %v1929
        %v1935 = vmul.f32 1.0, %v1934
        %v1936 = vrcp.pop %v1662
        %v1937 = vmul.f32 %v1662, %v1936
        %v1938 = vsub.f32 1.0, %v1937
        %v1939 = vmul.f32 %v1936, %v1938
        %v1940 = vadd.f32 %v1936, %v1939
        %vm1941 = vweird.f32 %v1662
        %vm1942 = vweird.f32 %v1936
        %vm1943 = vmor %vm1941, %vm1942
        %v1944 = vsel %vm1943, %v1936, %v1940
        %v1945 = vand.u32 2147483647, %v1662
        %vm1946 = vcmp.eq.f32.partialorder %v1945, 8.507059e+37
        %v1947 = vand.u32 %v1662, 2147483648
        %v1948 = vor.u32 1.1754944e-38, %v1947
        %v1949 = vsel %vm1946, %v1948, %v1944
        %v1950 = vmul.f32 1.0, %v1949
        %v1951 = vrcp.pop %v1663
        %v1952 = vmul.f32 %v1663, %v1951
        %v1953 = vsub.f32 1.0, %v1952
        %v1954 = vmul.f32 %v1951, %v1953
        %v1955 = vadd.f32 %v1951, %v1954
        %vm1956 = vweird.f32 %v1663
        %vm1957 = vweird.f32 %v1951
        %vm1958 = vmor %vm1956, %vm1957
        %v1959 = vsel %vm1958, %v1951, %v1955
        %v1960 = vand.u32 2147483647, %v1663
        %vm1961 = vcmp.eq.f32.partialorder %v1960, 8.507059e+37
        %v1962 = vand.u32 %v1663, 2147483648
        %v1963 = vor.u32 1.1754944e-38, %v1962
        %v1964 = vsel %vm1961, %v1963, %v1959
        %v1965 = vmul.f32 1.0, %v1964
        %v1966 = vrcp.pop %v1664
        %v1967 = vmul.f32 %v1664, %v1966
        %v1968 = vsub.f32 1.0, %v1967
        %v1969 = vmul.f32 %v1966, %v1968
        %v1970 = vadd.f32 %v1966, %v1969
        %vm1971 = vweird.f32 %v1664
        %vm1972 = vweird.f32 %v1966
        %vm1973 = vmor %vm1971, %vm1972
        %v1974 = vsel %vm1973, %v1966, %v1970
        %v1975 = vand.u32 2147483647, %v1664
        %vm1976 = vcmp.eq.f32.partialorder %v1975, 8.507059e+37
        %v1977 = vand.u32 %v1664, 2147483648
        %v1978 = vor.u32 1.1754944e-38, %v1977
        %v1979 = vsel %vm1976, %v1978, %v1974
        %v1980 = vmul.f32 1.0, %v1979
        %v1981 = vrcp.pop %v1665
        %v1982 = vmul.f32 %v1665, %v1981
        %v1983 = vsub.f32 1.0, %v1982
        %v1984 = vmul.f32 %v1981, %v1983
        %v1985 = vadd.f32 %v1981, %v1984
        %vm1986 = vweird.f32 %v1665
        %vm1987 = vweird.f32 %v1981
        %vm1988 = vmor %vm1986, %vm1987
        %v1989 = vsel %vm1988, %v1981, %v1985
        %v1990 = vand.u32 2147483647, %v1665
        %vm1991 = vcmp.eq.f32.partialorder %v1990, 8.507059e+37
        %v1992 = vand.u32 %v1665, 2147483648
        %v1993 = vor.u32 1.1754944e-38, %v1992
        %v1994 = vsel %vm1991, %v1993, %v1989
        %v1995 = vmul.f32 1.0, %v1994
        %v1996 = vrcp.pop %v1666
        %v1997 = vmul.f32 %v1666, %v1996
        %v1998 = vsub.f32 1.0, %v1997
        %v1999 = vmul.f32 %v1996, %v1998
        %v2000 = vadd.f32 %v1996, %v1999
        %vm2001 = vweird.f32 %v1666
        %vm2002 = vweird.f32 %v1996
        %vm2003 = vmor %vm2001, %vm2002
        %v2004 = vsel %vm2003, %v1996, %v2000
        %v2005 = vand.u32 2147483647, %v1666
        %vm2006 = vcmp.eq.f32.partialorder %v2005, 8.507059e+37
        %v2007 = vand.u32 %v1666, 2147483648
        %v2008 = vor.u32 1.1754944e-38, %v2007
        %v2009 = vsel %vm2006, %v2008, %v2004
        %v2010 = vmul.f32 1.0, %v2009
        %v2011 = vrcp.pop %v1667
        %v2012 = vmul.f32 %v1667, %v2011
        %v2013 = vsub.f32 1.0, %v2012
        %v2014 = vmul.f32 %v2011, %v2013
        %v2015 = vadd.f32 %v2011, %v2014
        %vm2016 = vweird.f32 %v1667
        %vm2017 = vweird.f32 %v2011
        %vm2018 = vmor %vm2016, %vm2017
        %v2019 = vsel %vm2018, %v2011, %v2015
        %v2020 = vand.u32 2147483647, %v1667
        %vm2021 = vcmp.eq.f32.partialorder %v2020, 8.507059e+37
        %v2022 = vand.u32 %v1667, 2147483648
        %v2023 = vor.u32 1.1754944e-38, %v2022
        %v2024 = vsel %vm2021, %v2023, %v2019
        %v2025 = vmul.f32 1.0, %v2024
        %v2026 = vrcp.pop %v1668
        %v2027 = vmul.f32 %v1668, %v2026
        %v2028 = vsub.f32 1.0, %v2027
        %v2029 = vmul.f32 %v2026, %v2028
        %v2030 = vadd.f32 %v2026, %v2029
        %vm2031 = vweird.f32 %v1668
        %vm2032 = vweird.f32 %v2026
        %vm2033 = vmor %vm2031, %vm2032
        %v2034 = vsel %vm2033, %v2026, %v2030
        %v2035 = vand.u32 2147483647, %v1668
        %vm2036 = vcmp.eq.f32.partialorder %v2035, 8.507059e+37
        %v2037 = vand.u32 %v1668, 2147483648
        %v2038 = vor.u32 1.1754944e-38, %v2037
        %v2039 = vsel %vm2036, %v2038, %v2034
        %v2040 = vmul.f32 1.0, %v2039
        %v2041 = vrcp.pop %v1669
        %v2042 = vmul.f32 %v1669, %v2041
        %v2043 = vsub.f32 1.0, %v2042
        %v2044 = vmul.f32 %v2041, %v2043
        %v2045 = vadd.f32 %v2041, %v2044
        %vm2046 = vweird.f32 %v1669
        %vm2047 = vweird.f32 %v2041
        %vm2048 = vmor %vm2046, %vm2047
        %v2049 = vsel %vm2048, %v2041, %v2045
        %v2050 = vand.u32 2147483647, %v1669
        %vm2051 = vcmp.eq.f32.partialorder %v2050, 8.507059e+37
        %v2052 = vand.u32 %v1669, 2147483648
        %v2053 = vor.u32 1.1754944e-38, %v2052
        %v2054 = vsel %vm2051, %v2053, %v2049
        %v2055 = vmul.f32 1.0, %v2054
        %v2056 = vrcp.pop %v1670
        %v2057 = vmul.f32 %v1670, %v2056
        %v2058 = vsub.f32 1.0, %v2057
        %v2059 = vmul.f32 %v2056, %v2058
        %v2060 = vadd.f32 %v2056, %v2059
        %vm2061 = vweird.f32 %v1670
        %vm2062 = vweird.f32 %v2056
        %vm2063 = vmor %vm2061, %vm2062
        %v2064 = vsel %vm2063, %v2056, %v2060
        %v2065 = vand.u32 2147483647, %v1670
        %vm2066 = vcmp.eq.f32.partialorder %v2065, 8.507059e+37
        %v2067 = vand.u32 %v1670, 2147483648
        %v2068 = vor.u32 1.1754944e-38, %v2067
        %v2069 = vsel %vm2066, %v2068, %v2064
        %v2070 = vmul.f32 1.0, %v2069
        %v2071 = vrcp.pop %v1671
        %v2072 = vmul.f32 %v1671, %v2071
        %v2073 = vsub.f32 1.0, %v2072
        %v2074 = vmul.f32 %v2071, %v2073
        %v2075 = vadd.f32 %v2071, %v2074
        %vm2076 = vweird.f32 %v1671
        %vm2077 = vweird.f32 %v2071
        %vm2078 = vmor %vm2076, %vm2077
        %v2079 = vsel %vm2078, %v2071, %v2075
        %v2080 = vand.u32 2147483647, %v1671
        %vm2081 = vcmp.eq.f32.partialorder %v2080, 8.507059e+37
        %v2082 = vand.u32 %v1671, 2147483648
        %v2083 = vor.u32 1.1754944e-38, %v2082
        %v2084 = vsel %vm2081, %v2083, %v2079
        %v2085 = vmul.f32 1.0, %v2084
        %v2086 = vrcp.pop %v1672
        %v2087 = vmul.f32 %v1672, %v2086
        %v2088 = vsub.f32 1.0, %v2087
        %v2089 = vmul.f32 %v2086, %v2088
        %v2090 = vadd.f32 %v2086, %v2089
        %vm2091 = vweird.f32 %v1672
        %vm2092 = vweird.f32 %v2086
        %vm2093 = vmor %vm2091, %vm2092
        %v2094 = vsel %vm2093, %v2086, %v2090
        %v2095 = vand.u32 2147483647, %v1672
        %vm2096 = vcmp.eq.f32.partialorder %v2095, 8.507059e+37
        %v2097 = vand.u32 %v1672, 2147483648
        %v2098 = vor.u32 1.1754944e-38, %v2097
        %v2099 = vsel %vm2096, %v2098, %v2094
        %v2100 = vmul.f32 1.0, %v2099
        %v2101 = vrcp.pop %v1673
        %v2102 = vmul.f32 %v1673, %v2101
        %v2103 = vsub.f32 1.0, %v2102
        %v2104 = vmul.f32 %v2101, %v2103
        %v2105 = vadd.f32 %v2101, %v2104
        %vm2106 = vweird.f32 %v1673
        %vm2107 = vweird.f32 %v2101
        %vm2108 = vmor %vm2106, %vm2107
        %v2109 = vsel %vm2108, %v2101, %v2105
        %v2110 = vand.u32 2147483647, %v1673
        %vm2111 = vcmp.eq.f32.partialorder %v2110, 8.507059e+37
        %v2112 = vand.u32 %v1673, 2147483648
        %v2113 = vor.u32 1.1754944e-38, %v2112
        %v2114 = vsel %vm2111, %v2113, %v2109
        %v2115 = vmul.f32 1.0, %v2114
        %v2116 = vrcp.pop %v1674
        %v2117 = vmul.f32 %v1674, %v2116
        %v2118 = vsub.f32 1.0, %v2117
        %v2119 = vmul.f32 %v2116, %v2118
        %v2120 = vadd.f32 %v2116, %v2119
        %vm2121 = vweird.f32 %v1674
        %vm2122 = vweird.f32 %v2116
        %vm2123 = vmor %vm2121, %vm2122
        %v2124 = vsel %vm2123, %v2116, %v2120
        %v2125 = vand.u32 2147483647, %v1674
        %vm2126 = vcmp.eq.f32.partialorder %v2125, 8.507059e+37
        %v2127 = vand.u32 %v1674, 2147483648
        %v2128 = vor.u32 1.1754944e-38, %v2127
        %v2129 = vsel %vm2126, %v2128, %v2124
        %v2130 = vmul.f32 1.0, %v2129
        %v2131 = vrcp.pop %v1675
        %v2132 = vmul.f32 %v1675, %v2131
        %v2133 = vsub.f32 1.0, %v2132
        %v2134 = vmul.f32 %v2131, %v2133
        %v2135 = vadd.f32 %v2131, %v2134
        %vm2136 = vweird.f32 %v1675
        %vm2137 = vweird.f32 %v2131
        %vm2138 = vmor %vm2136, %vm2137
        %v2139 = vsel %vm2138, %v2131, %v2135
        %v2140 = vand.u32 2147483647, %v1675
        %vm2141 = vcmp.eq.f32.partialorder %v2140, 8.507059e+37
        %v2142 = vand.u32 %v1675, 2147483648
        %v2143 = vor.u32 1.1754944e-38, %v2142
        %v2144 = vsel %vm2141, %v2143, %v2139
        %v2145 = vmul.f32 1.0, %v2144
        %v2146 = vrcp.pop %v1676
        %v2147 = vmul.f32 %v1676, %v2146
        %v2148 = vsub.f32 1.0, %v2147
        %v2149 = vmul.f32 %v2146, %v2148
        %v2150 = vadd.f32 %v2146, %v2149
        %vm2151 = vweird.f32 %v1676
        %vm2152 = vweird.f32 %v2146
        %vm2153 = vmor %vm2151, %vm2152
        %v2154 = vsel %vm2153, %v2146, %v2150
        %v2155 = vand.u32 2147483647, %v1676
        %vm2156 = vcmp.eq.f32.partialorder %v2155, 8.507059e+37
        %v2157 = vand.u32 %v1676, 2147483648
        %v2158 = vor.u32 1.1754944e-38, %v2157
        %v2159 = vsel %vm2156, %v2158, %v2154
        %v2160 = vmul.f32 1.0, %v2159
        %v2161 = vrcp.pop %v1677
        %v2162 = vmul.f32 %v1677, %v2161
        %v2163 = vsub.f32 1.0, %v2162
        %v2164 = vmul.f32 %v2161, %v2163
        %v2165 = vadd.f32 %v2161, %v2164
        %vm2166 = vweird.f32 %v1677
        %vm2167 = vweird.f32 %v2161
        %vm2168 = vmor %vm2166, %vm2167
        %v2169 = vsel %vm2168, %v2161, %v2165
        %v2170 = vand.u32 2147483647, %v1677
        %vm2171 = vcmp.eq.f32.partialorder %v2170, 8.507059e+37
        %v2172 = vand.u32 %v1677, 2147483648
        %v2173 = vor.u32 1.1754944e-38, %v2172
        %v2174 = vsel %vm2171, %v2173, %v2169
        %v2175 = vmul.f32 1.0, %v2174
        %v2176 = vrcp.pop %v1678
        %v2177 = vmul.f32 %v1678, %v2176
        %v2178 = vsub.f32 1.0, %v2177
        %v2179 = vmul.f32 %v2176, %v2178
        %v2180 = vadd.f32 %v2176, %v2179
        %vm2181 = vweird.f32 %v1678
        %vm2182 = vweird.f32 %v2176
        %vm2183 = vmor %vm2181, %vm2182
        %v2184 = vsel %vm2183, %v2176, %v2180
        %v2185 = vand.u32 2147483647, %v1678
        %vm2186 = vcmp.eq.f32.partialorder %v2185, 8.507059e+37
        %v2187 = vand.u32 %v1678, 2147483648
        %v2188 = vor.u32 1.1754944e-38, %v2187
        %v2189 = vsel %vm2186, %v2188, %v2184
        %v2190 = vmul.f32 1.0, %v2189
        %v2191 = vrcp.pop %v1679
        %v2192 = vmul.f32 %v1679, %v2191
        %v2193 = vsub.f32 1.0, %v2192
        %v2194 = vmul.f32 %v2191, %v2193
        %v2195 = vadd.f32 %v2191, %v2194
        %vm2196 = vweird.f32 %v1679
        %vm2197 = vweird.f32 %v2191
        %vm2198 = vmor %vm2196, %vm2197
        %v2199 = vsel %vm2198, %v2191, %v2195
        %v2200 = vand.u32 2147483647, %v1679
        %vm2201 = vcmp.eq.f32.partialorder %v2200, 8.507059e+37
        %v2202 = vand.u32 %v1679, 2147483648
        %v2203 = vor.u32 1.1754944e-38, %v2202
        %v2204 = vsel %vm2201, %v2203, %v2199
        %v2205 = vmul.f32 1.0, %v2204
        %v2206 = vrcp.pop %v1680
        %v2207 = vmul.f32 %v1680, %v2206
        %v2208 = vsub.f32 1.0, %v2207
        %v2209 = vmul.f32 %v2206, %v2208
        %v2210 = vadd.f32 %v2206, %v2209
        %vm2211 = vweird.f32 %v1680
        %vm2212 = vweird.f32 %v2206
        %vm2213 = vmor %vm2211, %vm2212
        %v2214 = vsel %vm2213, %v2206, %v2210
        %v2215 = vand.u32 2147483647, %v1680
        %vm2216 = vcmp.eq.f32.partialorder %v2215, 8.507059e+37
        %v2217 = vand.u32 %v1680, 2147483648
        %v2218 = vor.u32 1.1754944e-38, %v2217
        %v2219 = vsel %vm2216, %v2218, %v2214
        %v2220 = vmul.f32 1.0, %v2219
        %v2221 = vrcp.pop %v1681
        %v2222 = vmul.f32 %v1681, %v2221
        %v2223 = vsub.f32 1.0, %v2222
        %v2224 = vmul.f32 %v2221, %v2223
        %v2225 = vadd.f32 %v2221, %v2224
        %vm2226 = vweird.f32 %v1681
        %vm2227 = vweird.f32 %v2221
        %vm2228 = vmor %vm2226, %vm2227
        %v2229 = vsel %vm2228, %v2221, %v2225
        %v2230 = vand.u32 2147483647, %v1681
        %vm2231 = vcmp.eq.f32.partialorder %v2230, 8.507059e+37
        %v2232 = vand.u32 %v1681, 2147483648
        %v2233 = vor.u32 1.1754944e-38, %v2232
        %v2234 = vsel %vm2231, %v2233, %v2229
        %v2235 = vmul.f32 1.0, %v2234
        %v2236 = vrcp.pop %v1682
        %v2237 = vmul.f32 %v1682, %v2236
        %v2238 = vsub.f32 1.0, %v2237
        %v2239 = vmul.f32 %v2236, %v2238
        %v2240 = vadd.f32 %v2236, %v2239
        %vm2241 = vweird.f32 %v1682
        %vm2242 = vweird.f32 %v2236
        %vm2243 = vmor %vm2241, %vm2242
        %v2244 = vsel %vm2243, %v2236, %v2240
        %v2245 = vand.u32 2147483647, %v1682
        %vm2246 = vcmp.eq.f32.partialorder %v2245, 8.507059e+37
        %v2247 = vand.u32 %v1682, 2147483648
        %v2248 = vor.u32 1.1754944e-38, %v2247
        %v2249 = vsel %vm2246, %v2248, %v2244
        %v2250 = vmul.f32 1.0, %v2249
        %v2251 = vrcp.pop %v1683
        %v2252 = vmul.f32 %v1683, %v2251
        %v2253 = vsub.f32 1.0, %v2252
        %v2254 = vmul.f32 %v2251, %v2253
        %v2255 = vadd.f32 %v2251, %v2254
        %vm2256 = vweird.f32 %v1683
        %vm2257 = vweird.f32 %v2251
        %vm2258 = vmor %vm2256, %vm2257
        %v2259 = vsel %vm2258, %v2251, %v2255
        %v2260 = vand.u32 2147483647, %v1683
        %vm2261 = vcmp.eq.f32.partialorder %v2260, 8.507059e+37
        %v2262 = vand.u32 %v1683, 2147483648
        %v2263 = vor.u32 1.1754944e-38, %v2262
        %v2264 = vsel %vm2261, %v2263, %v2259
        %v2265 = vmul.f32 1.0, %v2264
        %v2266 = vrcp.pop %v1684
        %v2267 = vmul.f32 %v1684, %v2266
        %v2268 = vsub.f32 1.0, %v2267
        %v2269 = vmul.f32 %v2266, %v2268
        %v2270 = vadd.f32 %v2266, %v2269
        %vm2271 = vweird.f32 %v1684
        %vm2272 = vweird.f32 %v2266
        %vm2273 = vmor %vm2271, %vm2272
        %v2274 = vsel %vm2273, %v2266, %v2270
        %v2275 = vand.u32 2147483647, %v1684
        %vm2276 = vcmp.eq.f32.partialorder %v2275, 8.507059e+37
        %v2277 = vand.u32 %v1684, 2147483648
        %v2278 = vor.u32 1.1754944e-38, %v2277
        %v2279 = vsel %vm2276, %v2278, %v2274
        %v2280 = vmul.f32 1.0, %v2279
        %v2281 = vrcp.pop %v1685
        %v2282 = vmul.f32 %v1685, %v2281
        %v2283 = vsub.f32 1.0, %v2282
        %v2284 = vmul.f32 %v2281, %v2283
        %v2285 = vadd.f32 %v2281, %v2284
        %vm2286 = vweird.f32 %v1685
        %vm2287 = vweird.f32 %v2281
        %vm2288 = vmor %vm2286, %vm2287
        %v2289 = vsel %vm2288, %v2281, %v2285
        %v2290 = vand.u32 2147483647, %v1685
        %vm2291 = vcmp.eq.f32.partialorder %v2290, 8.507059e+37
        %v2292 = vand.u32 %v1685, 2147483648
        %v2293 = vor.u32 1.1754944e-38, %v2292
        %v2294 = vsel %vm2291, %v2293, %v2289
        %v2295 = vmul.f32 1.0, %v2294
        %v2296 = vrcp.pop %v1686
        %v2297 = vmul.f32 %v1686, %v2296
        %v2298 = vsub.f32 1.0, %v2297
        %v2299 = vmul.f32 %v2296, %v2298
        %v2300 = vadd.f32 %v2296, %v2299
        %vm2301 = vweird.f32 %v1686
        %vm2302 = vweird.f32 %v2296
        %vm2303 = vmor %vm2301, %vm2302
        %v2304 = vsel %vm2303, %v2296, %v2300
        %v2305 = vand.u32 2147483647, %v1686
        %vm2306 = vcmp.eq.f32.partialorder %v2305, 8.507059e+37
        %v2307 = vand.u32 %v1686, 2147483648
        %v2308 = vor.u32 1.1754944e-38, %v2307
        %v2309 = vsel %vm2306, %v2308, %v2304
        %v2310 = vmul.f32 1.0, %v2309
        %v2311 = vrcp.pop %v1687
        %v2312 = vmul.f32 %v1687, %v2311
        %v2313 = vsub.f32 1.0, %v2312
        %v2314 = vmul.f32 %v2311, %v2313
        %v2315 = vadd.f32 %v2311, %v2314
        %vm2316 = vweird.f32 %v1687
        %vm2317 = vweird.f32 %v2311
        %vm2318 = vmor %vm2316, %vm2317
        %v2319 = vsel %vm2318, %v2311, %v2315
        %v2320 = vand.u32 2147483647, %v1687
        %vm2321 = vcmp.eq.f32.partialorder %v2320, 8.507059e+37
        %v2322 = vand.u32 %v1687, 2147483648
        %v2323 = vor.u32 1.1754944e-38, %v2322
        %v2324 = vsel %vm2321, %v2323, %v2319
        %v2325 = vmul.f32 1.0, %v2324
        %v2326 = vrcp.pop %v1688
        %v2327 = vmul.f32 %v1688, %v2326
        %v2328 = vsub.f32 1.0, %v2327
        %v2329 = vmul.f32 %v2326, %v2328
        %v2330 = vadd.f32 %v2326, %v2329
        %vm2331 = vweird.f32 %v1688
        %vm2332 = vweird.f32 %v2326
        %vm2333 = vmor %vm2331, %vm2332
        %v2334 = vsel %vm2333, %v2326, %v2330
        %v2335 = vand.u32 2147483647, %v1688
        %vm2336 = vcmp.eq.f32.partialorder %v2335, 8.507059e+37
        %v2337 = vand.u32 %v1688, 2147483648
        %v2338 = vor.u32 1.1754944e-38, %v2337
        %v2339 = vsel %vm2336, %v2338, %v2334
        %v2340 = vmul.f32 1.0, %v2339
        %v2341 = vrcp.pop %v1689
        %v2342 = vmul.f32 %v1689, %v2341
        %v2343 = vsub.f32 1.0, %v2342
        %v2344 = vmul.f32 %v2341, %v2343
        %v2345 = vadd.f32 %v2341, %v2344
        %vm2346 = vweird.f32 %v1689
        %vm2347 = vweird.f32 %v2341
        %vm2348 = vmor %vm2346, %vm2347
        %v2349 = vsel %vm2348, %v2341, %v2345
        %v2350 = vand.u32 2147483647, %v1689
        %vm2351 = vcmp.eq.f32.partialorder %v2350, 8.507059e+37
        %v2352 = vand.u32 %v1689, 2147483648
        %v2353 = vor.u32 1.1754944e-38, %v2352
        %v2354 = vsel %vm2351, %v2353, %v2349
        %v2355 = vmul.f32 1.0, %v2354
        %v2356 = vrcp.pop %v1690
        %v2357 = vmul.f32 %v1690, %v2356
        %v2358 = vsub.f32 1.0, %v2357
        %v2359 = vmul.f32 %v2356, %v2358
        %v2360 = vadd.f32 %v2356, %v2359
        %vm2361 = vweird.f32 %v1690
        %vm2362 = vweird.f32 %v2356
        %vm2363 = vmor %vm2361, %vm2362
        %v2364 = vsel %vm2363, %v2356, %v2360
        %v2365 = vand.u32 2147483647, %v1690
        %vm2366 = vcmp.eq.f32.partialorder %v2365, 8.507059e+37
        %v2367 = vand.u32 %v1690, 2147483648
        %v2368 = vor.u32 1.1754944e-38, %v2367
        %v2369 = vsel %vm2366, %v2368, %v2364
        %v2370 = vmul.f32 1.0, %v2369
        %v2371 = vrcp.pop %v1691
        %v2372 = vmul.f32 %v1691, %v2371
        %v2373 = vsub.f32 1.0, %v2372
        %v2374 = vmul.f32 %v2371, %v2373
        %v2375 = vadd.f32 %v2371, %v2374
        %vm2376 = vweird.f32 %v1691
        %vm2377 = vweird.f32 %v2371
        %vm2378 = vmor %vm2376, %vm2377
        %v2379 = vsel %vm2378, %v2371, %v2375
        %v2380 = vand.u32 2147483647, %v1691
        %vm2381 = vcmp.eq.f32.partialorder %v2380, 8.507059e+37
        %v2382 = vand.u32 %v1691, 2147483648
        %v2383 = vor.u32 1.1754944e-38, %v2382
        %v2384 = vsel %vm2381, %v2383, %v2379
        %v2385 = vmul.f32 1.0, %v2384
        %v2386 = vrcp.pop %v1692
        %v2387 = vmul.f32 %v1692, %v2386
        %v2388 = vsub.f32 1.0, %v2387
        %v2389 = vmul.f32 %v2386, %v2388
        %v2390 = vadd.f32 %v2386, %v2389
        %vm2391 = vweird.f32 %v1692
        %vm2392 = vweird.f32 %v2386
        %vm2393 = vmor %vm2391, %vm2392
        %v2394 = vsel %vm2393, %v2386, %v2390
        %v2395 = vand.u32 2147483647, %v1692
        %vm2396 = vcmp.eq.f32.partialorder %v2395, 8.507059e+37
        %v2397 = vand.u32 %v1692, 2147483648
        %v2398 = vor.u32 1.1754944e-38, %v2397
        %v2399 = vsel %vm2396, %v2398, %v2394
        %v2400 = vmul.f32 1.0, %v2399
        %v2401 = vrcp.pop %v1693
        %v2402 = vmul.f32 %v1693, %v2401
        %v2403 = vsub.f32 1.0, %v2402
        %v2404 = vmul.f32 %v2401, %v2403
        %v2405 = vadd.f32 %v2401, %v2404
        %vm2406 = vweird.f32 %v1693
        %vm2407 = vweird.f32 %v2401
        %vm2408 = vmor %vm2406, %vm2407
        %v2409 = vsel %vm2408, %v2401, %v2405
        %v2410 = vand.u32 2147483647, %v1693
        %vm2411 = vcmp.eq.f32.partialorder %v2410, 8.507059e+37
        %v2412 = vand.u32 %v1693, 2147483648
        %v2413 = vor.u32 1.1754944e-38, %v2412
        %v2414 = vsel %vm2411, %v2413, %v2409
        %v2415 = vmul.f32 1.0, %v2414
        %v2416 = vrcp.pop %v1694
        %v2417 = vmul.f32 %v1694, %v2416
        %v2418 = vsub.f32 1.0, %v2417
        %v2419 = vmul.f32 %v2416, %v2418
        %v2420 = vadd.f32 %v2416, %v2419
        %vm2421 = vweird.f32 %v1694
        %vm2422 = vweird.f32 %v2416
        %vm2423 = vmor %vm2421, %vm2422
        %v2424 = vsel %vm2423, %v2416, %v2420
        %v2425 = vand.u32 2147483647, %v1694
        %vm2426 = vcmp.eq.f32.partialorder %v2425, 8.507059e+37
        %v2427 = vand.u32 %v1694, 2147483648
        %v2428 = vor.u32 1.1754944e-38, %v2427
        %v2429 = vsel %vm2426, %v2428, %v2424
        %v2430 = vmul.f32 1.0, %v2429
        %v2431 = vrcp.pop %v1695
        %v2432 = vmul.f32 %v1695, %v2431
        %v2433 = vsub.f32 1.0, %v2432
        %v2434 = vmul.f32 %v2431, %v2433
        %v2435 = vadd.f32 %v2431, %v2434
        %vm2436 = vweird.f32 %v1695
        %vm2437 = vweird.f32 %v2431
        %vm2438 = vmor %vm2436, %vm2437
        %v2439 = vsel %vm2438, %v2431, %v2435
        %v2440 = vand.u32 2147483647, %v1695
        %vm2441 = vcmp.eq.f32.partialorder %v2440, 8.507059e+37
        %v2442 = vand.u32 %v1695, 2147483648
        %v2443 = vor.u32 1.1754944e-38, %v2442
        %v2444 = vsel %vm2441, %v2443, %v2439
        %v2445 = vmul.f32 1.0, %v2444
        %v2446 = vrcp.pop %v1696
        %v2447 = vmul.f32 %v1696, %v2446
        %v2448 = vsub.f32 1.0, %v2447
        %v2449 = vmul.f32 %v2446, %v2448
        %v2450 = vadd.f32 %v2446, %v2449
        %vm2451 = vweird.f32 %v1696
        %vm2452 = vweird.f32 %v2446
        %vm2453 = vmor %vm2451, %vm2452
        %v2454 = vsel %vm2453, %v2446, %v2450
        %v2455 = vand.u32 2147483647, %v1696
        %vm2456 = vcmp.eq.f32.partialorder %v2455, 8.507059e+37
        %v2457 = vand.u32 %v1696, 2147483648
        %v2458 = vor.u32 1.1754944e-38, %v2457
        %v2459 = vsel %vm2456, %v2458, %v2454
        %v2460 = vmul.f32 1.0, %v2459
        %v2461 = vrcp.pop %v1697
        %v2462 = vmul.f32 %v1697, %v2461
        %v2463 = vsub.f32 1.0, %v2462
        %v2464 = vmul.f32 %v2461, %v2463
        %v2465 = vadd.f32 %v2461, %v2464
        %vm2466 = vweird.f32 %v1697
        %vm2467 = vweird.f32 %v2461
        %vm2468 = vmor %vm2466, %vm2467
        %v2469 = vsel %vm2468, %v2461, %v2465
        %v2470 = vand.u32 2147483647, %v1697
        %vm2471 = vcmp.eq.f32.partialorder %v2470, 8.507059e+37
        %v2472 = vand.u32 %v1697, 2147483648
        %v2473 = vor.u32 1.1754944e-38, %v2472
        %v2474 = vsel %vm2471, %v2473, %v2469
        %v2475 = vmul.f32 1.0, %v2474
        %v2476 = vrcp.pop %v1698
        %v2477 = vmul.f32 %v1698, %v2476
        %v2478 = vsub.f32 1.0, %v2477
        %v2479 = vmul.f32 %v2476, %v2478
        %v2480 = vadd.f32 %v2476, %v2479
        %vm2481 = vweird.f32 %v1698
        %vm2482 = vweird.f32 %v2476
        %vm2483 = vmor %vm2481, %vm2482
        %v2484 = vsel %vm2483, %v2476, %v2480
        %v2485 = vand.u32 2147483647, %v1698
        %vm2486 = vcmp.eq.f32.partialorder %v2485, 8.507059e+37
        %v2487 = vand.u32 %v1698, 2147483648
        %v2488 = vor.u32 1.1754944e-38, %v2487
        %v2489 = vsel %vm2486, %v2488, %v2484
        %v2490 = vmul.f32 1.0, %v2489
        %v2491 = vrcp.pop %v1699
        %v2492 = vmul.f32 %v1699, %v2491
        %v2493 = vsub.f32 1.0, %v2492
        %v2494 = vmul.f32 %v2491, %v2493
        %v2495 = vadd.f32 %v2491, %v2494
        %vm2496 = vweird.f32 %v1699
        %vm2497 = vweird.f32 %v2491
        %vm2498 = vmor %vm2496, %vm2497
        %v2499 = vsel %vm2498, %v2491, %v2495
        %v2500 = vand.u32 2147483647, %v1699
        %vm2501 = vcmp.eq.f32.partialorder %v2500, 8.507059e+37
        %v2502 = vand.u32 %v1699, 2147483648
        %v2503 = vor.u32 1.1754944e-38, %v2502
        %v2504 = vsel %vm2501, %v2503, %v2499
        %v2505 = vmul.f32 1.0, %v2504
        %v2506 = vrcp.pop %v1700
        %v2507 = vmul.f32 %v1700, %v2506
        %v2508 = vsub.f32 1.0, %v2507
        %v2509 = vmul.f32 %v2506, %v2508
        %v2510 = vadd.f32 %v2506, %v2509
        %vm2511 = vweird.f32 %v1700
        %vm2512 = vweird.f32 %v2506
        %vm2513 = vmor %vm2511, %vm2512
        %v2514 = vsel %vm2513, %v2506, %v2510
        %v2515 = vand.u32 2147483647, %v1700
        %vm2516 = vcmp.eq.f32.partialorder %v2515, 8.507059e+37
        %v2517 = vand.u32 %v1700, 2147483648
        %v2518 = vor.u32 1.1754944e-38, %v2517
        %v2519 = vsel %vm2516, %v2518, %v2514
        %v2520 = vmul.f32 1.0, %v2519
        %v2521 = vrcp.pop %v1701
        %v2522 = vmul.f32 %v1701, %v2521
        %v2523 = vsub.f32 1.0, %v2522
        %v2524 = vmul.f32 %v2521, %v2523
        %v2525 = vadd.f32 %v2521, %v2524
        %vm2526 = vweird.f32 %v1701
        %vm2527 = vweird.f32 %v2521
        %vm2528 = vmor %vm2526, %vm2527
        %v2529 = vsel %vm2528, %v2521, %v2525
        %v2530 = vand.u32 2147483647, %v1701
        %vm2531 = vcmp.eq.f32.partialorder %v2530, 8.507059e+37
        %v2532 = vand.u32 %v1701, 2147483648
        %v2533 = vor.u32 1.1754944e-38, %v2532
        %v2534 = vsel %vm2531, %v2533, %v2529
        %v2535 = vmul.f32 1.0, %v2534
        %v2536 = vrcp.pop %v1702
        %v2537 = vmul.f32 %v1702, %v2536
        %v2538 = vsub.f32 1.0, %v2537
        %v2539 = vmul.f32 %v2536, %v2538
        %v2540 = vadd.f32 %v2536, %v2539
        %vm2541 = vweird.f32 %v1702
        %vm2542 = vweird.f32 %v2536
        %vm2543 = vmor %vm2541, %vm2542
        %v2544 = vsel %vm2543, %v2536, %v2540
        %v2545 = vand.u32 2147483647, %v1702
        %vm2546 = vcmp.eq.f32.partialorder %v2545, 8.507059e+37
        %v2547 = vand.u32 %v1702, 2147483648
        %v2548 = vor.u32 1.1754944e-38, %v2547
        %v2549 = vsel %vm2546, %v2548, %v2544
        %v2550 = vmul.f32 1.0, %v2549
        %v2551 = vrcp.pop %v1703
        %v2552 = vmul.f32 %v1703, %v2551
        %v2553 = vsub.f32 1.0, %v2552
        %v2554 = vmul.f32 %v2551, %v2553
        %v2555 = vadd.f32 %v2551, %v2554
        %vm2556 = vweird.f32 %v1703
        %vm2557 = vweird.f32 %v2551
        %vm2558 = vmor %vm2556, %vm2557
        %v2559 = vsel %vm2558, %v2551, %v2555
        %v2560 = vand.u32 2147483647, %v1703
        %vm2561 = vcmp.eq.f32.partialorder %v2560, 8.507059e+37
        %v2562 = vand.u32 %v1703, 2147483648
        %v2563 = vor.u32 1.1754944e-38, %v2562
        %v2564 = vsel %vm2561, %v2563, %v2559
        %v2565 = vmul.f32 1.0, %v2564
        %v2566 = vrcp.pop %v1704
        %v2567 = vmul.f32 %v1704, %v2566
        %v2568 = vsub.f32 1.0, %v2567
        %v2569 = vmul.f32 %v2566, %v2568
        %v2570 = vadd.f32 %v2566, %v2569
        %vm2571 = vweird.f32 %v1704
        %vm2572 = vweird.f32 %v2566
        %vm2573 = vmor %vm2571, %vm2572
        %v2574 = vsel %vm2573, %v2566, %v2570
        %v2575 = vand.u32 2147483647, %v1704
        %vm2576 = vcmp.eq.f32.partialorder %v2575, 8.507059e+37
        %v2577 = vand.u32 %v1704, 2147483648
        %v2578 = vor.u32 1.1754944e-38, %v2577
        %v2579 = vsel %vm2576, %v2578, %v2574
        %v2580 = vmul.f32 1.0, %v2579
        %v2581 = vrcp.pop %v1705
        %v2582 = vmul.f32 %v1705, %v2581
        %v2583 = vsub.f32 1.0, %v2582
        %v2584 = vmul.f32 %v2581, %v2583
        %v2585 = vadd.f32 %v2581, %v2584
        %vm2586 = vweird.f32 %v1705
        %vm2587 = vweird.f32 %v2581
        %vm2588 = vmor %vm2586, %vm2587
        %v2589 = vsel %vm2588, %v2581, %v2585
        %v2590 = vand.u32 2147483647, %v1705
        %vm2591 = vcmp.eq.f32.partialorder %v2590, 8.507059e+37
        %v2592 = vand.u32 %v1705, 2147483648
        %v2593 = vor.u32 1.1754944e-38, %v2592
        %v2594 = vsel %vm2591, %v2593, %v2589
        %v2595 = vmul.f32 1.0, %v2594
        %v2596 = vrcp.pop %v1706
        %v2597 = vmul.f32 %v1706, %v2596
        %v2598 = vsub.f32 1.0, %v2597
        %v2599 = vmul.f32 %v2596, %v2598
        %v2600 = vadd.f32 %v2596, %v2599
        %vm2601 = vweird.f32 %v1706
        %vm2602 = vweird.f32 %v2596
        %vm2603 = vmor %vm2601, %vm2602
        %v2604 = vsel %vm2603, %v2596, %v2600
        %v2605 = vand.u32 2147483647, %v1706
        %vm2606 = vcmp.eq.f32.partialorder %v2605, 8.507059e+37
        %v2607 = vand.u32 %v1706, 2147483648
        %v2608 = vor.u32 1.1754944e-38, %v2607
        %v2609 = vsel %vm2606, %v2608, %v2604
        %v2610 = vmul.f32 1.0, %v2609
        %v2611 = vrcp.pop %v1707
        %v2612 = vmul.f32 %v1707, %v2611
        %v2613 = vsub.f32 1.0, %v2612
        %v2614 = vmul.f32 %v2611, %v2613
        %v2615 = vadd.f32 %v2611, %v2614
        %vm2616 = vweird.f32 %v1707
        %vm2617 = vweird.f32 %v2611
        %vm2618 = vmor %vm2616, %vm2617
        %v2619 = vsel %vm2618, %v2611, %v2615
        %v2620 = vand.u32 2147483647, %v1707
        %vm2621 = vcmp.eq.f32.partialorder %v2620, 8.507059e+37
        %v2622 = vand.u32 %v1707, 2147483648
        %v2623 = vor.u32 1.1754944e-38, %v2622
        %v2624 = vsel %vm2621, %v2623, %v2619
        %v2625 = vmul.f32 1.0, %v2624
        %v2626 = vrcp.pop %v1708
        %v2627 = vmul.f32 %v1708, %v2626
        %v2628 = vsub.f32 1.0, %v2627
        %v2629 = vmul.f32 %v2626, %v2628
        %v2630 = vadd.f32 %v2626, %v2629
        %vm2631 = vweird.f32 %v1708
        %vm2632 = vweird.f32 %v2626
        %vm2633 = vmor %vm2631, %vm2632
        %v2634 = vsel %vm2633, %v2626, %v2630
        %v2635 = vand.u32 2147483647, %v1708
        %vm2636 = vcmp.eq.f32.partialorder %v2635, 8.507059e+37
        %v2637 = vand.u32 %v1708, 2147483648
        %v2638 = vor.u32 1.1754944e-38, %v2637
        %v2639 = vsel %vm2636, %v2638, %v2634
        %v2640 = vmul.f32 1.0, %v2639
        %v2641 = vrcp.pop %v1709
        %v2642 = vmul.f32 %v1709, %v2641
        %v2643 = vsub.f32 1.0, %v2642
        %v2644 = vmul.f32 %v2641, %v2643
        %v2645 = vadd.f32 %v2641, %v2644
        %vm2646 = vweird.f32 %v1709
        %vm2647 = vweird.f32 %v2641
        %vm2648 = vmor %vm2646, %vm2647
        %v2649 = vsel %vm2648, %v2641, %v2645
        %v2650 = vand.u32 2147483647, %v1709
        %vm2651 = vcmp.eq.f32.partialorder %v2650, 8.507059e+37
        %v2652 = vand.u32 %v1709, 2147483648
        %v2653 = vor.u32 1.1754944e-38, %v2652
        %v2654 = vsel %vm2651, %v2653, %v2649
        %v2655 = vmul.f32 1.0, %v2654
        %v2656 = vrcp.pop %v1710
        %v2657 = vmul.f32 %v1710, %v2656
        %v2658 = vsub.f32 1.0, %v2657
        %v2659 = vmul.f32 %v2656, %v2658
        %v2660 = vadd.f32 %v2656, %v2659
        %vm2661 = vweird.f32 %v1710
        %vm2662 = vweird.f32 %v2656
        %vm2663 = vmor %vm2661, %vm2662
        %v2664 = vsel %vm2663, %v2656, %v2660
        %v2665 = vand.u32 2147483647, %v1710
        %vm2666 = vcmp.eq.f32.partialorder %v2665, 8.507059e+37
        %v2667 = vand.u32 %v1710, 2147483648
        %v2668 = vor.u32 1.1754944e-38, %v2667
        %v2669 = vsel %vm2666, %v2668, %v2664
        %v2670 = vmul.f32 1.0, %v2669
        %v2671 = vmul.f32 %v842, %v1725
        %v2672 = vmul.f32 %v1020, %v1740
        %v2673 = vmul.f32 %v844, %v1755
        %v2674 = vmul.f32 %v1022, %v1770
        %v2675 = vmul.f32 %v847, %v1785
        %v2676 = vmul.f32 %v1025, %v1800
        %v2677 = vmul.f32 %v849, %v1815
        %v2678 = vmul.f32 %v1027, %v1830
        %v2679 = vmul.f32 %v852, %v1845
        %v2680 = vmul.f32 %v1030, %v1860
        %v2681 = vmul.f32 %v854, %v1875
        %v2682 = vmul.f32 %v1032, %v1890
        %v2683 = vmul.f32 %v857, %v1905
        %v2684 = vmul.f32 %v1035, %v1920
        %v2685 = vmul.f32 %v859, %v1935
        %v2686 = vmul.f32 %v1037, %v1950
        %v2687 = vmul.f32 %v862, %v1965
        %v2688 = vmul.f32 %v1040, %v1980
        %v2689 = vmul.f32 %v864, %v1995
        %v2690 = vmul.f32 %v1042, %v2010
        %v2691 = vmul.f32 %v867, %v2025
        %v2692 = vmul.f32 %v1045, %v2040
        %v2693 = vmul.f32 %v869, %v2055
        %v2694 = vmul.f32 %v1047, %v2070
        %v2695 = vmul.f32 %v872, %v2085
        %v2696 = vmul.f32 %v1050, %v2100
        %v2697 = vmul.f32 %v874, %v2115
        %v2698 = vmul.f32 %v1052, %v2130
        %v2699 = vmul.f32 %v877, %v2145
        %v2700 = vmul.f32 %v1055, %v2160
        %v2701 = vmul.f32 %v879, %v2175
        %v2702 = vmul.f32 %v1057, %v2190
        %v2703 = vmul.f32 %v882, %v2205
        %v2704 = vmul.f32 %v1060, %v2220
        %v2705 = vmul.f32 %v884, %v2235
        %v2706 = vmul.f32 %v1062, %v2250
        %v2707 = vmul.f32 %v887, %v2265
        %v2708 = vmul.f32 %v1065, %v2280
        %v2709 = vmul.f32 %v889, %v2295
        %v2710 = vmul.f32 %v1067, %v2310
        %v2711 = vmul.f32 %v892, %v2325
        %v2712 = vmul.f32 %v1070, %v2340
        %v2713 = vmul.f32 %v894, %v2355
        %v2714 = vmul.f32 %v1072, %v2370
        %v2715 = vmul.f32 %v897, %v2385
        %v2716 = vmul.f32 %v1075, %v2400
        %v2717 = vmul.f32 %v899, %v2415
        %v2718 = vmul.f32 %v1077, %v2430
        %v2719 = vmul.f32 %v902, %v2445
        %v2720 = vmul.f32 %v1080, %v2460
        %v2721 = vmul.f32 %v904, %v2475
        %v2722 = vmul.f32 %v1082, %v2490
        %v2723 = vmul.f32 %v907, %v2505
        %v2724 = vmul.f32 %v1085, %v2520
        %v2725 = vmul.f32 %v909, %v2535
        %v2726 = vmul.f32 %v1087, %v2550
        %v2727 = vmul.f32 %v912, %v2565
        %v2728 = vmul.f32 %v1090, %v2580
        %v2729 = vmul.f32 %v914, %v2595
        %v2730 = vmul.f32 %v1092, %v2610
        %v2731 = vmul.f32 %v917, %v2625
        %v2732 = vmul.f32 %v1095, %v2640
        %v2733 = vmul.f32 %v919, %v2655
        %v2734 = vmul.f32 %v1097, %v2670
        %v2735 = vmul.f32 %v2671, %v1198
        %v2736 = vmul.f32 %v2672, %v1376
        %v2737 = vmul.f32 %v2673, %v1200
        %v2738 = vmul.f32 %v2674, %v1378
        %v2739 = vmul.f32 %v2675, %v1203
        %v2740 = vmul.f32 %v2676, %v1381
        %v2741 = vmul.f32 %v2677, %v1205
        %v2742 = vmul.f32 %v2678, %v1383
        %v2743 = vmul.f32 %v2679, %v1208
        %v2744 = vmul.f32 %v2680, %v1386
        %v2745 = vmul.f32 %v2681, %v1210
        %v2746 = vmul.f32 %v2682, %v1388
        %v2747 = vmul.f32 %v2683, %v1213
        %v2748 = vmul.f32 %v2684, %v1391
        %v2749 = vmul.f32 %v2685, %v1215
        %v2750 = vmul.f32 %v2686, %v1393
        %v2751 = vmul.f32 %v2687, %v1218
        %v2752 = vmul.f32 %v2688, %v1396
        %v2753 = vmul.f32 %v2689, %v1220
        %v2754 = vmul.f32 %v2690, %v1398
        %v2755 = vmul.f32 %v2691, %v1223
        %v2756 = vmul.f32 %v2692, %v1401
        %v2757 = vmul.f32 %v2693, %v1225
        %v2758 = vmul.f32 %v2694, %v1403
        %v2759 = vmul.f32 %v2695, %v1228
        %v2760 = vmul.f32 %v2696, %v1406
        %v2761 = vmul.f32 %v2697, %v1230
        %v2762 = vmul.f32 %v2698, %v1408
        %v2763 = vmul.f32 %v2699, %v1233
        %v2764 = vmul.f32 %v2700, %v1411
        %v2765 = vmul.f32 %v2701, %v1235
        %v2766 = vmul.f32 %v2702, %v1413
        %v2767 = vmul.f32 %v2703, %v1238
        %v2768 = vmul.f32 %v2704, %v1416
        %v2769 = vmul.f32 %v2705, %v1240
        %v2770 = vmul.f32 %v2706, %v1418
        %v2771 = vmul.f32 %v2707, %v1243
        %v2772 = vmul.f32 %v2708, %v1421
        %v2773 = vmul.f32 %v2709, %v1245
        %v2774 = vmul.f32 %v2710, %v1423
        %v2775 = vmul.f32 %v2711, %v1248
        %v2776 = vmul.f32 %v2712, %v1426
        %v2777 = vmul.f32 %v2713, %v1250
        %v2778 = vmul.f32 %v2714, %v1428
        %v2779 = vmul.f32 %v2715, %v1253
        %v2780 = vmul.f32 %v2716, %v1431
        %v2781 = vmul.f32 %v2717, %v1255
        %v2782 = vmul.f32 %v2718, %v1433
        %v2783 = vmul.f32 %v2719, %v1258
        %v2784 = vmul.f32 %v2720, %v1436
        %v2785 = vmul.f32 %v2721, %v1260
        %v2786 = vmul.f32 %v2722, %v1438
        %v2787 = vmul.f32 %v2723, %v1263
        %v2788 = vmul.f32 %v2724, %v1441
        %v2789 = vmul.f32 %v2725, %v1265
        %v2790 = vmul.f32 %v2726, %v1443
        %v2791 = vmul.f32 %v2727, %v1268
        %v2792 = vmul.f32 %v2728, %v1446
        %v2793 = vmul.f32 %v2729, %v1270
        %v2794 = vmul.f32 %v2730, %v1448
        %v2795 = vmul.f32 %v2731, %v1273
        %v2796 = vmul.f32 %v2732, %v1451
        %v2797 = vmul.f32 %v2733, %v1275
        %v2798 = vmul.f32 %v2734, %v1453
        %v2799 = vpack.c.bf16 %v2737, %v2735
        %v2800 = vpack.c.bf16 %v2738, %v2736
        %v2801 = vpack.c.bf16 %v2741, %v2739
        %v2802 = vpack.c.bf16 %v2742, %v2740
        %v2803 = vpack.c.bf16 %v2745, %v2743
        %v2804 = vpack.c.bf16 %v2746, %v2744
        %v2805 = vpack.c.bf16 %v2749, %v2747
        %v2806 = vpack.c.bf16 %v2750, %v2748
        %v2807 = vpack.c.bf16 %v2753, %v2751
        %v2808 = vpack.c.bf16 %v2754, %v2752
        %v2809 = vpack.c.bf16 %v2757, %v2755
        %v2810 = vpack.c.bf16 %v2758, %v2756
        %v2811 = vpack.c.bf16 %v2761, %v2759
        %v2812 = vpack.c.bf16 %v2762, %v2760
        %v2813 = vpack.c.bf16 %v2765, %v2763
        %v2814 = vpack.c.bf16 %v2766, %v2764
        %v2815 = vpack.c.bf16 %v2769, %v2767
        %v2816 = vpack.c.bf16 %v2770, %v2768
        %v2817 = vpack.c.bf16 %v2773, %v2771
        %v2818 = vpack.c.bf16 %v2774, %v2772
        %v2819 = vpack.c.bf16 %v2777, %v2775
        %v2820 = vpack.c.bf16 %v2778, %v2776
        %v2821 = vpack.c.bf16 %v2781, %v2779
        %v2822 = vpack.c.bf16 %v2782, %v2780
        %v2823 = vpack.c.bf16 %v2785, %v2783
        %v2824 = vpack.c.bf16 %v2786, %v2784
        %v2825 = vpack.c.bf16 %v2789, %v2787
        %v2826 = vpack.c.bf16 %v2790, %v2788
        %v2827 = vpack.c.bf16 %v2793, %v2791
        %v2828 = vpack.c.bf16 %v2794, %v2792
        %v2829 = vpack.c.bf16 %v2797, %v2795
        %v2830 = vpack.c.bf16 %v2798, %v2796
        %v2831 = vld [vmem:[%s237] sm:$0xff]
        %v2832 = vld [vmem:[%s237 + $0x8] sm:$0xff]
        %v2833 = vld [vmem:[%s237 + $0x10] sm:$0xff]
        %v2834 = vld [vmem:[%s237 + $0x18] sm:$0xff]
        %v2835 = vld [vmem:[%s237 + $0x20] sm:$0xff]
        %v2836 = vld [vmem:[%s237 + $0x28] sm:$0xff]
        %v2837 = vld [vmem:[%s237 + $0x30] sm:$0xff]
        %v2838 = vld [vmem:[%s237 + $0x38] sm:$0xff]
        %v2839 = vld [vmem:[%s237 + $0x40] sm:$0xff]
        %v2840 = vld [vmem:[%s237 + $0x48] sm:$0xff]
        %v2841 = vld [vmem:[%s237 + $0x50] sm:$0xff]
        %v2842 = vld [vmem:[%s237 + $0x58] sm:$0xff]
        %v2843 = vld [vmem:[%s237 + $0x60] sm:$0xff]
        %v2844 = vld [vmem:[%s237 + $0x68] sm:$0xff]
        %v2845 = vld [vmem:[%s237 + $0x70] sm:$0xff]
        %v2846 = vld [vmem:[%s237 + $0x78] sm:$0xff]
        %v2847 = vld [vmem:[%s237 + $0x80] sm:$0xff]
        %v2848 = vld [vmem:[%s237 + $0x88] sm:$0xff]
        %v2849 = vld [vmem:[%s237 + $0x90] sm:$0xff]
        %v2850 = vld [vmem:[%s237 + $0x98] sm:$0xff]
        %v2851 = vld [vmem:[%s237 + $0xa0] sm:$0xff]
        %v2852 = vld [vmem:[%s237 + $0xa8] sm:$0xff]
        %v2853 = vld [vmem:[%s237 + $0xb0] sm:$0xff]
        %v2854 = vld [vmem:[%s237 + $0xb8] sm:$0xff]
        %v2855 = vld [vmem:[%s237 + $0xc0] sm:$0xff]
        %v2856 = vld [vmem:[%s237 + $0xc8] sm:$0xff]
        %v2857 = vld [vmem:[%s237 + $0xd0] sm:$0xff]
        %v2858 = vld [vmem:[%s237 + $0xd8] sm:$0xff]
        %v2859 = vld [vmem:[%s237 + $0xe0] sm:$0xff]
        %v2860 = vld [vmem:[%s237 + $0xe8] sm:$0xff]
        %v2861 = vld [vmem:[%s237 + $0xf0] sm:$0xff]
        %v2862 = vld [vmem:[%s237 + $0xf8] sm:$0xff]
        %v2895 = vunpack.c.l.b16 %v2831
        %v2896 = vunpack.c.h.b16 %v2831
        %v2897 = vunpack.c.l.b16 %v2832
        %v2898 = vunpack.c.h.b16 %v2832
        %v2899 = vunpack.c.l.b16 %v2833
        %v2900 = vunpack.c.h.b16 %v2833
        %v2901 = vunpack.c.l.b16 %v2834
        %v2902 = vunpack.c.h.b16 %v2834
        %v2903 = vunpack.c.l.b16 %v2835
        %v2904 = vunpack.c.h.b16 %v2835
        %v2905 = vunpack.c.l.b16 %v2836
        %v2906 = vunpack.c.h.b16 %v2836
        %v2907 = vunpack.c.l.b16 %v2837
        %v2908 = vunpack.c.h.b16 %v2837
        %v2909 = vunpack.c.l.b16 %v2838
        %v2910 = vunpack.c.h.b16 %v2838
        %v2911 = vunpack.c.l.b16 %v2839
        %v2912 = vunpack.c.h.b16 %v2839
        %v2913 = vunpack.c.l.b16 %v2840
        %v2914 = vunpack.c.h.b16 %v2840
        %v2915 = vunpack.c.l.b16 %v2841
        %v2916 = vunpack.c.h.b16 %v2841
        %v2917 = vunpack.c.l.b16 %v2842
        %v2918 = vunpack.c.h.b16 %v2842
        %v2919 = vunpack.c.l.b16 %v2843
        %v2920 = vunpack.c.h.b16 %v2843
        %v2921 = vunpack.c.l.b16 %v2844
        %v2922 = vunpack.c.h.b16 %v2844
        %v2923 = vunpack.c.l.b16 %v2845
        %v2924 = vunpack.c.h.b16 %v2845
        %v2925 = vunpack.c.l.b16 %v2846
        %v2926 = vunpack.c.h.b16 %v2846
        %v2927 = vunpack.c.l.b16 %v2847
        %v2928 = vunpack.c.h.b16 %v2847
        %v2929 = vunpack.c.l.b16 %v2848
        %v2930 = vunpack.c.h.b16 %v2848
        %v2931 = vunpack.c.l.b16 %v2849
        %v2932 = vunpack.c.h.b16 %v2849
        %v2933 = vunpack.c.l.b16 %v2850
        %v2934 = vunpack.c.h.b16 %v2850
        %v2935 = vunpack.c.l.b16 %v2851
        %v2936 = vunpack.c.h.b16 %v2851
        %v2937 = vunpack.c.l.b16 %v2852
        %v2938 = vunpack.c.h.b16 %v2852
        %v2939 = vunpack.c.l.b16 %v2853
        %v2940 = vunpack.c.h.b16 %v2853
        %v2941 = vunpack.c.l.b16 %v2854
        %v2942 = vunpack.c.h.b16 %v2854
        %v2943 = vunpack.c.l.b16 %v2855
        %v2944 = vunpack.c.h.b16 %v2855
        %v2945 = vunpack.c.l.b16 %v2856
        %v2946 = vunpack.c.h.b16 %v2856
        %v2947 = vunpack.c.l.b16 %v2857
        %v2948 = vunpack.c.h.b16 %v2857
        %v2949 = vunpack.c.l.b16 %v2858
        %v2950 = vunpack.c.h.b16 %v2858
        %v2951 = vunpack.c.l.b16 %v2859
        %v2952 = vunpack.c.h.b16 %v2859
        %v2953 = vunpack.c.l.b16 %v2860
        %v2954 = vunpack.c.h.b16 %v2860
        %v2955 = vunpack.c.l.b16 %v2861
        %v2956 = vunpack.c.h.b16 %v2861
        %v2957 = vunpack.c.l.b16 %v2862
        %v2958 = vunpack.c.h.b16 %v2862
        %v2959 = vpack.c.b16 %v2897, %v2895
        %v2960 = vpack.c.b16 %v2898, %v2896
        %v2961 = vpack.c.b16 %v2901, %v2899
        %v2962 = vpack.c.b16 %v2902, %v2900
        %v2963 = vpack.c.b16 %v2905, %v2903
        %v2964 = vpack.c.b16 %v2906, %v2904
        %v2965 = vpack.c.b16 %v2909, %v2907
        %v2966 = vpack.c.b16 %v2910, %v2908
        %v2967 = vpack.c.b16 %v2913, %v2911
        %v2968 = vpack.c.b16 %v2914, %v2912
        %v2969 = vpack.c.b16 %v2917, %v2915
        %v2970 = vpack.c.b16 %v2918, %v2916
        %v2971 = vpack.c.b16 %v2921, %v2919
        %v2972 = vpack.c.b16 %v2922, %v2920
        %v2973 = vpack.c.b16 %v2925, %v2923
        %v2974 = vpack.c.b16 %v2926, %v2924
        %v2975 = vpack.c.b16 %v2929, %v2927
        %v2976 = vpack.c.b16 %v2930, %v2928
        %v2977 = vpack.c.b16 %v2933, %v2931
        %v2978 = vpack.c.b16 %v2934, %v2932
        %v2979 = vpack.c.b16 %v2937, %v2935
        %v2980 = vpack.c.b16 %v2938, %v2936
        %v2981 = vpack.c.b16 %v2941, %v2939
        %v2982 = vpack.c.b16 %v2942, %v2940
        %v2983 = vpack.c.b16 %v2945, %v2943
        %v2984 = vpack.c.b16 %v2946, %v2944
        %v2985 = vpack.c.b16 %v2949, %v2947
        %v2986 = vpack.c.b16 %v2950, %v2948
        %v2987 = vpack.c.b16 %v2953, %v2951
        %v2988 = vpack.c.b16 %v2954, %v2952
        %v2989 = vpack.c.b16 %v2957, %v2955
        %v2990 = vpack.c.b16 %v2958, %v2956
        %3023 = vmatpush.bf16.msra.mxu0 %v2973
        %3024 = vmatpush.bf16.msra.mxu0 %v2971
        %3025 = vmatpush.bf16.msra.mxu0 %v2969
        %3026 = vmatpush.bf16.msra.mxu0 %v2967
        %3027 = vmatpush.bf16.msra.mxu0 %v2965
        %3028 = vmatpush.bf16.msra.mxu0 %v2963
        %3029 = vmatpush.bf16.msra.mxu0 %v2961
        %3030 = vmatpush.bf16.msra.mxu0 %v2959
        %3031 = vmatmul.bf16.gmra.mxu0 %v2799
        %v3032 = vpop.f32.mrf.mxu0
        %v3033 = vadd.f32 0.0, %v3032
        %v3034 = vpop.f32.mrf.mxu0
        %v3035 = vadd.f32 0.0, %v3034
        %3036 = vmatmul.bf16.gmra.mxu0 %v2801
        %v3037 = vpop.f32.mrf.mxu0
        %v3038 = vadd.f32 0.0, %v3037
        %v3039 = vpop.f32.mrf.mxu0
        %v3040 = vadd.f32 0.0, %v3039
        %3041 = vmatmul.bf16.gmra.mxu0 %v2803
        %v3042 = vpop.f32.mrf.mxu0
        %v3043 = vadd.f32 0.0, %v3042
        %v3044 = vpop.f32.mrf.mxu0
        %v3045 = vadd.f32 0.0, %v3044
        %3046 = vmatmul.bf16.gmra.mxu0 %v2805
        %v3047 = vpop.f32.mrf.mxu0
        %v3048 = vadd.f32 0.0, %v3047
        %v3049 = vpop.f32.mrf.mxu0
        %v3050 = vadd.f32 0.0, %v3049
        %3051 = vmatmul.bf16.gmra.mxu0 %v2807
        %v3052 = vpop.f32.mrf.mxu0
        %v3053 = vadd.f32 0.0, %v3052
        %v3054 = vpop.f32.mrf.mxu0
        %v3055 = vadd.f32 0.0, %v3054
        %3056 = vmatmul.bf16.gmra.mxu0 %v2809
        %v3057 = vpop.f32.mrf.mxu0
        %v3058 = vadd.f32 0.0, %v3057
        %v3059 = vpop.f32.mrf.mxu0
        %v3060 = vadd.f32 0.0, %v3059
        %3061 = vmatmul.bf16.gmra.mxu0 %v2811
        %v3062 = vpop.f32.mrf.mxu0
        %v3063 = vadd.f32 0.0, %v3062
        %v3064 = vpop.f32.mrf.mxu0
        %v3065 = vadd.f32 0.0, %v3064
        %3066 = vmatmul.bf16.gmra.mxu0 %v2813
        %v3067 = vpop.f32.mrf.mxu0
        %v3068 = vadd.f32 0.0, %v3067
        %v3069 = vpop.f32.mrf.mxu0
        %v3070 = vadd.f32 0.0, %v3069
        %3071 = vmatmul.bf16.gmra.mxu0 %v2815
        %v3072 = vpop.f32.mrf.mxu0
        %v3073 = vadd.f32 0.0, %v3072
        %v3074 = vpop.f32.mrf.mxu0
        %v3075 = vadd.f32 0.0, %v3074
        %3076 = vmatmul.bf16.gmra.mxu0 %v2817
        %v3077 = vpop.f32.mrf.mxu0
        %v3078 = vadd.f32 0.0, %v3077
        %v3079 = vpop.f32.mrf.mxu0
        %v3080 = vadd.f32 0.0, %v3079
        %3081 = vmatmul.bf16.gmra.mxu0 %v2819
        %v3082 = vpop.f32.mrf.mxu0
        %v3083 = vadd.f32 0.0, %v3082
        %v3084 = vpop.f32.mrf.mxu0
        %v3085 = vadd.f32 0.0, %v3084
        %3086 = vmatmul.bf16.gmra.mxu0 %v2821
        %v3087 = vpop.f32.mrf.mxu0
        %v3088 = vadd.f32 0.0, %v3087
        %v3089 = vpop.f32.mrf.mxu0
        %v3090 = vadd.f32 0.0, %v3089
        %3091 = vmatmul.bf16.gmra.mxu0 %v2823
        %v3092 = vpop.f32.mrf.mxu0
        %v3093 = vadd.f32 0.0, %v3092
        %v3094 = vpop.f32.mrf.mxu0
        %v3095 = vadd.f32 0.0, %v3094
        %3096 = vmatmul.bf16.gmra.mxu0 %v2825
        %v3097 = vpop.f32.mrf.mxu0
        %v3098 = vadd.f32 0.0, %v3097
        %v3099 = vpop.f32.mrf.mxu0
        %v3100 = vadd.f32 0.0, %v3099
        %3101 = vmatmul.bf16.gmra.mxu0 %v2827
        %v3102 = vpop.f32.mrf.mxu0
        %v3103 = vadd.f32 0.0, %v3102
        %v3104 = vpop.f32.mrf.mxu0
        %v3105 = vadd.f32 0.0, %v3104
        %3106 = vmatmul.bf16.gmra.mxu0 %v2829
        %v3107 = vpop.f32.mrf.mxu0
        %v3108 = vadd.f32 0.0, %v3107
        %v3109 = vpop.f32.mrf.mxu0
        %v3110 = vadd.f32 0.0, %v3109
        %3111 = vdwg.mxu0
        %3112 = vmatpush.bf16.msra.mxu0 %v2989
        %3113 = vmatpush.bf16.msra.mxu0 %v2987
        %3114 = vmatpush.bf16.msra.mxu0 %v2985
        %3115 = vmatpush.bf16.msra.mxu0 %v2983
        %3116 = vmatpush.bf16.msra.mxu0 %v2981
        %3117 = vmatpush.bf16.msra.mxu0 %v2979
        %3118 = vmatpush.bf16.msra.mxu0 %v2977
        %3119 = vmatpush.bf16.msra.mxu0 %v2975
        %3120 = vmatmul.bf16.gmra.mxu0 %v2800
        %v3121 = vpop.f32.mrf.mxu0
        %v3122 = vadd.f32 %v3033, %v3121
        %v3123 = vpop.f32.mrf.mxu0
        %v3124 = vadd.f32 %v3035, %v3123
        %3125 = vmatmul.bf16.gmra.mxu0 %v2802
        %v3126 = vpop.f32.mrf.mxu0
        %v3127 = vadd.f32 %v3038, %v3126
        %v3128 = vpop.f32.mrf.mxu0
        %v3129 = vadd.f32 %v3040, %v3128
        %3130 = vmatmul.bf16.gmra.mxu0 %v2804
        %v3131 = vpop.f32.mrf.mxu0
        %v3132 = vadd.f32 %v3043, %v3131
        %v3133 = vpop.f32.mrf.mxu0
        %v3134 = vadd.f32 %v3045, %v3133
        %3135 = vmatmul.bf16.gmra.mxu0 %v2806
        %v3136 = vpop.f32.mrf.mxu0
        %v3137 = vadd.f32 %v3048, %v3136
        %v3138 = vpop.f32.mrf.mxu0
        %v3139 = vadd.f32 %v3050, %v3138
        %3140 = vmatmul.bf16.gmra.mxu0 %v2808
        %v3141 = vpop.f32.mrf.mxu0
        %v3142 = vadd.f32 %v3053, %v3141
        %v3143 = vpop.f32.mrf.mxu0
        %v3144 = vadd.f32 %v3055, %v3143
        %3145 = vmatmul.bf16.gmra.mxu0 %v2810
        %v3146 = vpop.f32.mrf.mxu0
        %v3147 = vadd.f32 %v3058, %v3146
        %v3148 = vpop.f32.mrf.mxu0
        %v3149 = vadd.f32 %v3060, %v3148
        %3150 = vmatmul.bf16.gmra.mxu0 %v2812
        %v3151 = vpop.f32.mrf.mxu0
        %v3152 = vadd.f32 %v3063, %v3151
        %v3153 = vpop.f32.mrf.mxu0
        %v3154 = vadd.f32 %v3065, %v3153
        %3155 = vmatmul.bf16.gmra.mxu0 %v2814
        %v3156 = vpop.f32.mrf.mxu0
        %v3157 = vadd.f32 %v3068, %v3156
        %v3158 = vpop.f32.mrf.mxu0
        %v3159 = vadd.f32 %v3070, %v3158
        %3160 = vmatmul.bf16.gmra.mxu0 %v2816
        %v3161 = vpop.f32.mrf.mxu0
        %v3162 = vadd.f32 %v3073, %v3161
        %v3163 = vpop.f32.mrf.mxu0
        %v3164 = vadd.f32 %v3075, %v3163
        %3165 = vmatmul.bf16.gmra.mxu0 %v2818
        %v3166 = vpop.f32.mrf.mxu0
        %v3167 = vadd.f32 %v3078, %v3166
        %v3168 = vpop.f32.mrf.mxu0
        %v3169 = vadd.f32 %v3080, %v3168
        %3170 = vmatmul.bf16.gmra.mxu0 %v2820
        %v3171 = vpop.f32.mrf.mxu0
        %v3172 = vadd.f32 %v3083, %v3171
        %v3173 = vpop.f32.mrf.mxu0
        %v3174 = vadd.f32 %v3085, %v3173
        %3175 = vmatmul.bf16.gmra.mxu0 %v2822
        %v3176 = vpop.f32.mrf.mxu0
        %v3177 = vadd.f32 %v3088, %v3176
        %v3178 = vpop.f32.mrf.mxu0
        %v3179 = vadd.f32 %v3090, %v3178
        %3180 = vmatmul.bf16.gmra.mxu0 %v2824
        %v3181 = vpop.f32.mrf.mxu0
        %v3182 = vadd.f32 %v3093, %v3181
        %v3183 = vpop.f32.mrf.mxu0
        %v3184 = vadd.f32 %v3095, %v3183
        %3185 = vmatmul.bf16.gmra.mxu0 %v2826
        %v3186 = vpop.f32.mrf.mxu0
        %v3187 = vadd.f32 %v3098, %v3186
        %v3188 = vpop.f32.mrf.mxu0
        %v3189 = vadd.f32 %v3100, %v3188
        %3190 = vmatmul.bf16.gmra.mxu0 %v2828
        %v3191 = vpop.f32.mrf.mxu0
        %v3192 = vadd.f32 %v3103, %v3191
        %v3193 = vpop.f32.mrf.mxu0
        %v3194 = vadd.f32 %v3105, %v3193
        %3195 = vmatmul.bf16.gmra.mxu0 %v2830
        %v3196 = vpop.f32.mrf.mxu0
        %v3197 = vadd.f32 %v3108, %v3196
        %v3198 = vpop.f32.mrf.mxu0
        %v3199 = vadd.f32 %v3110, %v3198
        %3200 = vdwg.mxu0
        %3201 = vmatpush.bf16.msra.mxu0 %v2974
        %3202 = vmatpush.bf16.msra.mxu0 %v2972
        %3203 = vmatpush.bf16.msra.mxu0 %v2970
        %3204 = vmatpush.bf16.msra.mxu0 %v2968
        %3205 = vmatpush.bf16.msra.mxu0 %v2966
        %3206 = vmatpush.bf16.msra.mxu0 %v2964
        %3207 = vmatpush.bf16.msra.mxu0 %v2962
        %3208 = vmatpush.bf16.msra.mxu0 %v2960
        %3209 = vmatmul.bf16.gmra.mxu0 %v2799
        %v3210 = vpop.f32.mrf.mxu0
        %v3211 = vadd.f32 0.0, %v3210
        %v3212 = vpop.f32.mrf.mxu0
        %v3213 = vadd.f32 0.0, %v3212
        %3214 = vmatmul.bf16.gmra.mxu0 %v2801
        %v3215 = vpop.f32.mrf.mxu0
        %v3216 = vadd.f32 0.0, %v3215
        %v3217 = vpop.f32.mrf.mxu0
        %v3218 = vadd.f32 0.0, %v3217
        %3219 = vmatmul.bf16.gmra.mxu0 %v2803
        %v3220 = vpop.f32.mrf.mxu0
        %v3221 = vadd.f32 0.0, %v3220
        %v3222 = vpop.f32.mrf.mxu0
        %v3223 = vadd.f32 0.0, %v3222
        %3224 = vmatmul.bf16.gmra.mxu0 %v2805
        %v3225 = vpop.f32.mrf.mxu0
        %v3226 = vadd.f32 0.0, %v3225
        %v3227 = vpop.f32.mrf.mxu0
        %v3228 = vadd.f32 0.0, %v3227
        %3229 = vmatmul.bf16.gmra.mxu0 %v2807
        %v3230 = vpop.f32.mrf.mxu0
        %v3231 = vadd.f32 0.0, %v3230
        %v3232 = vpop.f32.mrf.mxu0
        %v3233 = vadd.f32 0.0, %v3232
        %3234 = vmatmul.bf16.gmra.mxu0 %v2809
        %v3235 = vpop.f32.mrf.mxu0
        %v3236 = vadd.f32 0.0, %v3235
        %v3237 = vpop.f32.mrf.mxu0
        %v3238 = vadd.f32 0.0, %v3237
        %3239 = vmatmul.bf16.gmra.mxu0 %v2811
        %v3240 = vpop.f32.mrf.mxu0
        %v3241 = vadd.f32 0.0, %v3240
        %v3242 = vpop.f32.mrf.mxu0
        %v3243 = vadd.f32 0.0, %v3242
        %3244 = vmatmul.bf16.gmra.mxu0 %v2813
        %v3245 = vpop.f32.mrf.mxu0
        %v3246 = vadd.f32 0.0, %v3245
        %v3247 = vpop.f32.mrf.mxu0
        %v3248 = vadd.f32 0.0, %v3247
        %3249 = vmatmul.bf16.gmra.mxu0 %v2815
        %v3250 = vpop.f32.mrf.mxu0
        %v3251 = vadd.f32 0.0, %v3250
        %v3252 = vpop.f32.mrf.mxu0
        %v3253 = vadd.f32 0.0, %v3252
        %3254 = vmatmul.bf16.gmra.mxu0 %v2817
        %v3255 = vpop.f32.mrf.mxu0
        %v3256 = vadd.f32 0.0, %v3255
        %v3257 = vpop.f32.mrf.mxu0
        %v3258 = vadd.f32 0.0, %v3257
        %3259 = vmatmul.bf16.gmra.mxu0 %v2819
        %v3260 = vpop.f32.mrf.mxu0
        %v3261 = vadd.f32 0.0, %v3260
        %v3262 = vpop.f32.mrf.mxu0
        %v3263 = vadd.f32 0.0, %v3262
        %3264 = vmatmul.bf16.gmra.mxu0 %v2821
        %v3265 = vpop.f32.mrf.mxu0
        %v3266 = vadd.f32 0.0, %v3265
        %v3267 = vpop.f32.mrf.mxu0
        %v3268 = vadd.f32 0.0, %v3267
        %3269 = vmatmul.bf16.gmra.mxu0 %v2823
        %v3270 = vpop.f32.mrf.mxu0
        %v3271 = vadd.f32 0.0, %v3270
        %v3272 = vpop.f32.mrf.mxu0
        %v3273 = vadd.f32 0.0, %v3272
        %3274 = vmatmul.bf16.gmra.mxu0 %v2825
        %v3275 = vpop.f32.mrf.mxu0
        %v3276 = vadd.f32 0.0, %v3275
        %v3277 = vpop.f32.mrf.mxu0
        %v3278 = vadd.f32 0.0, %v3277
        %3279 = vmatmul.bf16.gmra.mxu0 %v2827
        %v3280 = vpop.f32.mrf.mxu0
        %v3281 = vadd.f32 0.0, %v3280
        %v3282 = vpop.f32.mrf.mxu0
        %v3283 = vadd.f32 0.0, %v3282
        %3284 = vmatmul.bf16.gmra.mxu0 %v2829
        %v3285 = vpop.f32.mrf.mxu0
        %v3286 = vadd.f32 0.0, %v3285
        %v3287 = vpop.f32.mrf.mxu0
        %v3288 = vadd.f32 0.0, %v3287
        %3289 = vdwg.mxu0
        %3290 = vmatpush.bf16.msra.mxu0 %v2990
        %3291 = vmatpush.bf16.msra.mxu0 %v2988
        %3292 = vmatpush.bf16.msra.mxu0 %v2986
        %3293 = vmatpush.bf16.msra.mxu0 %v2984
        %3294 = vmatpush.bf16.msra.mxu0 %v2982
        %3295 = vmatpush.bf16.msra.mxu0 %v2980
        %3296 = vmatpush.bf16.msra.mxu0 %v2978
        %3297 = vmatpush.bf16.msra.mxu0 %v2976
        %3298 = vmatmul.bf16.gmra.mxu0 %v2800
        %v3299 = vpop.f32.mrf.mxu0
        %v3300 = vadd.f32 %v3211, %v3299
        %v3301 = vpop.f32.mrf.mxu0
        %v3302 = vadd.f32 %v3213, %v3301
        %3303 = vmatmul.bf16.gmra.mxu0 %v2802
        %v3304 = vpop.f32.mrf.mxu0
        %v3305 = vadd.f32 %v3216, %v3304
        %v3306 = vpop.f32.mrf.mxu0
        %v3307 = vadd.f32 %v3218, %v3306
        %3308 = vmatmul.bf16.gmra.mxu0 %v2804
        %v3309 = vpop.f32.mrf.mxu0
        %v3310 = vadd.f32 %v3221, %v3309
        %v3311 = vpop.f32.mrf.mxu0
        %v3312 = vadd.f32 %v3223, %v3311
        %3313 = vmatmul.bf16.gmra.mxu0 %v2806
        %v3314 = vpop.f32.mrf.mxu0
        %v3315 = vadd.f32 %v3226, %v3314
        %v3316 = vpop.f32.mrf.mxu0
        %v3317 = vadd.f32 %v3228, %v3316
        %3318 = vmatmul.bf16.gmra.mxu0 %v2808
        %v3319 = vpop.f32.mrf.mxu0
        %v3320 = vadd.f32 %v3231, %v3319
        %v3321 = vpop.f32.mrf.mxu0
        %v3322 = vadd.f32 %v3233, %v3321
        %3323 = vmatmul.bf16.gmra.mxu0 %v2810
        %v3324 = vpop.f32.mrf.mxu0
        %v3325 = vadd.f32 %v3236, %v3324
        %v3326 = vpop.f32.mrf.mxu0
        %v3327 = vadd.f32 %v3238, %v3326
        %3328 = vmatmul.bf16.gmra.mxu0 %v2812
        %v3329 = vpop.f32.mrf.mxu0
        %v3330 = vadd.f32 %v3241, %v3329
        %v3331 = vpop.f32.mrf.mxu0
        %v3332 = vadd.f32 %v3243, %v3331
        %3333 = vmatmul.bf16.gmra.mxu0 %v2814
        %v3334 = vpop.f32.mrf.mxu0
        %v3335 = vadd.f32 %v3246, %v3334
        %v3336 = vpop.f32.mrf.mxu0
        %v3337 = vadd.f32 %v3248, %v3336
        %3338 = vmatmul.bf16.gmra.mxu0 %v2816
        %v3339 = vpop.f32.mrf.mxu0
        %v3340 = vadd.f32 %v3251, %v3339
        %v3341 = vpop.f32.mrf.mxu0
        %v3342 = vadd.f32 %v3253, %v3341
        %3343 = vmatmul.bf16.gmra.mxu0 %v2818
        %v3344 = vpop.f32.mrf.mxu0
        %v3345 = vadd.f32 %v3256, %v3344
        %v3346 = vpop.f32.mrf.mxu0
        %v3347 = vadd.f32 %v3258, %v3346
        %3348 = vmatmul.bf16.gmra.mxu0 %v2820
        %v3349 = vpop.f32.mrf.mxu0
        %v3350 = vadd.f32 %v3261, %v3349
        %v3351 = vpop.f32.mrf.mxu0
        %v3352 = vadd.f32 %v3263, %v3351
        %3353 = vmatmul.bf16.gmra.mxu0 %v2822
        %v3354 = vpop.f32.mrf.mxu0
        %v3355 = vadd.f32 %v3266, %v3354
        %v3356 = vpop.f32.mrf.mxu0
        %v3357 = vadd.f32 %v3268, %v3356
        %3358 = vmatmul.bf16.gmra.mxu0 %v2824
        %v3359 = vpop.f32.mrf.mxu0
        %v3360 = vadd.f32 %v3271, %v3359
        %v3361 = vpop.f32.mrf.mxu0
        %v3362 = vadd.f32 %v3273, %v3361
        %3363 = vmatmul.bf16.gmra.mxu0 %v2826
        %v3364 = vpop.f32.mrf.mxu0
        %v3365 = vadd.f32 %v3276, %v3364
        %v3366 = vpop.f32.mrf.mxu0
        %v3367 = vadd.f32 %v3278, %v3366
        %3368 = vmatmul.bf16.gmra.mxu0 %v2828
        %v3369 = vpop.f32.mrf.mxu0
        %v3370 = vadd.f32 %v3281, %v3369
        %v3371 = vpop.f32.mrf.mxu0
        %v3372 = vadd.f32 %v3283, %v3371
        %3373 = vmatmul.bf16.gmra.mxu0 %v2830
        %v3374 = vpop.f32.mrf.mxu0
        %v3375 = vadd.f32 %v3286, %v3374
        %v3376 = vpop.f32.mrf.mxu0
        %v3377 = vadd.f32 %v3288, %v3376
        %3378 = vdwg.mxu0
        %p3379 = scmp.eq.s32.totalorder %s24, 0
        // Predicated region
        $region45: #{tpu_custom_call.1} parent=31 // pred_check
          %p3380 = pneg %p3379
        $region46: #{tpu_custom_call.1} parent=31 // pred_check_branch
          %3382 = sbr.rel (%p3380) target = $region48
        $region47: #{tpu_custom_call.1} parent=31 // pred_region
          %3383 = vst [vmem:[#allocation8] sm:$0xff] %v3122
          %3384 = vst [vmem:[#allocation8 + $0x8] sm:$0xff] %v3300
          %3385 = vst [vmem:[#allocation8 + $0x10] sm:$0xff] %v3124
          %3386 = vst [vmem:[#allocation8 + $0x18] sm:$0xff] %v3302
          %3387 = vst [vmem:[#allocation8 + $0x20] sm:$0xff] %v3127
          %3388 = vst [vmem:[#allocation8 + $0x28] sm:$0xff] %v3305
          %3389 = vst [vmem:[#allocation8 + $0x30] sm:$0xff] %v3129
          %3390 = vst [vmem:[#allocation8 + $0x38] sm:$0xff] %v3307
          %3391 = vst [vmem:[#allocation8 + $0x40] sm:$0xff] %v3132
          %3392 = vst [vmem:[#allocation8 + $0x48] sm:$0xff] %v3310
          %3393 = vst [vmem:[#allocation8 + $0x50] sm:$0xff] %v3134
          %3394 = vst [vmem:[#allocation8 + $0x58] sm:$0xff] %v3312
          %3395 = vst [vmem:[#allocation8 + $0x60] sm:$0xff] %v3137
          %3396 = vst [vmem:[#allocation8 + $0x68] sm:$0xff] %v3315
          %3397 = vst [vmem:[#allocation8 + $0x70] sm:$0xff] %v3139
          %3398 = vst [vmem:[#allocation8 + $0x78] sm:$0xff] %v3317
          %3399 = vst [vmem:[#allocation8 + $0x80] sm:$0xff] %v3142
          %3400 = vst [vmem:[#allocation8 + $0x88] sm:$0xff] %v3320
          %3401 = vst [vmem:[#allocation8 + $0x90] sm:$0xff] %v3144
          %3402 = vst [vmem:[#allocation8 + $0x98] sm:$0xff] %v3322
          %3403 = vst [vmem:[#allocation8 + $0xa0] sm:$0xff] %v3147
          %3404 = vst [vmem:[#allocation8 + $0xa8] sm:$0xff] %v3325
          %3405 = vst [vmem:[#allocation8 + $0xb0] sm:$0xff] %v3149
          %3406 = vst [vmem:[#allocation8 + $0xb8] sm:$0xff] %v3327
          %3407 = vst [vmem:[#allocation8 + $0xc0] sm:$0xff] %v3152
          %3408 = vst [vmem:[#allocation8 + $0xc8] sm:$0xff] %v3330
          %3409 = vst [vmem:[#allocation8 + $0xd0] sm:$0xff] %v3154
          %3410 = vst [vmem:[#allocation8 + $0xd8] sm:$0xff] %v3332
          %3411 = vst [vmem:[#allocation8 + $0xe0] sm:$0xff] %v3157
          %3412 = vst [vmem:[#allocation8 + $0xe8] sm:$0xff] %v3335
          %3413 = vst [vmem:[#allocation8 + $0xf0] sm:$0xff] %v3159
          %3414 = vst [vmem:[#allocation8 + $0xf8] sm:$0xff] %v3337
          %3415 = vst [vmem:[#allocation8 + $0x100] sm:$0xff] %v3162
          %3416 = vst [vmem:[#allocation8 + $0x108] sm:$0xff] %v3340
          %3417 = vst [vmem:[#allocation8 + $0x110] sm:$0xff] %v3164
          %3418 = vst [vmem:[#allocation8 + $0x118] sm:$0xff] %v3342
          %3419 = vst [vmem:[#allocation8 + $0x120] sm:$0xff] %v3167
          %3420 = vst [vmem:[#allocation8 + $0x128] sm:$0xff] %v3345
          %3421 = vst [vmem:[#allocation8 + $0x130] sm:$0xff] %v3169
          %3422 = vst [vmem:[#allocation8 + $0x138] sm:$0xff] %v3347
          %3423 = vst [vmem:[#allocation8 + $0x140] sm:$0xff] %v3172
          %3424 = vst [vmem:[#allocation8 + $0x148] sm:$0xff] %v3350
          %3425 = vst [vmem:[#allocation8 + $0x150] sm:$0xff] %v3174
          %3426 = vst [vmem:[#allocation8 + $0x158] sm:$0xff] %v3352
          %3427 = vst [vmem:[#allocation8 + $0x160] sm:$0xff] %v3177
          %3428 = vst [vmem:[#allocation8 + $0x168] sm:$0xff] %v3355
          %3429 = vst [vmem:[#allocation8 + $0x170] sm:$0xff] %v3179
          %3430 = vst [vmem:[#allocation8 + $0x178] sm:$0xff] %v3357
          %3431 = vst [vmem:[#allocation8 + $0x180] sm:$0xff] %v3182
          %3432 = vst [vmem:[#allocation8 + $0x188] sm:$0xff] %v3360
          %3433 = vst [vmem:[#allocation8 + $0x190] sm:$0xff] %v3184
          %3434 = vst [vmem:[#allocation8 + $0x198] sm:$0xff] %v3362
          %3435 = vst [vmem:[#allocation8 + $0x1a0] sm:$0xff] %v3187
          %3436 = vst [vmem:[#allocation8 + $0x1a8] sm:$0xff] %v3365
          %3437 = vst [vmem:[#allocation8 + $0x1b0] sm:$0xff] %v3189
          %3438 = vst [vmem:[#allocation8 + $0x1b8] sm:$0xff] %v3367
          %3439 = vst [vmem:[#allocation8 + $0x1c0] sm:$0xff] %v3192
          %3440 = vst [vmem:[#allocation8 + $0x1c8] sm:$0xff] %v3370
          %3441 = vst [vmem:[#allocation8 + $0x1d0] sm:$0xff] %v3194
          %3442 = vst [vmem:[#allocation8 + $0x1d8] sm:$0xff] %v3372
          %3443 = vst [vmem:[#allocation8 + $0x1e0] sm:$0xff] %v3197
          %3444 = vst [vmem:[#allocation8 + $0x1e8] sm:$0xff] %v3375
          %3445 = vst [vmem:[#allocation8 + $0x1f0] sm:$0xff] %v3199
          %3446 = vst [vmem:[#allocation8 + $0x1f8] sm:$0xff] %v3377
        $region48: #{tpu_custom_call.1} parent=31 // pred_fallthru
          _
        %p3447 = scmp.gt.s32.totalorder %s24, 0
        // Predicated region
        $region49: #{tpu_custom_call.1} parent=31 // pred_check
          %p3448 = pneg %p3447
        $region50: #{tpu_custom_call.1} parent=31 // pred_check_branch
          %3450 = sbr.rel (%p3448) target = $region52
        $region51: #{tpu_custom_call.1} parent=31 // pred_region
          %v3451 = vld [vmem:[#allocation8] sm:$0xff]
          %v3452 = vld [vmem:[#allocation8 + $0x8] sm:$0xff]
          %v3453 = vld [vmem:[#allocation8 + $0x10] sm:$0xff]
          %v3454 = vld [vmem:[#allocation8 + $0x18] sm:$0xff]
          %v3455 = vld [vmem:[#allocation8 + $0x20] sm:$0xff]
          %v3456 = vld [vmem:[#allocation8 + $0x28] sm:$0xff]
          %v3457 = vld [vmem:[#allocation8 + $0x30] sm:$0xff]
          %v3458 = vld [vmem:[#allocation8 + $0x38] sm:$0xff]
          %v3459 = vld [vmem:[#allocation8 + $0x40] sm:$0xff]
          %v3460 = vld [vmem:[#allocation8 + $0x48] sm:$0xff]
          %v3461 = vld [vmem:[#allocation8 + $0x50] sm:$0xff]
          %v3462 = vld [vmem:[#allocation8 + $0x58] sm:$0xff]
          %v3463 = vld [vmem:[#allocation8 + $0x60] sm:$0xff]
          %v3464 = vld [vmem:[#allocation8 + $0x68] sm:$0xff]
          %v3465 = vld [vmem:[#allocation8 + $0x70] sm:$0xff]
          %v3466 = vld [vmem:[#allocation8 + $0x78] sm:$0xff]
          %v3467 = vld [vmem:[#allocation8 + $0x80] sm:$0xff]
          %v3468 = vld [vmem:[#allocation8 + $0x88] sm:$0xff]
          %v3469 = vld [vmem:[#allocation8 + $0x90] sm:$0xff]
          %v3470 = vld [vmem:[#allocation8 + $0x98] sm:$0xff]
          %v3471 = vld [vmem:[#allocation8 + $0xa0] sm:$0xff]
          %v3472 = vld [vmem:[#allocation8 + $0xa8] sm:$0xff]
          %v3473 = vld [vmem:[#allocation8 + $0xb0] sm:$0xff]
          %v3474 = vld [vmem:[#allocation8 + $0xb8] sm:$0xff]
          %v3475 = vld [vmem:[#allocation8 + $0xc0] sm:$0xff]
          %v3476 = vld [vmem:[#allocation8 + $0xc8] sm:$0xff]
          %v3477 = vld [vmem:[#allocation8 + $0xd0] sm:$0xff]
          %v3478 = vld [vmem:[#allocation8 + $0xd8] sm:$0xff]
          %v3479 = vld [vmem:[#allocation8 + $0xe0] sm:$0xff]
          %v3480 = vld [vmem:[#allocation8 + $0xe8] sm:$0xff]
          %v3481 = vld [vmem:[#allocation8 + $0xf0] sm:$0xff]
          %v3482 = vld [vmem:[#allocation8 + $0xf8] sm:$0xff]
          %v3483 = vld [vmem:[#allocation8 + $0x100] sm:$0xff]
          %v3484 = vld [vmem:[#allocation8 + $0x108] sm:$0xff]
          %v3485 = vld [vmem:[#allocation8 + $0x110] sm:$0xff]
          %v3486 = vld [vmem:[#allocation8 + $0x118] sm:$0xff]
          %v3487 = vld [vmem:[#allocation8 + $0x120] sm:$0xff]
          %v3488 = vld [vmem:[#allocation8 + $0x128] sm:$0xff]
          %v3489 = vld [vmem:[#allocation8 + $0x130] sm:$0xff]
          %v3490 = vld [vmem:[#allocation8 + $0x138] sm:$0xff]
          %v3491 = vld [vmem:[#allocation8 + $0x140] sm:$0xff]
          %v3492 = vld [vmem:[#allocation8 + $0x148] sm:$0xff]
          %v3493 = vld [vmem:[#allocation8 + $0x150] sm:$0xff]
          %v3494 = vld [vmem:[#allocation8 + $0x158] sm:$0xff]
          %v3495 = vld [vmem:[#allocation8 + $0x160] sm:$0xff]
          %v3496 = vld [vmem:[#allocation8 + $0x168] sm:$0xff]
          %v3497 = vld [vmem:[#allocation8 + $0x170] sm:$0xff]
          %v3498 = vld [vmem:[#allocation8 + $0x178] sm:$0xff]
          %v3499 = vld [vmem:[#allocation8 + $0x180] sm:$0xff]
          %v3500 = vld [vmem:[#allocation8 + $0x188] sm:$0xff]
          %v3501 = vld [vmem:[#allocation8 + $0x190] sm:$0xff]
          %v3502 = vld [vmem:[#allocation8 + $0x198] sm:$0xff]
          %v3503 = vld [vmem:[#allocation8 + $0x1a0] sm:$0xff]
          %v3504 = vld [vmem:[#allocation8 + $0x1a8] sm:$0xff]
          %v3505 = vld [vmem:[#allocation8 + $0x1b0] sm:$0xff]
          %v3506 = vld [vmem:[#allocation8 + $0x1b8] sm:$0xff]
          %v3507 = vld [vmem:[#allocation8 + $0x1c0] sm:$0xff]
          %v3508 = vld [vmem:[#allocation8 + $0x1c8] sm:$0xff]
          %v3509 = vld [vmem:[#allocation8 + $0x1d0] sm:$0xff]
          %v3510 = vld [vmem:[#allocation8 + $0x1d8] sm:$0xff]
          %v3511 = vld [vmem:[#allocation8 + $0x1e0] sm:$0xff]
          %v3512 = vld [vmem:[#allocation8 + $0x1e8] sm:$0xff]
          %v3513 = vld [vmem:[#allocation8 + $0x1f0] sm:$0xff]
          %v3514 = vld [vmem:[#allocation8 + $0x1f8] sm:$0xff]
          %v3515 = vadd.f32 %v3451, %v3122
          %v3516 = vadd.f32 %v3452, %v3300
          %v3517 = vadd.f32 %v3453, %v3124
          %v3518 = vadd.f32 %v3454, %v3302
          %v3519 = vadd.f32 %v3455, %v3127
          %v3520 = vadd.f32 %v3456, %v3305
          %v3521 = vadd.f32 %v3457, %v3129
          %v3522 = vadd.f32 %v3458, %v3307
          %v3523 = vadd.f32 %v3459, %v3132
          %v3524 = vadd.f32 %v3460, %v3310
          %v3525 = vadd.f32 %v3461, %v3134
          %v3526 = vadd.f32 %v3462, %v3312
          %v3527 = vadd.f32 %v3463, %v3137
          %v3528 = vadd.f32 %v3464, %v3315
          %v3529 = vadd.f32 %v3465, %v3139
          %v3530 = vadd.f32 %v3466, %v3317
          %v3531 = vadd.f32 %v3467, %v3142
          %v3532 = vadd.f32 %v3468, %v3320
          %v3533 = vadd.f32 %v3469, %v3144
          %v3534 = vadd.f32 %v3470, %v3322
          %v3535 = vadd.f32 %v3471, %v3147
          %v3536 = vadd.f32 %v3472, %v3325
          %v3537 = vadd.f32 %v3473, %v3149
          %v3538 = vadd.f32 %v3474, %v3327
          %v3539 = vadd.f32 %v3475, %v3152
          %v3540 = vadd.f32 %v3476, %v3330
          %v3541 = vadd.f32 %v3477, %v3154
          %v3542 = vadd.f32 %v3478, %v3332
          %v3543 = vadd.f32 %v3479, %v3157
          %v3544 = vadd.f32 %v3480, %v3335
          %v3545 = vadd.f32 %v3481, %v3159
          %v3546 = vadd.f32 %v3482, %v3337
          %v3547 = vadd.f32 %v3483, %v3162
          %v3548 = vadd.f32 %v3484, %v3340
          %v3549 = vadd.f32 %v3485, %v3164
          %v3550 = vadd.f32 %v3486, %v3342
          %v3551 = vadd.f32 %v3487, %v3167
          %v3552 = vadd.f32 %v3488, %v3345
          %v3553 = vadd.f32 %v3489, %v3169
          %v3554 = vadd.f32 %v3490, %v3347
          %v3555 = vadd.f32 %v3491, %v3172
          %v3556 = vadd.f32 %v3492, %v3350
          %v3557 = vadd.f32 %v3493, %v3174
          %v3558 = vadd.f32 %v3494, %v3352
          %v3559 = vadd.f32 %v3495, %v3177
          %v3560 = vadd.f32 %v3496, %v3355
          %v3561 = vadd.f32 %v3497, %v3179
          %v3562 = vadd.f32 %v3498, %v3357
          %v3563 = vadd.f32 %v3499, %v3182
          %v3564 = vadd.f32 %v3500, %v3360
          %v3565 = vadd.f32 %v3501, %v3184
          %v3566 = vadd.f32 %v3502, %v3362
          %v3567 = vadd.f32 %v3503, %v3187
          %v3568 = vadd.f32 %v3504, %v3365
          %v3569 = vadd.f32 %v3505, %v3189
          %v3570 = vadd.f32 %v3506, %v3367
          %v3571 = vadd.f32 %v3507, %v3192
          %v3572 = vadd.f32 %v3508, %v3370
          %v3573 = vadd.f32 %v3509, %v3194
          %v3574 = vadd.f32 %v3510, %v3372
          %v3575 = vadd.f32 %v3511, %v3197
          %v3576 = vadd.f32 %v3512, %v3375
          %v3577 = vadd.f32 %v3513, %v3199
          %v3578 = vadd.f32 %v3514, %v3377
          %3579 = vst [vmem:[#allocation8] sm:$0xff] %v3515
          %3580 = vst [vmem:[#allocation8 + $0x8] sm:$0xff] %v3516
          %3581 = vst [vmem:[#allocation8 + $0x10] sm:$0xff] %v3517
          %3582 = vst [vmem:[#allocation8 + $0x18] sm:$0xff] %v3518
          %3583 = vst [vmem:[#allocation8 + $0x20] sm:$0xff] %v3519
          %3584 = vst [vmem:[#allocation8 + $0x28] sm:$0xff] %v3520
          %3585 = vst [vmem:[#allocation8 + $0x30] sm:$0xff] %v3521
          %3586 = vst [vmem:[#allocation8 + $0x38] sm:$0xff] %v3522
          %3587 = vst [vmem:[#allocation8 + $0x40] sm:$0xff] %v3523
          %3588 = vst [vmem:[#allocation8 + $0x48] sm:$0xff] %v3524
          %3589 = vst [vmem:[#allocation8 + $0x50] sm:$0xff] %v3525
          %3590 = vst [vmem:[#allocation8 + $0x58] sm:$0xff] %v3526
          %3591 = vst [vmem:[#allocation8 + $0x60] sm:$0xff] %v3527
          %3592 = vst [vmem:[#allocation8 + $0x68] sm:$0xff] %v3528
          %3593 = vst [vmem:[#allocation8 + $0x70] sm:$0xff] %v3529
          %3594 = vst [vmem:[#allocation8 + $0x78] sm:$0xff] %v3530
          %3595 = vst [vmem:[#allocation8 + $0x80] sm:$0xff] %v3531
          %3596 = vst [vmem:[#allocation8 + $0x88] sm:$0xff] %v3532
          %3597 = vst [vmem:[#allocation8 + $0x90] sm:$0xff] %v3533
          %3598 = vst [vmem:[#allocation8 + $0x98] sm:$0xff] %v3534
          %3599 = vst [vmem:[#allocation8 + $0xa0] sm:$0xff] %v3535
          %3600 = vst [vmem:[#allocation8 + $0xa8] sm:$0xff] %v3536
          %3601 = vst [vmem:[#allocation8 + $0xb0] sm:$0xff] %v3537
          %3602 = vst [vmem:[#allocation8 + $0xb8] sm:$0xff] %v3538
          %3603 = vst [vmem:[#allocation8 + $0xc0] sm:$0xff] %v3539
          %3604 = vst [vmem:[#allocation8 + $0xc8] sm:$0xff] %v3540
          %3605 = vst [vmem:[#allocation8 + $0xd0] sm:$0xff] %v3541
          %3606 = vst [vmem:[#allocation8 + $0xd8] sm:$0xff] %v3542
          %3607 = vst [vmem:[#allocation8 + $0xe0] sm:$0xff] %v3543
          %3608 = vst [vmem:[#allocation8 + $0xe8] sm:$0xff] %v3544
          %3609 = vst [vmem:[#allocation8 + $0xf0] sm:$0xff] %v3545
          %3610 = vst [vmem:[#allocation8 + $0xf8] sm:$0xff] %v3546
          %3611 = vst [vmem:[#allocation8 + $0x100] sm:$0xff] %v3547
          %3612 = vst [vmem:[#allocation8 + $0x108] sm:$0xff] %v3548
          %3613 = vst [vmem:[#allocation8 + $0x110] sm:$0xff] %v3549
          %3614 = vst [vmem:[#allocation8 + $0x118] sm:$0xff] %v3550
          %3615 = vst [vmem:[#allocation8 + $0x120] sm:$0xff] %v3551
          %3616 = vst [vmem:[#allocation8 + $0x128] sm:$0xff] %v3552
          %3617 = vst [vmem:[#allocation8 + $0x130] sm:$0xff] %v3553
          %3618 = vst [vmem:[#allocation8 + $0x138] sm:$0xff] %v3554
          %3619 = vst [vmem:[#allocation8 + $0x140] sm:$0xff] %v3555
          %3620 = vst [vmem:[#allocation8 + $0x148] sm:$0xff] %v3556
          %3621 = vst [vmem:[#allocation8 + $0x150] sm:$0xff] %v3557
          %3622 = vst [vmem:[#allocation8 + $0x158] sm:$0xff] %v3558
          %3623 = vst [vmem:[#allocation8 + $0x160] sm:$0xff] %v3559
          %3624 = vst [vmem:[#allocation8 + $0x168] sm:$0xff] %v3560
          %3625 = vst [vmem:[#allocation8 + $0x170] sm:$0xff] %v3561
          %3626 = vst [vmem:[#allocation8 + $0x178] sm:$0xff] %v3562
          %3627 = vst [vmem:[#allocation8 + $0x180] sm:$0xff] %v3563
          %3628 = vst [vmem:[#allocation8 + $0x188] sm:$0xff] %v3564
          %3629 = vst [vmem:[#allocation8 + $0x190] sm:$0xff] %v3565
          %3630 = vst [vmem:[#allocation8 + $0x198] sm:$0xff] %v3566
          %3631 = vst [vmem:[#allocation8 + $0x1a0] sm:$0xff] %v3567
          %3632 = vst [vmem:[#allocation8 + $0x1a8] sm:$0xff] %v3568
          %3633 = vst [vmem:[#allocation8 + $0x1b0] sm:$0xff] %v3569
          %3634 = vst [vmem:[#allocation8 + $0x1b8] sm:$0xff] %v3570
          %3635 = vst [vmem:[#allocation8 + $0x1c0] sm:$0xff] %v3571
          %3636 = vst [vmem:[#allocation8 + $0x1c8] sm:$0xff] %v3572
          %3637 = vst [vmem:[#allocation8 + $0x1d0] sm:$0xff] %v3573
          %3638 = vst [vmem:[#allocation8 + $0x1d8] sm:$0xff] %v3574
          %3639 = vst [vmem:[#allocation8 + $0x1e0] sm:$0xff] %v3575
          %3640 = vst [vmem:[#allocation8 + $0x1e8] sm:$0xff] %v3576
          %3641 = vst [vmem:[#allocation8 + $0x1f0] sm:$0xff] %v3577
          %3642 = vst [vmem:[#allocation8 + $0x1f8] sm:$0xff] %v3578
        $region52: #{tpu_custom_call.1} parent=31 // pred_fallthru
          _
        // Predicated region
        $region53: #{tpu_custom_call.1} parent=31 // pred_check
          %p3643 = pneg %p127
        $region54: #{tpu_custom_call.1} parent=31 // pred_check_branch
          %3645 = sbr.rel (%p3643) target = $region56
        $region55: #{tpu_custom_call.1} parent=31 // pred_region
          %s3646 = smul.u32 32, %s23
          %3648 = vsyncadd [#allocation4], 0
          %s3649 = smul.addr %s3646, 2
          %s3650 = smul.addr %s3649, 8
          %s3651 = scalar_lea.hbm %s3, %s3650
          %s3652 = sshll.u32 [#allocation8], 4
          %s3653 = int_to_ptr.vmem [resolvable:$true] %s3652
          %s3654 = sshll.u32 %s3651, 4
          %s3655 = int_to_ptr.hbm [resolvable:$true] %s3654
          %3660 = dma.vmem_to_hbm [thread:$0]  %s3653, 8192, %s3655, [#allocation4], 256, 256, 16
        $region56: #{tpu_custom_call.1} parent=31 // pred_fallthru
          _
        // Predicated region
        $region57: #{tpu_custom_call.1} parent=31 // pred_check
          %p3661 = pneg %p127
        $region58: #{tpu_custom_call.1} parent=31 // pred_check_branch
          %3663 = sbr.rel (%p3661) target = $region60
        $region59: #{tpu_custom_call.1} parent=31 // pred_region
          %3665 = dma.done [#allocation4], 8192
        $region60: #{tpu_custom_call.1} parent=31 // pred_fallthru
          _
      $region32: #{tpu_custom_call.1} parent=5 // pred_fallthru
        _
      %p3666 = scmp.le.s32.totalorder 2, %s14
      // Predicated region
      $region61: #{tpu_custom_call.1} parent=5 // pred_check
        %p3667 = pneg %p3666
      $region62: #{tpu_custom_call.1} parent=5 // pred_check_branch
        %3669 = sbr.rel (%p3667) target = $region64
      $region63: #{tpu_custom_call.1} parent=5 // pred_region
        %s3670 = ssub.s32 %s14, 2
      $region64: #{tpu_custom_call.1} parent=5 // pred_fallthru
        _
    $region6: #{tpu_custom_call.1} parent=1 // loop_footer
      %s18 = sadd.s32 1, %s14
    $region7: #{tpu_custom_call.1} parent=1 // loop_footer_branch
      %13 = sbr.rel target = $region3
    $region8: #{tpu_custom_call.1} parent=1 // loop_exit
      _
    %3671 = vsyncpa [#allocation3], 1
    %s3672 = scalar_lea.sflag [#allocation3], 1
    %3673 = vsyncpa %s3672, 1
    %3674 = vsyncpa [#allocation6], 1
    %s3675 = scalar_lea.sflag [#allocation6], 1
    %3676 = vsyncpa %s3675, 1
    %3677 = vsyncpa [#allocation4], 1
    %s3678 = scalar_lea.sflag [#allocation4], 1
    %3679 = vsyncpa %s3678, 1

</llo_original>
